<compile_context>
chip_gen: v5e
topology: v5e:2x2
jax: 0.10.0
libtpu: 0.0.40
codegen_flags: <defaults>
</compile_context>

<pallas_src>
import math

import numpy as np
import jax
import jax.numpy as jnp
from jax import lax
from jax.experimental import pallas as pl
from jax.experimental.pallas import tpu as pltpu


# ----------------------------- parameter setup (plain Python glue) -----------------------------

def _l_o_g(x, y, sigma):
    nom = y ** 2 + x ** 2 - 2 * sigma ** 2
    denom = 2 * math.pi * sigma ** 6
    expo = math.exp(-(x ** 2 + y ** 2) / (2 * sigma ** 2))
    return nom * expo / denom


def create_log(sigma=1.1, size=5):
    w = math.ceil(float(size) * float(sigma))
    if w % 2 == 0:
        w = w + 1
    w_range = int(math.floor(w / 2))
    mask = []
    for i in range(-w_range, w_range):
        for j in range(-w_range, w_range):
            mask.append(_l_o_g(i, j, sigma))
    mask = np.array(mask).reshape(size + 1, size + 1)
    return mask[1:, 1:]          # (5, 5) LoG filter — exactly as in the torch module


# ----------------------------- Pallas kernel -----------------------------

def _make_mm_kernel(C, H, W):
    Hp, Wp = H // 2, W // 2       # MaxPool2d(k=3, s=2, p=1) output size (H, W even)
    G, T = 3, 5                   # conv channels / frames: input channel c = i*5 + t
    KW = 5
    GHp = G * Hp
    f32, bf16 = jnp.float32, jnp.bfloat16

    def kernel(x_ref, sw_ref, sh_ref, bhv_ref, uh_ref, uw_ref, brow_ref, o_ref):
        # x_ref   : (C, H, W)          f32
        # sw_ref  : (W, 3*Wp)          bf16  lane-concat clamped pool taps, W direction
        # sh_ref  : (H, 3*Hp)          bf16  lane-concat clamped pool taps, H direction
        # bhv_ref : (KW, 3*Hp, 3*Hp)   bf16  per-W-tap banded conv weights, out-chan fused on lanes
        # uh_ref  : (Hp, H)            bf16  nearest x2 upsample selection (H)
        # uw_ref  : (Wp, W)            bf16  nearest x2 upsample selection (W)
        # brow_ref: (1, 3*Hp)          f32   conv bias row (bias[o] repeated Hp times)
        # o_ref   : (G, T, H, W)       f32
        x2 = x_ref[...].reshape(C * H, W).astype(bf16)

        # ---------- MaxPool, W direction: one lane-dense matmul + 3-way VPU max ----------
        ywc = jnp.dot(x2, sw_ref[...], preferred_element_type=f32)             # (C*H, 3*Wp)
        yw = jnp.maximum(jnp.maximum(ywc[:, :Wp], ywc[:, Wp:2 * Wp]), ywc[:, 2 * Wp:])
        yw = yw.reshape(C, H, Wp)

        # ---------- single minor-dim transpose: pooled-W -> sublanes, H -> lanes ----------
        ywt = jnp.swapaxes(yw, -1, -2).reshape(C * Wp, H).astype(bf16)         # (C*Wp, H)

        # ---------- MaxPool, H direction: one lane-dense matmul + 3-way VPU max ----------
        ptc = jnp.dot(ywt, sh_ref[...], preferred_element_type=f32)            # (C*Wp, 3*Hp)
        pt = jnp.maximum(jnp.maximum(ptc[:, :Hp], ptc[:, Hp:2 * Hp]), ptc[:, 2 * Hp:])
        pt = pt.reshape(C, Wp, Hp).astype(bf16)     # pooled, transposed: [c, pw, ph]

        # ---------- Conv3d(3->3,(1,5,5),pad(0,2,2)) as 5 accumulated lane-dense matmuls ----------
        # lane axis stacks (input channel i, pooled-H row); no `lfull` materialisation.
        pct = jnp.concatenate([pt[i * T:(i + 1) * T] for i in range(G)], axis=-1)  # (T, Wp, 3*Hp)
        zpad = jnp.zeros((T, 2, GHp), bf16)
        ppct = jnp.concatenate([zpad, pct, zpad], axis=1)                      # (T, Wp+4, 3*Hp)
        acc = jnp.broadcast_to(brow_ref[...], (T * Wp, GHp))                   # bias init (f32)
        for v in range(KW):                                                    # static unroll (5)
            lhs_v = ppct[:, v:v + Wp, :].reshape(T * Wp, GHp)
            acc = acc + jnp.dot(lhs_v, bhv_ref[v], preferred_element_type=f32)
        # acc[t*Wp + pw, o*Hp + ph] = conv(pooled)[o, t, ph, pw] + bias[o]

        # ---------- split fused output channels back to the leading axis (smallest tensor) ----------
        convs = jnp.stack([acc[:, o * Hp:(o + 1) * Hp] for o in range(G)], axis=0)
        convs = convs.reshape(G * T * Wp, Hp).astype(bf16)                     # (G*T*Wp, Hp)

        # ---------- nearest x2 upsample in H (lane axis), batched over (o, t, pw) ----------
        uph = jnp.dot(convs, uh_ref[...], preferred_element_type=f32)          # (G*T*Wp, H)
        # ---------- transpose back: W returns to the lane axis ----------
        upht = jnp.swapaxes(uph.reshape(G, T, Wp, H), -1, -2)                  # (G, T, H, Wp)
        upht = upht.reshape(G * T * H, Wp).astype(bf16)
        # ---------- nearest x2 upsample in W, batched over (o, t, h) ----------
        out = jnp.dot(upht, uw_ref[...], preferred_element_type=f32)           # (G*T*H, W)
        o_ref[...] = out.reshape(G, T, H, W)

    return kernel


def _vmem_limit_bytes():
    # Generation-aware VMEM policy (perf review): raise the cap on 128-MiB parts so the
    # whole-image-per-batch block survives larger frames; keep headroom on 64-MiB/TC parts.
    try:
        kind = jax.devices()[0].device_kind.lower()
    except Exception:
        kind = ""
    if any(t in kind for t in ("v4", "v5", "v6")):
        return 100 * 1024 * 1024        # 128 MiB VMEM parts (v5e / v6e / ...)
    return 40 * 1024 * 1024             # v7x (64 MiB per TC) and unknown parts


def mm_forward(x, weight, bias, *, single_buffer_consts=True):
    """Pallas implementation of MM.forward.  weight: (3,3,5,5), bias: (3,).  Returns (mm, x_rgb)."""
    B, C, H, W = x.shape
    assert C == 15 and H % 2 == 0 and W % 2 == 0
    Hp, Wp = H // 2, W // 2
    G, T, KH, KW = 3, 5, 5, 5
    f32, bf16 = jnp.float32, jnp.bfloat16
    x_rgb = x[:, -3:, :, :]                                          # glue: pure slice

    # ---- precompute small selection / banded-weight constants (bf16: 0/1 selections are
    # exact in bf16; conv weights are rounded to bf16 inside the MXU under DEFAULT anyway) ----
    qw = jnp.arange(W)[:, None]
    pw = jnp.arange(Wp)[None, :]
    SW = jnp.concatenate([(qw == jnp.clip(2 * pw + d, 0, W - 1)) for d in (-1, 0, 1)],
                         axis=1).astype(bf16)                        # (W, 3*Wp)
    qh = jnp.arange(H)[:, None]
    ph = jnp.arange(Hp)[None, :]
    SH = jnp.concatenate([(qh == jnp.clip(2 * ph + d, 0, H - 1)) for d in (-1, 0, 1)],
                         axis=1).astype(bf16)                        # (H, 3*Hp)
    UH = (jnp.arange(Hp)[:, None] == (jnp.arange(H)[None, :] // 2)).astype(bf16)   # (Hp, H)
    UW = (jnp.arange(Wp)[:, None] == (jnp.arange(W)[None, :] // 2)).astype(bf16)   # (Wp, W)
    # per-W-tap banded conv weights, all 3 output channels fused along the lane (N) axis:
    #   BHV[v, i*Hp + p, o*Hp + r] = sum_u weight[o, i, u, v] * [p == r + u - 2]
    pr = jnp.arange(Hp)
    band = jnp.stack([(pr[:, None] == (pr[None, :] + u - 2)).astype(f32)
                      for u in range(KH)])                           # (KH, Hp, Hp)
    BHV = jnp.einsum('oiuv,upr->vipor', jnp.asarray(weight, f32), band)
    BHV = BHV.reshape(KW, G * Hp, G * Hp).astype(bf16)               # (KW, 3*Hp, 3*Hp)
    BROW = jnp.repeat(jnp.asarray(bias, f32), Hp)[None, :]           # (1, 3*Hp) bias row

    def _const_spec(shape):
        idx = lambda b, n=len(shape): (0,) * n
        if single_buffer_consts and hasattr(pl, "Buffered"):
            try:   # grid-invariant operand: single-buffer it (halves its VMEM footprint)
                return pl.BlockSpec(shape, idx, pipeline_mode=pl.Buffered(1))
            except TypeError:
                pass
        return pl.BlockSpec(shape, idx)

    kernel = _make_mm_kernel(C, H, W)
    mm = pl.pallas_call(
        kernel,
        out_shape=jax.ShapeDtypeStruct((B, G, T, H, W), f32),
        grid=(B,),
        in_specs=[
            pl.BlockSpec((None, C, H, W), lambda b: (b, 0, 0, 0)),
            _const_spec((W, 3 * Wp)),
            _const_spec((H, 3 * Hp)),
            _const_spec((KW, G * Hp, G * Hp)),
            _const_spec((Hp, H)),
            _const_spec((Wp, W)),
            _const_spec((1, G * Hp)),
        ],
        out_specs=pl.BlockSpec((None, G, T, H, W), lambda b: (b, 0, 0, 0, 0)),
        compiler_params=pltpu.CompilerParams(
            dimension_semantics=("parallel",),
            vmem_limit_bytes=_vmem_limit_bytes()),
    )(x, SW, SH, BHV, UH, UW, BROW)
    return mm, x_rgb


# ----------------------------- pure-JAX reference (sanity check) -----------------------------

def mm_reference(x, weight, bias):
    B, C, H, W = x.shape
    pooled = lax.reduce_window(x, -jnp.inf, lax.max,
                               (1, 1, 3, 3), (1, 1, 2, 2),
                               ((0, 0), (0, 0), (1, 1), (1, 1)))
    Hp, Wp = pooled.shape[-2], pooled.shape[-1]
    xr = pooled.reshape(B, 3, 5, Hp, Wp)
    xt = xr.transpose(0, 2, 1, 3, 4).reshape(B * 5, 3, Hp, Wp)
    y = lax.conv_general_dilated(xt, weight, (1, 1), ((2, 2), (2, 2)),
                                 dimension_numbers=("NCHW", "OIHW", "NCHW"),
                                 precision=lax.Precision.HIGHEST)
    y = y + bias.reshape(1, 3, 1, 1)
    y = jnp.repeat(jnp.repeat(y, 2, axis=-2), 2, axis=-1)             # nearest x2
    y = y.reshape(B, 5, 3, H, W).transpose(0, 2, 1, 3, 4)
    return y, x[:, -3:, :, :]


if __name__ == "__main__":
    B, H, W = 2, 16, 16
    key = jax.random.PRNGKey(0)
    kx, kb = jax.random.split(key)
    x = jax.random.normal(kx, (B, 15, H, W), dtype=jnp.float32)

    # deterministic parameters (as in __init__): LoG weights, default-uniform-style bias
    log_filter = create_log(sigma=1.1, size=5).astype(np.float32)                 # (5, 5)
    weight = np.tile(log_filter[None, None], (3, 3, 1, 1)).astype(np.float32)     # (3, 3, 5, 5)
    bound = 1.0 / math.sqrt(3 * 1 * 5 * 5)
    bias = jax.random.uniform(kb, (3,), jnp.float32, -bound, bound)
    weight_j = jnp.asarray(weight)

    fwd = jax.jit(lambda a, w, b: mm_forward(a, w, b, single_buffer_consts=True))
    try:
        mm, x_rgb = fwd(x, weight_j, bias)
        jax.block_until_ready((mm, x_rgb))
    except Exception:
        # pl.Buffered(1) single-buffering unsupported on this JAX/libtpu: retry double-buffered.
        fwd = jax.jit(lambda a, w, b: mm_forward(a, w, b, single_buffer_consts=False))
        mm, x_rgb = fwd(x, weight_j, bias)
        jax.block_until_ready((mm, x_rgb))

    mm_ref, rgb_ref = mm_reference(x, weight_j, bias)
    assert mm.shape == (B, 3, 5, H, W) and x_rgb.shape == (B, 3, H, W)
    # tolerance reflects single-pass bf16 MXU operands (pool / conv / upsample matmuls)
    np.testing.assert_allclose(np.asarray(mm), np.asarray(mm_ref), rtol=2e-2, atol=3e-2)
    np.testing.assert_allclose(np.asarray(x_rgb), np.asarray(rgb_ref))
    print("KERNEL_OK")
</pallas_src>

<mosaic_0001>
module attributes {stable_mosaic.version = 11 : i64} {
  func.func @kernel(%arg0: i32, %arg1: memref<1x15x16x16xf32, #tpu.memory_space<vmem>>, %arg2: memref<16x24xbf16, #tpu.memory_space<vmem>>, %arg3: memref<16x24xbf16, #tpu.memory_space<vmem>>, %arg4: memref<5x24x24xbf16, #tpu.memory_space<vmem>>, %arg5: memref<8x16xbf16, #tpu.memory_space<vmem>>, %arg6: memref<8x16xbf16, #tpu.memory_space<vmem>>, %arg7: memref<1x24xf32, #tpu.memory_space<vmem>>, %arg8: memref<1x3x5x16x16xf32, #tpu.memory_space<vmem>>) attributes {dimension_semantics = [#tpu.dimension_semantics<parallel>], iteration_bounds = array<i64: 2>, scalar_prefetch = 0 : i64, scratch_operands = 0 : i64, tpu.core_type = #tpu.core_type<tc>, window_params = [{transform_indices = @transform_0, window_bounds = array<i64: 1, 15, 16, 16>}, {pipeline_mode = #tpu.pipeline_mode<synchronous>, transform_indices = @transform_1, window_bounds = array<i64: 16, 24>}, {pipeline_mode = #tpu.pipeline_mode<synchronous>, transform_indices = @transform_2, window_bounds = array<i64: 16, 24>}, {pipeline_mode = #tpu.pipeline_mode<synchronous>, transform_indices = @transform_3, window_bounds = array<i64: 5, 24, 24>}, {pipeline_mode = #tpu.pipeline_mode<synchronous>, transform_indices = @transform_4, window_bounds = array<i64: 8, 16>}, {pipeline_mode = #tpu.pipeline_mode<synchronous>, transform_indices = @transform_5, window_bounds = array<i64: 8, 16>}, {pipeline_mode = #tpu.pipeline_mode<synchronous>, transform_indices = @transform_6, window_bounds = array<i64: 1, 24>}, {transform_indices = @transform_7, window_bounds = array<i64: 1, 3, 5, 16, 16>}]} {
    %c0 = arith.constant 0 : index
    %c0_0 = arith.constant 0 : index
    %c0_1 = arith.constant 0 : index
    %c0_2 = arith.constant 0 : index
    %0 = vector.load %arg1[%c0, %c0_0, %c0_1, %c0_2] : memref<1x15x16x16xf32, #tpu.memory_space<vmem>>, vector<1x15x16x16xf32>
    %1 = vector.shape_cast %0 : vector<1x15x16x16xf32> to vector<15x16x16xf32>
    %2 = vector.shape_cast %1 : vector<15x16x16xf32> to vector<240x16xf32>
    %3 = arith.truncf %2 : vector<240x16xf32> to vector<240x16xbf16>
    %c0_3 = arith.constant 0 : index
    %c0_4 = arith.constant 0 : index
    %4 = vector.load %arg2[%c0_3, %c0_4] : memref<16x24xbf16, #tpu.memory_space<vmem>>, vector<16x24xbf16>
    %cst = arith.constant dense<0.000000e+00> : vector<240x24xf32>
    %5 = tpu.matmul %3, %4, %cst {dimension_numbers = #tpu.dot_dimension_numbers<[1], [0], [0], [1], [0, 0, 1, 1], [], []>} : vector<240x16xbf16>, vector<16x24xbf16>, vector<240x24xf32> -> vector<240x24xf32>
    %6 = vector.extract_strided_slice %5 {offsets = [0, 0], sizes = [240, 8], strides = [1, 1]} : vector<240x24xf32> to vector<240x8xf32>
    %7 = vector.extract_strided_slice %5 {offsets = [0, 8], sizes = [240, 8], strides = [1, 1]} : vector<240x24xf32> to vector<240x8xf32>
    %8 = arith.maximumf %6, %7 : vector<240x8xf32>
    %9 = vector.extract_strided_slice %5 {offsets = [0, 16], sizes = [240, 8], strides = [1, 1]} : vector<240x24xf32> to vector<240x8xf32>
    %10 = arith.maximumf %8, %9 : vector<240x8xf32>
    %11 = vector.shape_cast %10 : vector<240x8xf32> to vector<15x16x8xf32>
    %12 = tpu.transpose %11, [0, 2, 1] : vector<15x16x8xf32> -> vector<15x8x16xf32>
    %13 = vector.shape_cast %12 : vector<15x8x16xf32> to vector<120x16xf32>
    %14 = arith.truncf %13 : vector<120x16xf32> to vector<120x16xbf16>
    %c0_5 = arith.constant 0 : index
    %c0_6 = arith.constant 0 : index
    %15 = vector.load %arg3[%c0_5, %c0_6] : memref<16x24xbf16, #tpu.memory_space<vmem>>, vector<16x24xbf16>
    %cst_7 = arith.constant dense<0.000000e+00> : vector<120x24xf32>
    %16 = tpu.matmul %14, %15, %cst_7 {dimension_numbers = #tpu.dot_dimension_numbers<[1], [0], [0], [1], [0, 0, 1, 1], [], []>} : vector<120x16xbf16>, vector<16x24xbf16>, vector<120x24xf32> -> vector<120x24xf32>
    %17 = vector.extract_strided_slice %16 {offsets = [0, 0], sizes = [120, 8], strides = [1, 1]} : vector<120x24xf32> to vector<120x8xf32>
    %18 = vector.extract_strided_slice %16 {offsets = [0, 8], sizes = [120, 8], strides = [1, 1]} : vector<120x24xf32> to vector<120x8xf32>
    %19 = arith.maximumf %17, %18 : vector<120x8xf32>
    %20 = vector.extract_strided_slice %16 {offsets = [0, 16], sizes = [120, 8], strides = [1, 1]} : vector<120x24xf32> to vector<120x8xf32>
    %21 = arith.maximumf %19, %20 : vector<120x8xf32>
    %22 = vector.shape_cast %21 : vector<120x8xf32> to vector<15x8x8xf32>
    %23 = arith.truncf %22 : vector<15x8x8xf32> to vector<15x8x8xbf16>
    %24 = vector.extract_strided_slice %23 {offsets = [0, 0, 0], sizes = [5, 8, 8], strides = [1, 1, 1]} : vector<15x8x8xbf16> to vector<5x8x8xbf16>
    %25 = vector.extract_strided_slice %23 {offsets = [5, 0, 0], sizes = [5, 8, 8], strides = [1, 1, 1]} : vector<15x8x8xbf16> to vector<5x8x8xbf16>
    %26 = vector.extract_strided_slice %23 {offsets = [10, 0, 0], sizes = [5, 8, 8], strides = [1, 1, 1]} : vector<15x8x8xbf16> to vector<5x8x8xbf16>
    %27 = tpu.concatenate %24, %25, %26 in 2 : vector<5x8x8xbf16>, vector<5x8x8xbf16>, vector<5x8x8xbf16> -> vector<5x8x24xbf16>
    %cst_8 = arith.constant 0.000000e+00 : bf16
    %28 = vector.broadcast %cst_8 : bf16 to vector<5x2x24xbf16>
    %29 = tpu.concatenate %28, %27, %28 in 1 : vector<5x2x24xbf16>, vector<5x8x24xbf16>, vector<5x2x24xbf16> -> vector<5x12x24xbf16>
    %c0_9 = arith.constant 0 : index
    %c0_10 = arith.constant 0 : index
    %30 = vector.load %arg7[%c0_9, %c0_10] : memref<1x24xf32, #tpu.memory_space<vmem>>, vector<1x24xf32>
    %31 = vector.shape_cast %30 : vector<1x24xf32> to vector<1x24xf32>
    %32 = vector.broadcast %31 : vector<1x24xf32> to vector<40x24xf32>
    %33 = vector.extract_strided_slice %29 {offsets = [0, 0, 0], sizes = [5, 8, 24], strides = [1, 1, 1]} : vector<5x12x24xbf16> to vector<5x8x24xbf16>
    %34 = vector.shape_cast %33 : vector<5x8x24xbf16> to vector<40x24xbf16>
    %c0_11 = arith.constant 0 : index
    %c0_12 = arith.constant 0 : index
    %c0_13 = arith.constant 0 : index
    %35 = vector.load %arg4[%c0_11, %c0_12, %c0_13] : memref<5x24x24xbf16, #tpu.memory_space<vmem>>, vector<1x24x24xbf16>
    %36 = vector.shape_cast %35 : vector<1x24x24xbf16> to vector<24x24xbf16>
    %cst_14 = arith.constant dense<0.000000e+00> : vector<40x24xf32>
    %37 = tpu.matmul %34, %36, %cst_14 {dimension_numbers = #tpu.dot_dimension_numbers<[1], [0], [0], [1], [0, 0, 1, 1], [], []>} : vector<40x24xbf16>, vector<24x24xbf16>, vector<40x24xf32> -> vector<40x24xf32>
    %38 = arith.addf %32, %37 : vector<40x24xf32>
    %39 = vector.extract_strided_slice %29 {offsets = [0, 1, 0], sizes = [5, 8, 24], strides = [1, 1, 1]} : vector<5x12x24xbf16> to vector<5x8x24xbf16>
    %40 = vector.shape_cast %39 : vector<5x8x24xbf16> to vector<40x24xbf16>
    %c1 = arith.constant 1 : index
    %c0_15 = arith.constant 0 : index
    %c0_16 = arith.constant 0 : index
    %41 = vector.load %arg4[%c1, %c0_15, %c0_16] : memref<5x24x24xbf16, #tpu.memory_space<vmem>>, vector<1x24x24xbf16>
    %42 = vector.shape_cast %41 : vector<1x24x24xbf16> to vector<24x24xbf16>
    %cst_17 = arith.constant dense<0.000000e+00> : vector<40x24xf32>
    %43 = tpu.matmul %40, %42, %cst_17 {dimension_numbers = #tpu.dot_dimension_numbers<[1], [0], [0], [1], [0, 0, 1, 1], [], []>} : vector<40x24xbf16>, vector<24x24xbf16>, vector<40x24xf32> -> vector<40x24xf32>
    %44 = arith.addf %38, %43 : vector<40x24xf32>
    %45 = vector.extract_strided_slice %29 {offsets = [0, 2, 0], sizes = [5, 8, 24], strides = [1, 1, 1]} : vector<5x12x24xbf16> to vector<5x8x24xbf16>
    %46 = vector.shape_cast %45 : vector<5x8x24xbf16> to vector<40x24xbf16>
    %c2 = arith.constant 2 : index
    %c0_18 = arith.constant 0 : index
    %c0_19 = arith.constant 0 : index
    %47 = vector.load %arg4[%c2, %c0_18, %c0_19] : memref<5x24x24xbf16, #tpu.memory_space<vmem>>, vector<1x24x24xbf16>
    %48 = vector.shape_cast %47 : vector<1x24x24xbf16> to vector<24x24xbf16>
    %cst_20 = arith.constant dense<0.000000e+00> : vector<40x24xf32>
    %49 = tpu.matmul %46, %48, %cst_20 {dimension_numbers = #tpu.dot_dimension_numbers<[1], [0], [0], [1], [0, 0, 1, 1], [], []>} : vector<40x24xbf16>, vector<24x24xbf16>, vector<40x24xf32> -> vector<40x24xf32>
    %50 = arith.addf %44, %49 : vector<40x24xf32>
    %51 = vector.extract_strided_slice %29 {offsets = [0, 3, 0], sizes = [5, 8, 24], strides = [1, 1, 1]} : vector<5x12x24xbf16> to vector<5x8x24xbf16>
    %52 = vector.shape_cast %51 : vector<5x8x24xbf16> to vector<40x24xbf16>
    %c3 = arith.constant 3 : index
    %c0_21 = arith.constant 0 : index
    %c0_22 = arith.constant 0 : index
    %53 = vector.load %arg4[%c3, %c0_21, %c0_22] : memref<5x24x24xbf16, #tpu.memory_space<vmem>>, vector<1x24x24xbf16>
    %54 = vector.shape_cast %53 : vector<1x24x24xbf16> to vector<24x24xbf16>
    %cst_23 = arith.constant dense<0.000000e+00> : vector<40x24xf32>
    %55 = tpu.matmul %52, %54, %cst_23 {dimension_numbers = #tpu.dot_dimension_numbers<[1], [0], [0], [1], [0, 0, 1, 1], [], []>} : vector<40x24xbf16>, vector<24x24xbf16>, vector<40x24xf32> -> vector<40x24xf32>
    %56 = arith.addf %50, %55 : vector<40x24xf32>
    %57 = vector.extract_strided_slice %29 {offsets = [0, 4, 0], sizes = [5, 8, 24], strides = [1, 1, 1]} : vector<5x12x24xbf16> to vector<5x8x24xbf16>
    %58 = vector.shape_cast %57 : vector<5x8x24xbf16> to vector<40x24xbf16>
    %c4 = arith.constant 4 : index
    %c0_24 = arith.constant 0 : index
    %c0_25 = arith.constant 0 : index
    %59 = vector.load %arg4[%c4, %c0_24, %c0_25] : memref<5x24x24xbf16, #tpu.memory_space<vmem>>, vector<1x24x24xbf16>
    %60 = vector.shape_cast %59 : vector<1x24x24xbf16> to vector<24x24xbf16>
    %cst_26 = arith.constant dense<0.000000e+00> : vector<40x24xf32>
    %61 = tpu.matmul %58, %60, %cst_26 {dimension_numbers = #tpu.dot_dimension_numbers<[1], [0], [0], [1], [0, 0, 1, 1], [], []>} : vector<40x24xbf16>, vector<24x24xbf16>, vector<40x24xf32> -> vector<40x24xf32>
    %62 = arith.addf %56, %61 : vector<40x24xf32>
    %63 = vector.extract_strided_slice %62 {offsets = [0, 0], sizes = [40, 8], strides = [1, 1]} : vector<40x24xf32> to vector<40x8xf32>
    %64 = vector.extract_strided_slice %62 {offsets = [0, 8], sizes = [40, 8], strides = [1, 1]} : vector<40x24xf32> to vector<40x8xf32>
    %65 = vector.extract_strided_slice %62 {offsets = [0, 16], sizes = [40, 8], strides = [1, 1]} : vector<40x24xf32> to vector<40x8xf32>
    %66 = vector.shape_cast %63 : vector<40x8xf32> to vector<1x40x8xf32>
    %67 = vector.shape_cast %64 : vector<40x8xf32> to vector<1x40x8xf32>
    %68 = vector.shape_cast %65 : vector<40x8xf32> to vector<1x40x8xf32>
    %69 = tpu.concatenate %66, %67, %68 in 0 : vector<1x40x8xf32>, vector<1x40x8xf32>, vector<1x40x8xf32> -> vector<3x40x8xf32>
    %70 = vector.shape_cast %69 : vector<3x40x8xf32> to vector<120x8xf32>
    %71 = arith.truncf %70 : vector<120x8xf32> to vector<120x8xbf16>
    %c0_27 = arith.constant 0 : index
    %c0_28 = arith.constant 0 : index
    %72 = vector.load %arg5[%c0_27, %c0_28] : memref<8x16xbf16, #tpu.memory_space<vmem>>, vector<8x16xbf16>
    %cst_29 = arith.constant dense<0.000000e+00> : vector<120x16xf32>
    %73 = tpu.matmul %71, %72, %cst_29 {dimension_numbers = #tpu.dot_dimension_numbers<[1], [0], [0], [1], [0, 0, 1, 1], [], []>} : vector<120x8xbf16>, vector<8x16xbf16>, vector<120x16xf32> -> vector<120x16xf32>
    %74 = vector.shape_cast %73 : vector<120x16xf32> to vector<3x5x8x16xf32>
    %75 = tpu.transpose %74, [0, 1, 3, 2] : vector<3x5x8x16xf32> -> vector<3x5x16x8xf32>
    %76 = vector.shape_cast %75 : vector<3x5x16x8xf32> to vector<240x8xf32>
    %77 = arith.truncf %76 : vector<240x8xf32> to vector<240x8xbf16>
    %c0_30 = arith.constant 0 : index
    %c0_31 = arith.constant 0 : index
    %78 = vector.load %arg6[%c0_30, %c0_31] : memref<8x16xbf16, #tpu.memory_space<vmem>>, vector<8x16xbf16>
    %cst_32 = arith.constant dense<0.000000e+00> : vector<240x16xf32>
    %79 = tpu.matmul %77, %78, %cst_32 {dimension_numbers = #tpu.dot_dimension_numbers<[1], [0], [0], [1], [0, 0, 1, 1], [], []>} : vector<240x8xbf16>, vector<8x16xbf16>, vector<240x16xf32> -> vector<240x16xf32>
    %80 = vector.shape_cast %79 : vector<240x16xf32> to vector<3x5x16x16xf32>
    %c0_33 = arith.constant 0 : index
    %c0_34 = arith.constant 0 : index
    %c0_35 = arith.constant 0 : index
    %c0_36 = arith.constant 0 : index
    %c0_37 = arith.constant 0 : index
    %81 = vector.load %arg8[%c0_33, %c0_34, %c0_35, %c0_36, %c0_37] : memref<1x3x5x16x16xf32, #tpu.memory_space<vmem>>, vector<1x3x5x16x16xf32>
    %82 = vector.shape_cast %81 : vector<1x3x5x16x16xf32> to vector<3x5x16x16xf32>
    %83 = vector.shape_cast %80 : vector<3x5x16x16xf32> to vector<1x3x5x16x16xf32>
    tpu.vector_store %arg8[%c0_33, %c0_34, %c0_35, %c0_36, %c0_37], %83 {strides = array<i32>} : memref<1x3x5x16x16xf32, #tpu.memory_space<vmem>>, vector<1x3x5x16x16xf32>,
    return
  }
  func.func @transform_0(%arg0: i32) -> (i32, i32, i32, i32) {
    %c0_i32 = arith.constant 0 : i32
    %c0_i32_0 = arith.constant 0 : i32
    %c0_i32_1 = arith.constant 0 : i32
    %c0_i32_2 = arith.constant 0 : i32
    return %arg0, %c0_i32, %c0_i32_0, %c0_i32_1 : i32, i32, i32, i32
  }
  func.func @transform_1(%arg0: i32) -> (i32, i32) {
    %c0_i32 = arith.constant 0 : i32
    %c0_i32_0 = arith.constant 0 : i32
    %c0_i32_1 = arith.constant 0 : i32
    return %c0_i32, %c0_i32_0 : i32, i32
  }
  func.func @transform_2(%arg0: i32) -> (i32, i32) {
    %c0_i32 = arith.constant 0 : i32
    %c0_i32_0 = arith.constant 0 : i32
    %c0_i32_1 = arith.constant 0 : i32
    return %c0_i32, %c0_i32_0 : i32, i32
  }
  func.func @transform_3(%arg0: i32) -> (i32, i32, i32) {
    %c0_i32 = arith.constant 0 : i32
    %c0_i32_0 = arith.constant 0 : i32
    %c0_i32_1 = arith.constant 0 : i32
    %c0_i32_2 = arith.constant 0 : i32
    return %c0_i32, %c0_i32_0, %c0_i32_1 : i32, i32, i32
  }
  func.func @transform_4(%arg0: i32) -> (i32, i32) {
    %c0_i32 = arith.constant 0 : i32
    %c0_i32_0 = arith.constant 0 : i32
    %c0_i32_1 = arith.constant 0 : i32
    return %c0_i32, %c0_i32_0 : i32, i32
  }
  func.func @transform_5(%arg0: i32) -> (i32, i32) {
    %c0_i32 = arith.constant 0 : i32
    %c0_i32_0 = arith.constant 0 : i32
    %c0_i32_1 = arith.constant 0 : i32
    return %c0_i32, %c0_i32_0 : i32, i32
  }
  func.func @transform_6(%arg0: i32) -> (i32, i32) {
    %c0_i32 = arith.constant 0 : i32
    %c0_i32_0 = arith.constant 0 : i32
    %c0_i32_1 = arith.constant 0 : i32
    return %c0_i32, %c0_i32_0 : i32, i32
  }
  func.func @transform_7(%arg0: i32) -> (i32, i32, i32, i32, i32) {
    %c0_i32 = arith.constant 0 : i32
    %c0_i32_0 = arith.constant 0 : i32
    %c0_i32_1 = arith.constant 0 : i32
    %c0_i32_2 = arith.constant 0 : i32
    %c0_i32_3 = arith.constant 0 : i32
    return %arg0, %c0_i32, %c0_i32_0, %c0_i32_1, %c0_i32_2 : i32, i32, i32, i32, i32
  }
}

module attributes {stable_mosaic.version = 11 : i64} {
  func.func @kernel(%arg0: i32, %arg1: memref<1x15x16x16xf32, #tpu.memory_space<vmem>>, %arg2: memref<16x24xbf16, #tpu.memory_space<vmem>>, %arg3: memref<16x24xbf16, #tpu.memory_space<vmem>>, %arg4: memref<5x24x24xbf16, #tpu.memory_space<vmem>>, %arg5: memref<8x16xbf16, #tpu.memory_space<vmem>>, %arg6: memref<8x16xbf16, #tpu.memory_space<vmem>>, %arg7: memref<1x24xf32, #tpu.memory_space<vmem>>, %arg8: memref<1x3x5x16x16xf32, #tpu.memory_space<vmem>>) attributes {dimension_semantics = [#tpu.dimension_semantics<parallel>], iteration_bounds = array<i64: 2>, scalar_prefetch = 0 : i64, scratch_operands = 0 : i64, tpu.core_type = #tpu.core_type<tc>, window_params = [{transform_indices = @transform_0, window_bounds = array<i64: 1, 15, 16, 16>}, {pipeline_mode = #tpu.pipeline_mode<synchronous>, transform_indices = @transform_1, window_bounds = array<i64: 16, 24>}, {pipeline_mode = #tpu.pipeline_mode<synchronous>, transform_indices = @transform_2, window_bounds = array<i64: 16, 24>}, {pipeline_mode = #tpu.pipeline_mode<synchronous>, transform_indices = @transform_3, window_bounds = array<i64: 5, 24, 24>}, {pipeline_mode = #tpu.pipeline_mode<synchronous>, transform_indices = @transform_4, window_bounds = array<i64: 8, 16>}, {pipeline_mode = #tpu.pipeline_mode<synchronous>, transform_indices = @transform_5, window_bounds = array<i64: 8, 16>}, {pipeline_mode = #tpu.pipeline_mode<synchronous>, transform_indices = @transform_6, window_bounds = array<i64: 1, 24>}, {transform_indices = @transform_7, window_bounds = array<i64: 1, 3, 5, 16, 16>}]} {
    %c0 = arith.constant 0 : index
    %c0_0 = arith.constant 0 : index
    %c0_1 = arith.constant 0 : index
    %c0_2 = arith.constant 0 : index
    %0 = vector.load %arg1[%c0, %c0_0, %c0_1, %c0_2] : memref<1x15x16x16xf32, #tpu.memory_space<vmem>>, vector<1x15x16x16xf32>
    %1 = vector.shape_cast %0 : vector<1x15x16x16xf32> to vector<15x16x16xf32>
    %2 = vector.shape_cast %1 : vector<15x16x16xf32> to vector<240x16xf32>
    %3 = arith.truncf %2 : vector<240x16xf32> to vector<240x16xbf16>
    %c0_3 = arith.constant 0 : index
    %c0_4 = arith.constant 0 : index
    %4 = vector.load %arg2[%c0_3, %c0_4] : memref<16x24xbf16, #tpu.memory_space<vmem>>, vector<16x24xbf16>
    %cst = arith.constant dense<0.000000e+00> : vector<240x24xf32>
    %5 = tpu.matmul %3, %4, %cst {dimension_numbers = #tpu.dot_dimension_numbers<[1], [0], [0], [1], [0, 0, 1, 1], [], []>} : vector<240x16xbf16>, vector<16x24xbf16>, vector<240x24xf32> -> vector<240x24xf32>
    %6 = vector.extract_strided_slice %5 {offsets = [0, 0], sizes = [240, 8], strides = [1, 1]} : vector<240x24xf32> to vector<240x8xf32>
    %7 = vector.extract_strided_slice %5 {offsets = [0, 8], sizes = [240, 8], strides = [1, 1]} : vector<240x24xf32> to vector<240x8xf32>
    %8 = arith.maximumf %6, %7 : vector<240x8xf32>
    %9 = vector.extract_strided_slice %5 {offsets = [0, 16], sizes = [240, 8], strides = [1, 1]} : vector<240x24xf32> to vector<240x8xf32>
    %10 = arith.maximumf %8, %9 : vector<240x8xf32>
    %11 = vector.shape_cast %10 : vector<240x8xf32> to vector<15x16x8xf32>
    %12 = tpu.transpose %11, [0, 2, 1] : vector<15x16x8xf32> -> vector<15x8x16xf32>
    %13 = vector.shape_cast %12 : vector<15x8x16xf32> to vector<120x16xf32>
    %14 = arith.truncf %13 : vector<120x16xf32> to vector<120x16xbf16>
    %c0_5 = arith.constant 0 : index
    %c0_6 = arith.constant 0 : index
    %15 = vector.load %arg3[%c0_5, %c0_6] : memref<16x24xbf16, #tpu.memory_space<vmem>>, vector<16x24xbf16>
    %cst_7 = arith.constant dense<0.000000e+00> : vector<120x24xf32>
    %16 = tpu.matmul %14, %15, %cst_7 {dimension_numbers = #tpu.dot_dimension_numbers<[1], [0], [0], [1], [0, 0, 1, 1], [], []>} : vector<120x16xbf16>, vector<16x24xbf16>, vector<120x24xf32> -> vector<120x24xf32>
    %17 = vector.extract_strided_slice %16 {offsets = [0, 0], sizes = [120, 8], strides = [1, 1]} : vector<120x24xf32> to vector<120x8xf32>
    %18 = vector.extract_strided_slice %16 {offsets = [0, 8], sizes = [120, 8], strides = [1, 1]} : vector<120x24xf32> to vector<120x8xf32>
    %19 = arith.maximumf %17, %18 : vector<120x8xf32>
    %20 = vector.extract_strided_slice %16 {offsets = [0, 16], sizes = [120, 8], strides = [1, 1]} : vector<120x24xf32> to vector<120x8xf32>
    %21 = arith.maximumf %19, %20 : vector<120x8xf32>
    %22 = vector.shape_cast %21 : vector<120x8xf32> to vector<15x8x8xf32>
    %23 = arith.truncf %22 : vector<15x8x8xf32> to vector<15x8x8xbf16>
    %24 = vector.extract_strided_slice %23 {offsets = [0, 0, 0], sizes = [5, 8, 8], strides = [1, 1, 1]} : vector<15x8x8xbf16> to vector<5x8x8xbf16>
    %25 = vector.extract_strided_slice %23 {offsets = [5, 0, 0], sizes = [5, 8, 8], strides = [1, 1, 1]} : vector<15x8x8xbf16> to vector<5x8x8xbf16>
    %26 = vector.extract_strided_slice %23 {offsets = [10, 0, 0], sizes = [5, 8, 8], strides = [1, 1, 1]} : vector<15x8x8xbf16> to vector<5x8x8xbf16>
    %27 = tpu.concatenate %24, %25, %26 in 2 : vector<5x8x8xbf16>, vector<5x8x8xbf16>, vector<5x8x8xbf16> -> vector<5x8x24xbf16>
    %cst_8 = arith.constant 0.000000e+00 : bf16
    %28 = vector.broadcast %cst_8 : bf16 to vector<5x2x24xbf16>
    %29 = tpu.concatenate %28, %27, %28 in 1 : vector<5x2x24xbf16>, vector<5x8x24xbf16>, vector<5x2x24xbf16> -> vector<5x12x24xbf16>
    %c0_9 = arith.constant 0 : index
    %c0_10 = arith.constant 0 : index
    %30 = vector.load %arg7[%c0_9, %c0_10] : memref<1x24xf32, #tpu.memory_space<vmem>>, vector<1x24xf32>
    %31 = vector.shape_cast %30 : vector<1x24xf32> to vector<1x24xf32>
    %32 = vector.broadcast %31 : vector<1x24xf32> to vector<40x24xf32>
    %33 = vector.extract_strided_slice %29 {offsets = [0, 0, 0], sizes = [5, 8, 24], strides = [1, 1, 1]} : vector<5x12x24xbf16> to vector<5x8x24xbf16>
    %34 = vector.shape_cast %33 : vector<5x8x24xbf16> to vector<40x24xbf16>
    %c0_11 = arith.constant 0 : index
    %c0_12 = arith.constant 0 : index
    %c0_13 = arith.constant 0 : index
    %35 = vector.load %arg4[%c0_11, %c0_12, %c0_13] : memref<5x24x24xbf16, #tpu.memory_space<vmem>>, vector<1x24x24xbf16>
    %36 = vector.shape_cast %35 : vector<1x24x24xbf16> to vector<24x24xbf16>
    %cst_14 = arith.constant dense<0.000000e+00> : vector<40x24xf32>
    %37 = tpu.matmul %34, %36, %cst_14 {dimension_numbers = #tpu.dot_dimension_numbers<[1], [0], [0], [1], [0, 0, 1, 1], [], []>} : vector<40x24xbf16>, vector<24x24xbf16>, vector<40x24xf32> -> vector<40x24xf32>
    %38 = arith.addf %32, %37 : vector<40x24xf32>
    %39 = vector.extract_strided_slice %29 {offsets = [0, 1, 0], sizes = [5, 8, 24], strides = [1, 1, 1]} : vector<5x12x24xbf16> to vector<5x8x24xbf16>
    %40 = vector.shape_cast %39 : vector<5x8x24xbf16> to vector<40x24xbf16>
    %c1 = arith.constant 1 : index
    %c0_15 = arith.constant 0 : index
    %c0_16 = arith.constant 0 : index
    %41 = vector.load %arg4[%c1, %c0_15, %c0_16] : memref<5x24x24xbf16, #tpu.memory_space<vmem>>, vector<1x24x24xbf16>
    %42 = vector.shape_cast %41 : vector<1x24x24xbf16> to vector<24x24xbf16>
    %cst_17 = arith.constant dense<0.000000e+00> : vector<40x24xf32>
    %43 = tpu.matmul %40, %42, %cst_17 {dimension_numbers = #tpu.dot_dimension_numbers<[1], [0], [0], [1], [0, 0, 1, 1], [], []>} : vector<40x24xbf16>, vector<24x24xbf16>, vector<40x24xf32> -> vector<40x24xf32>
    %44 = arith.addf %38, %43 : vector<40x24xf32>
    %45 = vector.extract_strided_slice %29 {offsets = [0, 2, 0], sizes = [5, 8, 24], strides = [1, 1, 1]} : vector<5x12x24xbf16> to vector<5x8x24xbf16>
    %46 = vector.shape_cast %45 : vector<5x8x24xbf16> to vector<40x24xbf16>
    %c2 = arith.constant 2 : index
    %c0_18 = arith.constant 0 : index
    %c0_19 = arith.constant 0 : index
    %47 = vector.load %arg4[%c2, %c0_18, %c0_19] : memref<5x24x24xbf16, #tpu.memory_space<vmem>>, vector<1x24x24xbf16>
    %48 = vector.shape_cast %47 : vector<1x24x24xbf16> to vector<24x24xbf16>
    %cst_20 = arith.constant dense<0.000000e+00> : vector<40x24xf32>
    %49 = tpu.matmul %46, %48, %cst_20 {dimension_numbers = #tpu.dot_dimension_numbers<[1], [0], [0], [1], [0, 0, 1, 1], [], []>} : vector<40x24xbf16>, vector<24x24xbf16>, vector<40x24xf32> -> vector<40x24xf32>
    %50 = arith.addf %44, %49 : vector<40x24xf32>
    %51 = vector.extract_strided_slice %29 {offsets = [0, 3, 0], sizes = [5, 8, 24], strides = [1, 1, 1]} : vector<5x12x24xbf16> to vector<5x8x24xbf16>
    %52 = vector.shape_cast %51 : vector<5x8x24xbf16> to vector<40x24xbf16>
    %c3 = arith.constant 3 : index
    %c0_21 = arith.constant 0 : index
    %c0_22 = arith.constant 0 : index
    %53 = vector.load %arg4[%c3, %c0_21, %c0_22] : memref<5x24x24xbf16, #tpu.memory_space<vmem>>, vector<1x24x24xbf16>
    %54 = vector.shape_cast %53 : vector<1x24x24xbf16> to vector<24x24xbf16>
    %cst_23 = arith.constant dense<0.000000e+00> : vector<40x24xf32>
    %55 = tpu.matmul %52, %54, %cst_23 {dimension_numbers = #tpu.dot_dimension_numbers<[1], [0], [0], [1], [0, 0, 1, 1], [], []>} : vector<40x24xbf16>, vector<24x24xbf16>, vector<40x24xf32> -> vector<40x24xf32>
    %56 = arith.addf %50, %55 : vector<40x24xf32>
    %57 = vector.extract_strided_slice %29 {offsets = [0, 4, 0], sizes = [5, 8, 24], strides = [1, 1, 1]} : vector<5x12x24xbf16> to vector<5x8x24xbf16>
    %58 = vector.shape_cast %57 : vector<5x8x24xbf16> to vector<40x24xbf16>
    %c4 = arith.constant 4 : index
    %c0_24 = arith.constant 0 : index
    %c0_25 = arith.constant 0 : index
    %59 = vector.load %arg4[%c4, %c0_24, %c0_25] : memref<5x24x24xbf16, #tpu.memory_space<vmem>>, vector<1x24x24xbf16>
    %60 = vector.shape_cast %59 : vector<1x24x24xbf16> to vector<24x24xbf16>
    %cst_26 = arith.constant dense<0.000000e+00> : vector<40x24xf32>
    %61 = tpu.matmul %58, %60, %cst_26 {dimension_numbers = #tpu.dot_dimension_numbers<[1], [0], [0], [1], [0, 0, 1, 1], [], []>} : vector<40x24xbf16>, vector<24x24xbf16>, vector<40x24xf32> -> vector<40x24xf32>
    %62 = arith.addf %56, %61 : vector<40x24xf32>
    %63 = vector.extract_strided_slice %62 {offsets = [0, 0], sizes = [40, 8], strides = [1, 1]} : vector<40x24xf32> to vector<40x8xf32>
    %64 = vector.extract_strided_slice %62 {offsets = [0, 8], sizes = [40, 8], strides = [1, 1]} : vector<40x24xf32> to vector<40x8xf32>
    %65 = vector.extract_strided_slice %62 {offsets = [0, 16], sizes = [40, 8], strides = [1, 1]} : vector<40x24xf32> to vector<40x8xf32>
    %66 = vector.shape_cast %63 : vector<40x8xf32> to vector<1x40x8xf32>
    %67 = vector.shape_cast %64 : vector<40x8xf32> to vector<1x40x8xf32>
    %68 = vector.shape_cast %65 : vector<40x8xf32> to vector<1x40x8xf32>
    %69 = tpu.concatenate %66, %67, %68 in 0 : vector<1x40x8xf32>, vector<1x40x8xf32>, vector<1x40x8xf32> -> vector<3x40x8xf32>
    %70 = vector.shape_cast %69 : vector<3x40x8xf32> to vector<120x8xf32>
    %71 = arith.truncf %70 : vector<120x8xf32> to vector<120x8xbf16>
    %c0_27 = arith.constant 0 : index
    %c0_28 = arith.constant 0 : index
    %72 = vector.load %arg5[%c0_27, %c0_28] : memref<8x16xbf16, #tpu.memory_space<vmem>>, vector<8x16xbf16>
    %cst_29 = arith.constant dense<0.000000e+00> : vector<120x16xf32>
    %73 = tpu.matmul %71, %72, %cst_29 {dimension_numbers = #tpu.dot_dimension_numbers<[1], [0], [0], [1], [0, 0, 1, 1], [], []>} : vector<120x8xbf16>, vector<8x16xbf16>, vector<120x16xf32> -> vector<120x16xf32>
    %74 = vector.shape_cast %73 : vector<120x16xf32> to vector<3x5x8x16xf32>
    %75 = tpu.transpose %74, [0, 1, 3, 2] : vector<3x5x8x16xf32> -> vector<3x5x16x8xf32>
    %76 = vector.shape_cast %75 : vector<3x5x16x8xf32> to vector<240x8xf32>
    %77 = arith.truncf %76 : vector<240x8xf32> to vector<240x8xbf16>
    %c0_30 = arith.constant 0 : index
    %c0_31 = arith.constant 0 : index
    %78 = vector.load %arg6[%c0_30, %c0_31] : memref<8x16xbf16, #tpu.memory_space<vmem>>, vector<8x16xbf16>
    %cst_32 = arith.constant dense<0.000000e+00> : vector<240x16xf32>
    %79 = tpu.matmul %77, %78, %cst_32 {dimension_numbers = #tpu.dot_dimension_numbers<[1], [0], [0], [1], [0, 0, 1, 1], [], []>} : vector<240x8xbf16>, vector<8x16xbf16>, vector<240x16xf32> -> vector<240x16xf32>
    %80 = vector.shape_cast %79 : vector<240x16xf32> to vector<3x5x16x16xf32>
    %c0_33 = arith.constant 0 : index
    %c0_34 = arith.constant 0 : index
    %c0_35 = arith.constant 0 : index
    %c0_36 = arith.constant 0 : index
    %c0_37 = arith.constant 0 : index
    %81 = vector.load %arg8[%c0_33, %c0_34, %c0_35, %c0_36, %c0_37] : memref<1x3x5x16x16xf32, #tpu.memory_space<vmem>>, vector<1x3x5x16x16xf32>
    %82 = vector.shape_cast %81 : vector<1x3x5x16x16xf32> to vector<3x5x16x16xf32>
    %83 = vector.shape_cast %80 : vector<3x5x16x16xf32> to vector<1x3x5x16x16xf32>
    tpu.vector_store %arg8[%c0_33, %c0_34, %c0_35, %c0_36, %c0_37], %83 {strides = array<i32>} : memref<1x3x5x16x16xf32, #tpu.memory_space<vmem>>, vector<1x3x5x16x16xf32>,
    return
  }
  func.func @transform_0(%arg0: i32) -> (i32, i32, i32, i32) {
    %c0_i32 = arith.constant 0 : i32
    %c0_i32_0 = arith.constant 0 : i32
    %c0_i32_1 = arith.constant 0 : i32
    %c0_i32_2 = arith.constant 0 : i32
    return %arg0, %c0_i32, %c0_i32_0, %c0_i32_1 : i32, i32, i32, i32
  }
  func.func @transform_1(%arg0: i32) -> (i32, i32) {
    %c0_i32 = arith.constant 0 : i32
    %c0_i32_0 = arith.constant 0 : i32
    %c0_i32_1 = arith.constant 0 : i32
    return %c0_i32, %c0_i32_0 : i32, i32
  }
  func.func @transform_2(%arg0: i32) -> (i32, i32) {
    %c0_i32 = arith.constant 0 : i32
    %c0_i32_0 = arith.constant 0 : i32
    %c0_i32_1 = arith.constant 0 : i32
    return %c0_i32, %c0_i32_0 : i32, i32
  }
  func.func @transform_3(%arg0: i32) -> (i32, i32, i32) {
    %c0_i32 = arith.constant 0 : i32
    %c0_i32_0 = arith.constant 0 : i32
    %c0_i32_1 = arith.constant 0 : i32
    %c0_i32_2 = arith.constant 0 : i32
    return %c0_i32, %c0_i32_0, %c0_i32_1 : i32, i32, i32
  }
  func.func @transform_4(%arg0: i32) -> (i32, i32) {
    %c0_i32 = arith.constant 0 : i32
    %c0_i32_0 = arith.constant 0 : i32
    %c0_i32_1 = arith.constant 0 : i32
    return %c0_i32, %c0_i32_0 : i32, i32
  }
  func.func @transform_5(%arg0: i32) -> (i32, i32) {
    %c0_i32 = arith.constant 0 : i32
    %c0_i32_0 = arith.constant 0 : i32
    %c0_i32_1 = arith.constant 0 : i32
    return %c0_i32, %c0_i32_0 : i32, i32
  }
  func.func @transform_6(%arg0: i32) -> (i32, i32) {
    %c0_i32 = arith.constant 0 : i32
    %c0_i32_0 = arith.constant 0 : i32
    %c0_i32_1 = arith.constant 0 : i32
    return %c0_i32, %c0_i32_0 : i32, i32
  }
  func.func @transform_7(%arg0: i32) -> (i32, i32, i32, i32, i32) {
    %c0_i32 = arith.constant 0 : i32
    %c0_i32_0 = arith.constant 0 : i32
    %c0_i32_1 = arith.constant 0 : i32
    %c0_i32_2 = arith.constant 0 : i32
    %c0_i32_3 = arith.constant 0 : i32
    return %arg0, %c0_i32, %c0_i32_0, %c0_i32_1, %c0_i32_2 : i32, i32, i32, i32, i32
  }
}

</mosaic_0001>

<llo_original>
// kernel: _lambda_.1
$region0: #{_lambda_.1}
  #allocation0 [shape = 'u32[]', space=smem, size = 0x4, offset = 0x4, fixed_abs, tag = 'smem constant byte address 0x4 - core index']
  #allocation1 [shape = 'u32[72,128]{1,0:T(1,128)}', space=vmem, size = 0x9000, scoped, tag = 'internal scratch']
  %s0 = inlined_call_operand.vmem [shape: f32[2,15,16,16], index: 0, kind: input, shape index: {}]
  %s1 = inlined_call_operand.vmem [shape: bf16[16,24], index: 1, kind: input, shape index: {}, may-alias: {1,2}]
  %s2 = inlined_call_operand.vmem [shape: bf16[16,24], index: 2, kind: input, shape index: {}, may-alias: {1,2}]
  %s3 = inlined_call_operand.vmem [shape: bf16[5,24,24], index: 3, kind: input, shape index: {}]
  %s4 = inlined_call_operand.vmem [shape: bf16[8,16], index: 4, kind: input, shape index: {}, may-alias: {4,5}]
  %s5 = inlined_call_operand.vmem [shape: bf16[8,16], index: 5, kind: input, shape index: {}, may-alias: {4,5}]
  %s6 = inlined_call_operand.vmem [shape: f32[1,24], index: 6, kind: input, shape index: {}]
  %s7 = inlined_call_operand.hbm [shape: f32[2,3,5,16,16], index: 7, kind: output, shape index: {}]
  %s8 = sld [smem:[#allocation0]]
  $region61: #{_lambda_.1} parent=0
    _
  %s10 = ssub.s32 1, %s8
  %s11 = scalar_select 0, %s10, %s8
  $region1: #{_lambda_.1} parent=0
    #allocation2 [shape = 'u8[245760]{0}', space=vmem, size = 0x3c000, scoped, tag = 'output window, operand 0']
    #allocation3 [shape = 's32[2]{0}', space=sflag, size = 0x8, scoped, tag = 'scoped memory for _lambda_.1']
    %12 = vsyncpa [#allocation3], 0
    %s13 = scalar_lea.sflag [#allocation3], 1
    %14 = vsyncpa %s13, 0
    loop: start=0, step=1, limit=4
    $region2: #{_lambda_.1} parent=1 // loop_pre_header
      _
    $region3: #{_lambda_.1} parent=1 // loop_header
      %s16 = sphi 0, %s20
      %p17 = scmp.ge.s32.totalorder %s16, 4
      %s26 = sphi 0, %s28
      %s29 = sphi 0, %s26
      %s30 = sphi 0, %s29
      %s46 = sphi 0, %s30
      %s50 = sphi 0, %s50
      %s52 = sphi 0, %s50
      %s53 = sphi 0, %s52
      %s67 = sphi 0, %s53
      %s71 = sphi 0, %s71
      %s73 = sphi 0, %s71
      %s74 = sphi 0, %s73
      %s88 = sphi 0, %s74
      %s92 = sphi 0, %s92
      %s94 = sphi 0, %s92
      %s95 = sphi 0, %s94
      %s109 = sphi 0, %s95
      %s113 = sphi 0, %s113
      %s115 = sphi 0, %s113
      %s116 = sphi 0, %s115
      %s130 = sphi 0, %s116
      %s134 = sphi 0, %s134
      %s136 = sphi 0, %s134
      %s137 = sphi 0, %s136
      %s151 = sphi 0, %s137
      %s155 = sphi 0, %s155
      %s157 = sphi 0, %s155
      %s158 = sphi 0, %s157
      %s172 = sphi 0, %s158
      %s178 = sphi 0, %s180
      %s181 = sphi 0, %s178
      %s182 = sphi 0, %s181
      %s198 = sphi 0, %s182
    $region4: #{_lambda_.1} parent=1 // loop_header_branch
      %19 = sbr.rel (%p17) target = $region8
    $region5: #{_lambda_.1} parent=1 // loop_body
      %s21 = ssub.s32 %s16, 1
      %s22 = ssub.s32 %s16, 2
      %s23 = sadd.s32 %s16, 1
      %s24 = ssub.s32 %s16, %s23
      %p25 = scmp.eq.s32.totalorder %s24, 0
      %s27 = sadd.s32 %s26, 1
      %s28 = scalar_select %p25, %s26, %s27
      %p31 = pneg %p25
      %p32 = scmp.eq.s32.totalorder %s16, 1
      %p33 = por %p31, %p32
      %p34 = scmp.ne.s32.totalorder %s26, %s29
      %p35 = scmp.eq.s32.totalorder %s16, 0
      %p36 = por %p34, %p35
      %p37 = scmp.ne.s32.totalorder %s26, %s29
      %p38 = scmp.eq.s32.totalorder %s21, 1
      %p39 = por %p37, %p38
      %p40 = scmp.ne.s32.totalorder %s29, %s30
      %p41 = scmp.eq.s32.totalorder %s21, 0
      %p42 = por %p40, %p41
      %p43 = scmp.ne.s32.totalorder %s29, %s30
      %p44 = scmp.eq.s32.totalorder %s22, 1
      %p45 = por %p43, %p44
      %p47 = scmp.ne.s32.totalorder %s30, %s46
      %p48 = scmp.eq.s32.totalorder %s22, 0
      %p49 = por %p47, %p48
      %s51 = sadd.s32 %s50, 1
      %p54 = scmp.eq.s32.totalorder %s16, 1
      %p55 = scmp.ne.s32.totalorder %s50, %s52
      %p56 = scmp.eq.s32.totalorder %s16, 0
      %p57 = por %p55, %p56
      %p58 = scmp.ne.s32.totalorder %s50, %s52
      %p59 = scmp.eq.s32.totalorder %s21, 1
      %p60 = por %p58, %p59
      %p61 = scmp.ne.s32.totalorder %s52, %s53
      %p62 = scmp.eq.s32.totalorder %s21, 0
      %p63 = por %p61, %p62
      %p64 = scmp.ne.s32.totalorder %s52, %s53
      %p65 = scmp.eq.s32.totalorder %s22, 1
      %p66 = por %p64, %p65
      %p68 = scmp.ne.s32.totalorder %s53, %s67
      %p69 = scmp.eq.s32.totalorder %s22, 0
      %p70 = por %p68, %p69
      %s72 = sadd.s32 %s71, 1
      %p75 = scmp.eq.s32.totalorder %s16, 1
      %p76 = scmp.ne.s32.totalorder %s71, %s73
      %p77 = scmp.eq.s32.totalorder %s16, 0
      %p78 = por %p76, %p77
      %p79 = scmp.ne.s32.totalorder %s71, %s73
      %p80 = scmp.eq.s32.totalorder %s21, 1
      %p81 = por %p79, %p80
      %p82 = scmp.ne.s32.totalorder %s73, %s74
      %p83 = scmp.eq.s32.totalorder %s21, 0
      %p84 = por %p82, %p83
      %p85 = scmp.ne.s32.totalorder %s73, %s74
      %p86 = scmp.eq.s32.totalorder %s22, 1
      %p87 = por %p85, %p86
      %p89 = scmp.ne.s32.totalorder %s74, %s88
      %p90 = scmp.eq.s32.totalorder %s22, 0
      %p91 = por %p89, %p90
      %s93 = sadd.s32 %s92, 1
      %p96 = scmp.eq.s32.totalorder %s16, 1
      %p97 = scmp.ne.s32.totalorder %s92, %s94
      %p98 = scmp.eq.s32.totalorder %s16, 0
      %p99 = por %p97, %p98
      %p100 = scmp.ne.s32.totalorder %s92, %s94
      %p101 = scmp.eq.s32.totalorder %s21, 1
      %p102 = por %p100, %p101
      %p103 = scmp.ne.s32.totalorder %s94, %s95
      %p104 = scmp.eq.s32.totalorder %s21, 0
      %p105 = por %p103, %p104
      %p106 = scmp.ne.s32.totalorder %s94, %s95
      %p107 = scmp.eq.s32.totalorder %s22, 1
      %p108 = por %p106, %p107
      %p110 = scmp.ne.s32.totalorder %s95, %s109
      %p111 = scmp.eq.s32.totalorder %s22, 0
      %p112 = por %p110, %p111
      %s114 = sadd.s32 %s113, 1
      %p117 = scmp.eq.s32.totalorder %s16, 1
      %p118 = scmp.ne.s32.totalorder %s113, %s115
      %p119 = scmp.eq.s32.totalorder %s16, 0
      %p120 = por %p118, %p119
      %p121 = scmp.ne.s32.totalorder %s113, %s115
      %p122 = scmp.eq.s32.totalorder %s21, 1
      %p123 = por %p121, %p122
      %p124 = scmp.ne.s32.totalorder %s115, %s116
      %p125 = scmp.eq.s32.totalorder %s21, 0
      %p126 = por %p124, %p125
      %p127 = scmp.ne.s32.totalorder %s115, %s116
      %p128 = scmp.eq.s32.totalorder %s22, 1
      %p129 = por %p127, %p128
      %p131 = scmp.ne.s32.totalorder %s116, %s130
      %p132 = scmp.eq.s32.totalorder %s22, 0
      %p133 = por %p131, %p132
      %s135 = sadd.s32 %s134, 1
      %p138 = scmp.eq.s32.totalorder %s16, 1
      %p139 = scmp.ne.s32.totalorder %s134, %s136
      %p140 = scmp.eq.s32.totalorder %s16, 0
      %p141 = por %p139, %p140
      %p142 = scmp.ne.s32.totalorder %s134, %s136
      %p143 = scmp.eq.s32.totalorder %s21, 1
      %p144 = por %p142, %p143
      %p145 = scmp.ne.s32.totalorder %s136, %s137
      %p146 = scmp.eq.s32.totalorder %s21, 0
      %p147 = por %p145, %p146
      %p148 = scmp.ne.s32.totalorder %s136, %s137
      %p149 = scmp.eq.s32.totalorder %s22, 1
      %p150 = por %p148, %p149
      %p152 = scmp.ne.s32.totalorder %s137, %s151
      %p153 = scmp.eq.s32.totalorder %s22, 0
      %p154 = por %p152, %p153
      %s156 = sadd.s32 %s155, 1
      %p159 = scmp.eq.s32.totalorder %s16, 1
      %p160 = scmp.ne.s32.totalorder %s155, %s157
      %p161 = scmp.eq.s32.totalorder %s16, 0
      %p162 = por %p160, %p161
      %p163 = scmp.ne.s32.totalorder %s155, %s157
      %p164 = scmp.eq.s32.totalorder %s21, 1
      %p165 = por %p163, %p164
      %p166 = scmp.ne.s32.totalorder %s157, %s158
      %p167 = scmp.eq.s32.totalorder %s21, 0
      %p168 = por %p166, %p167
      %p169 = scmp.ne.s32.totalorder %s157, %s158
      %p170 = scmp.eq.s32.totalorder %s22, 1
      %p171 = por %p169, %p170
      %p173 = scmp.ne.s32.totalorder %s158, %s172
      %p174 = scmp.eq.s32.totalorder %s22, 0
      %p175 = por %p173, %p174
      %s176 = ssub.s32 %s16, %s23
      %p177 = scmp.eq.s32.totalorder %s176, 0
      %s179 = sadd.s32 %s178, 1
      %s180 = scalar_select %p177, %s178, %s179
      %p183 = pneg %p177
      %p184 = scmp.eq.s32.totalorder %s16, 1
      %p185 = por %p183, %p184
      %p186 = scmp.ne.s32.totalorder %s178, %s181
      %p187 = scmp.eq.s32.totalorder %s16, 0
      %p188 = por %p186, %p187
      %p189 = scmp.ne.s32.totalorder %s178, %s181
      %p190 = scmp.eq.s32.totalorder %s21, 1
      %p191 = por %p189, %p190
      %p192 = scmp.ne.s32.totalorder %s181, %s182
      %p193 = scmp.eq.s32.totalorder %s21, 0
      %p194 = por %p192, %p193
      %p195 = scmp.ne.s32.totalorder %s181, %s182
      %p196 = scmp.eq.s32.totalorder %s22, 1
      %p197 = por %p195, %p196
      %p199 = scmp.ne.s32.totalorder %s182, %s198
      %p200 = scmp.eq.s32.totalorder %s22, 0
      %p201 = por %p199, %p200
      %p202 = scmp.le.s32.totalorder 1, %s16
      %p203 = scmp.lt.s32.totalorder %s16, 3
      %p204 = pnand %p202, %p203
      %p205 = pneg %p204
      // Predicated region
      $region9: #{_lambda_.1} parent=5 // pred_check
        _
      $region10: #{_lambda_.1} parent=5 // pred_check_branch
        %207 = sbr.rel (%p204) target = $region12
      $region11: #{_lambda_.1} parent=5 // pred_region
        %s208 = ssub.s32 %s16, 1
        // Predicated region
        $region13: #{_lambda_.1} parent=11 // pred_check
          %p209 = pneg %p63
        $region14: #{_lambda_.1} parent=11 // pred_check_branch
          %211 = sbr.rel (%p209) target = $region16
        $region15: #{_lambda_.1} parent=11 // pred_region
          _
        $region16: #{_lambda_.1} parent=11 // pred_fallthru
          _
        // Predicated region
        $region17: #{_lambda_.1} parent=11 // pred_check
          %p212 = pneg %p84
        $region18: #{_lambda_.1} parent=11 // pred_check_branch
          %214 = sbr.rel (%p212) target = $region20
        $region19: #{_lambda_.1} parent=11 // pred_region
          _
        $region20: #{_lambda_.1} parent=11 // pred_fallthru
          _
        // Predicated region
        $region21: #{_lambda_.1} parent=11 // pred_check
          %p215 = pneg %p105
        $region22: #{_lambda_.1} parent=11 // pred_check_branch
          %217 = sbr.rel (%p215) target = $region24
        $region23: #{_lambda_.1} parent=11 // pred_region
          _
        $region24: #{_lambda_.1} parent=11 // pred_fallthru
          _
        // Predicated region
        $region25: #{_lambda_.1} parent=11 // pred_check
          %p218 = pneg %p126
        $region26: #{_lambda_.1} parent=11 // pred_check_branch
          %220 = sbr.rel (%p218) target = $region28
        $region27: #{_lambda_.1} parent=11 // pred_region
          _
        $region28: #{_lambda_.1} parent=11 // pred_fallthru
          _
        // Predicated region
        $region29: #{_lambda_.1} parent=11 // pred_check
          %p221 = pneg %p147
        $region30: #{_lambda_.1} parent=11 // pred_check_branch
          %223 = sbr.rel (%p221) target = $region32
        $region31: #{_lambda_.1} parent=11 // pred_region
          _
        $region32: #{_lambda_.1} parent=11 // pred_fallthru
          _
        // Predicated region
        $region33: #{_lambda_.1} parent=11 // pred_check
          %p224 = pneg %p168
        $region34: #{_lambda_.1} parent=11 // pred_check_branch
          %226 = sbr.rel (%p224) target = $region36
        $region35: #{_lambda_.1} parent=11 // pred_region
          _
        $region36: #{_lambda_.1} parent=11 // pred_fallthru
          _
      $region12: #{_lambda_.1} parent=5 // pred_fallthru
        _
      %p227 = scmp.lt.s32.totalorder %s16, 2
      // Predicated region
      $region37: #{_lambda_.1} parent=5 // pred_check
        %p228 = pneg %p227
      $region38: #{_lambda_.1} parent=5 // pred_check_branch
        %230 = sbr.rel (%p228) target = $region40
      $region39: #{_lambda_.1} parent=5 // pred_region
        // Predicated region
        $region41: #{_lambda_.1} parent=39 // pred_check
          %p231 = pneg %p36
        $region42: #{_lambda_.1} parent=39 // pred_check_branch
          %233 = sbr.rel (%p231) target = $region44
        $region43: #{_lambda_.1} parent=39 // pred_region
          %p234 = scmp.lt.s32.totalorder %s16, 1
          %s235 = scalar_select %p234, %s16, 1
          %s236 = smul.addr %s235, 30
          %s237 = smul.addr %s236, 8
          %s238 = scalar_lea.vmem %s0, %s237
        $region44: #{_lambda_.1} parent=39 // pred_fallthru
          _
      $region40: #{_lambda_.1} parent=5 // pred_fallthru
        _
      %p239 = scmp.le.s32.totalorder 1, %s16
      %p240 = scmp.lt.s32.totalorder %s16, 3
      %p241 = pnand %p239, %p240
      %p242 = pneg %p241
      // Predicated region
      $region45: #{_lambda_.1} parent=5 // pred_check
        _
      $region46: #{_lambda_.1} parent=5 // pred_check_branch
        %244 = sbr.rel (%p241) target = $region48
      $region47: #{_lambda_.1} parent=5 // pred_region
        %s245 = ssub.s32 %s16, 1
        %p246 = scmp.lt.s32.totalorder %s21, 1
        %s247 = scalar_select %p246, %s21, 1
        %s248 = smul.addr %s247, 30
        %s249 = smul.addr %s248, 8
        %s250 = scalar_lea.vmem %s0, %s249
        %p251 = pneg %p42
        %p252 = pneg %p39
        %p253 = pneg %p63
        %p254 = pneg %p60
        %p255 = pneg %p84
        %p256 = pneg %p81
        %p257 = pneg %p105
        %p258 = pneg %p102
        %p259 = pneg %p126
        %p260 = pneg %p123
        %p261 = pneg %p147
        %p262 = pneg %p144
        %p263 = pneg %p168
        %p264 = pneg %p165
        %p265 = pneg %p194
        %p266 = pneg %p191
        %s267 = sand.u32 %s181, 1
        %s268 = scalar_lea.sflag [#allocation3], %s267
        %s269 = sand.u32 %s181, 1
        %s270 = smul.addr %s269, 240
        %s271 = scalar_lea.vmem [#allocation2], %s270
        %p272 = scmp.lt.s32.totalorder %s21, 1
        %s273 = scalar_select %p272, %s21, 1
        %s274 = smul.addr %s273, 30
        %s275 = smul.addr %s274, 8
        %s276 = scalar_lea.vmem %s0, %s275
        %v278 = vld [vmem:[%s276] sm:$0xff]
        %v279 = vld [vmem:[%s276 + $0x8] sm:$0xff]
        %v280 = vld [vmem:[%s276 + $0x10] sm:$0xff]
        %v281 = vld [vmem:[%s276 + $0x18] sm:$0xff]
        %v282 = vld [vmem:[%s276 + $0x20] sm:$0xff]
        %v283 = vld [vmem:[%s276 + $0x28] sm:$0xff]
        %v284 = vld [vmem:[%s276 + $0x30] sm:$0xff]
        %v285 = vld [vmem:[%s276 + $0x38] sm:$0xff]
        %v286 = vld [vmem:[%s276 + $0x40] sm:$0xff]
        %v287 = vld [vmem:[%s276 + $0x48] sm:$0xff]
        %v288 = vld [vmem:[%s276 + $0x50] sm:$0xff]
        %v289 = vld [vmem:[%s276 + $0x58] sm:$0xff]
        %v290 = vld [vmem:[%s276 + $0x60] sm:$0xff]
        %v291 = vld [vmem:[%s276 + $0x68] sm:$0xff]
        %v292 = vld [vmem:[%s276 + $0x70] sm:$0xff]
        %v293 = vld [vmem:[%s276 + $0x78] sm:$0xff]
        %v294 = vld [vmem:[%s276 + $0x80] sm:$0xff]
        %v295 = vld [vmem:[%s276 + $0x88] sm:$0xff]
        %v296 = vld [vmem:[%s276 + $0x90] sm:$0xff]
        %v297 = vld [vmem:[%s276 + $0x98] sm:$0xff]
        %v298 = vld [vmem:[%s276 + $0xa0] sm:$0xff]
        %v299 = vld [vmem:[%s276 + $0xa8] sm:$0xff]
        %v300 = vld [vmem:[%s276 + $0xb0] sm:$0xff]
        %v301 = vld [vmem:[%s276 + $0xb8] sm:$0xff]
        %v302 = vld [vmem:[%s276 + $0xc0] sm:$0xff]
        %v303 = vld [vmem:[%s276 + $0xc8] sm:$0xff]
        %v304 = vld [vmem:[%s276 + $0xd0] sm:$0xff]
        %v305 = vld [vmem:[%s276 + $0xd8] sm:$0xff]
        %v306 = vld [vmem:[%s276 + $0xe0] sm:$0xff]
        %v307 = vld [vmem:[%s276 + $0xe8] sm:$0xff]
        %v308 = vpack.c.bf16 %v279, %v278
        %v309 = vpack.c.bf16 %v281, %v280
        %v310 = vpack.c.bf16 %v283, %v282
        %v311 = vpack.c.bf16 %v285, %v284
        %v312 = vpack.c.bf16 %v287, %v286
        %v313 = vpack.c.bf16 %v289, %v288
        %v314 = vpack.c.bf16 %v291, %v290
        %v315 = vpack.c.bf16 %v293, %v292
        %v316 = vpack.c.bf16 %v295, %v294
        %v317 = vpack.c.bf16 %v297, %v296
        %v318 = vpack.c.bf16 %v299, %v298
        %v319 = vpack.c.bf16 %v301, %v300
        %v320 = vpack.c.bf16 %v303, %v302
        %v321 = vpack.c.bf16 %v305, %v304
        %v322 = vpack.c.bf16 %v307, %v306
        %v323 = vld [vmem:[%s1] sm:$0xf]
        %v324 = vld [vmem:[%s1 + $0x4] sm:$0xf]
        %v327 = vunpack.c.l.b16 %v323
        %v328 = vunpack.c.l.b16 %v324
        %v329 = vpack.c.b16 %v328, %v327
        %vm331 = vcmask 130048
        %v333 = vsel %vm331, %v308, 0
        %v336 = vsel %vm331, %v309, 0
        %v339 = vsel %vm331, %v310, 0
        %v342 = vsel %vm331, %v311, 0
        %v345 = vsel %vm331, %v312, 0
        %v348 = vsel %vm331, %v313, 0
        %v351 = vsel %vm331, %v314, 0
        %v354 = vsel %vm331, %v315, 0
        %v357 = vsel %vm331, %v316, 0
        %v360 = vsel %vm331, %v317, 0
        %v363 = vsel %vm331, %v318, 0
        %v366 = vsel %vm331, %v319, 0
        %v369 = vsel %vm331, %v320, 0
        %v372 = vsel %vm331, %v321, 0
        %v375 = vsel %vm331, %v322, 0
        %377 = vmatpush.bf16.msra.mxu0 0
        %378 = vmatpush.bf16.msra.mxu0 0
        %379 = vmatpush.bf16.msra.mxu0 0
        %380 = vmatpush.bf16.msra.mxu0 0
        %381 = vmatpush.bf16.msra.mxu0 0
        %382 = vmatpush.bf16.msra.mxu0 0
        %383 = vmatpush.bf16.msra.mxu0 0
        %384 = vmatpush.bf16.msra.mxu0 %v329
        %385 = vmatmul.bf16.gmra.mxu0 %v333
        %v386 = vpop.f32.mrf.mxu0
        %v387 = vadd.f32 0.0, %v386
        %v388 = vpop.f32.mrf.mxu0
        %v389 = vadd.f32 0.0, %v388
        %390 = vmatmul.bf16.gmra.mxu0 %v336
        %v391 = vpop.f32.mrf.mxu0
        %v392 = vadd.f32 0.0, %v391
        %v393 = vpop.f32.mrf.mxu0
        %v394 = vadd.f32 0.0, %v393
        %395 = vmatmul.bf16.gmra.mxu0 %v339
        %v396 = vpop.f32.mrf.mxu0
        %v397 = vadd.f32 0.0, %v396
        %v398 = vpop.f32.mrf.mxu0
        %v399 = vadd.f32 0.0, %v398
        %400 = vmatmul.bf16.gmra.mxu0 %v342
        %v401 = vpop.f32.mrf.mxu0
        %v402 = vadd.f32 0.0, %v401
        %v403 = vpop.f32.mrf.mxu0
        %v404 = vadd.f32 0.0, %v403
        %405 = vmatmul.bf16.gmra.mxu0 %v345
        %v406 = vpop.f32.mrf.mxu0
        %v407 = vadd.f32 0.0, %v406
        %v408 = vpop.f32.mrf.mxu0
        %v409 = vadd.f32 0.0, %v408
        %410 = vmatmul.bf16.gmra.mxu0 %v348
        %v411 = vpop.f32.mrf.mxu0
        %v412 = vadd.f32 0.0, %v411
        %v413 = vpop.f32.mrf.mxu0
        %v414 = vadd.f32 0.0, %v413
        %415 = vmatmul.bf16.gmra.mxu0 %v351
        %v416 = vpop.f32.mrf.mxu0
        %v417 = vadd.f32 0.0, %v416
        %v418 = vpop.f32.mrf.mxu0
        %v419 = vadd.f32 0.0, %v418
        %420 = vmatmul.bf16.gmra.mxu0 %v354
        %v421 = vpop.f32.mrf.mxu0
        %v422 = vadd.f32 0.0, %v421
        %v423 = vpop.f32.mrf.mxu0
        %v424 = vadd.f32 0.0, %v423
        %425 = vmatmul.bf16.gmra.mxu0 %v357
        %v426 = vpop.f32.mrf.mxu0
        %v427 = vadd.f32 0.0, %v426
        %v428 = vpop.f32.mrf.mxu0
        %v429 = vadd.f32 0.0, %v428
        %430 = vmatmul.bf16.gmra.mxu0 %v360
        %v431 = vpop.f32.mrf.mxu0
        %v432 = vadd.f32 0.0, %v431
        %v433 = vpop.f32.mrf.mxu0
        %v434 = vadd.f32 0.0, %v433
        %435 = vmatmul.bf16.gmra.mxu0 %v363
        %v436 = vpop.f32.mrf.mxu0
        %v437 = vadd.f32 0.0, %v436
        %v438 = vpop.f32.mrf.mxu0
        %v439 = vadd.f32 0.0, %v438
        %440 = vmatmul.bf16.gmra.mxu0 %v366
        %v441 = vpop.f32.mrf.mxu0
        %v442 = vadd.f32 0.0, %v441
        %v443 = vpop.f32.mrf.mxu0
        %v444 = vadd.f32 0.0, %v443
        %445 = vmatmul.bf16.gmra.mxu0 %v369
        %v446 = vpop.f32.mrf.mxu0
        %v447 = vadd.f32 0.0, %v446
        %v448 = vpop.f32.mrf.mxu0
        %v449 = vadd.f32 0.0, %v448
        %450 = vmatmul.bf16.gmra.mxu0 %v372
        %v451 = vpop.f32.mrf.mxu0
        %v452 = vadd.f32 0.0, %v451
        %v453 = vpop.f32.mrf.mxu0
        %v454 = vadd.f32 0.0, %v453
        %455 = vmatmul.bf16.gmra.mxu0 %v375
        %v456 = vpop.f32.mrf.mxu0
        %v457 = vadd.f32 0.0, %v456
        %v458 = vpop.f32.mrf.mxu0
        %v459 = vadd.f32 0.0, %v458
        %460 = vdwg.mxu0
        %491 = vrot.lane.b32.xlu0 %v387, 120
        %v492 = vpop.permute.xlu0 %491
        %493 = vrot.lane.b32.xlu0 %v389, 120
        %v494 = vpop.permute.xlu0 %493
        %495 = vrot.lane.b32.xlu0 %v392, 120
        %v496 = vpop.permute.xlu0 %495
        %497 = vrot.lane.b32.xlu0 %v394, 120
        %v498 = vpop.permute.xlu0 %497
        %499 = vrot.lane.b32.xlu0 %v397, 120
        %v500 = vpop.permute.xlu0 %499
        %501 = vrot.lane.b32.xlu0 %v399, 120
        %v502 = vpop.permute.xlu0 %501
        %503 = vrot.lane.b32.xlu0 %v402, 120
        %v504 = vpop.permute.xlu0 %503
        %505 = vrot.lane.b32.xlu0 %v404, 120
        %v506 = vpop.permute.xlu0 %505
        %507 = vrot.lane.b32.xlu0 %v407, 120
        %v508 = vpop.permute.xlu0 %507
        %509 = vrot.lane.b32.xlu0 %v409, 120
        %v510 = vpop.permute.xlu0 %509
        %511 = vrot.lane.b32.xlu0 %v412, 120
        %v512 = vpop.permute.xlu0 %511
        %513 = vrot.lane.b32.xlu0 %v414, 120
        %v514 = vpop.permute.xlu0 %513
        %515 = vrot.lane.b32.xlu0 %v417, 120
        %v516 = vpop.permute.xlu0 %515
        %517 = vrot.lane.b32.xlu0 %v419, 120
        %v518 = vpop.permute.xlu0 %517
        %519 = vrot.lane.b32.xlu0 %v422, 120
        %v520 = vpop.permute.xlu0 %519
        %521 = vrot.lane.b32.xlu0 %v424, 120
        %v522 = vpop.permute.xlu0 %521
        %523 = vrot.lane.b32.xlu0 %v427, 120
        %v524 = vpop.permute.xlu0 %523
        %525 = vrot.lane.b32.xlu0 %v429, 120
        %v526 = vpop.permute.xlu0 %525
        %527 = vrot.lane.b32.xlu0 %v432, 120
        %v528 = vpop.permute.xlu0 %527
        %529 = vrot.lane.b32.xlu0 %v434, 120
        %v530 = vpop.permute.xlu0 %529
        %531 = vrot.lane.b32.xlu0 %v437, 120
        %v532 = vpop.permute.xlu0 %531
        %533 = vrot.lane.b32.xlu0 %v439, 120
        %v534 = vpop.permute.xlu0 %533
        %535 = vrot.lane.b32.xlu0 %v442, 120
        %v536 = vpop.permute.xlu0 %535
        %537 = vrot.lane.b32.xlu0 %v444, 120
        %v538 = vpop.permute.xlu0 %537
        %539 = vrot.lane.b32.xlu0 %v447, 120
        %v540 = vpop.permute.xlu0 %539
        %541 = vrot.lane.b32.xlu0 %v449, 120
        %v542 = vpop.permute.xlu0 %541
        %543 = vrot.lane.b32.xlu0 %v452, 120
        %v544 = vpop.permute.xlu0 %543
        %545 = vrot.lane.b32.xlu0 %v454, 120
        %v546 = vpop.permute.xlu0 %545
        %547 = vrot.lane.b32.xlu0 %v457, 120
        %v548 = vpop.permute.xlu0 %547
        %549 = vrot.lane.b32.xlu0 %v459, 120
        %v550 = vpop.permute.xlu0 %549
        %v581 = vmax.f32 %v387, %v492
        %v582 = vmax.f32 %v389, %v494
        %v583 = vmax.f32 %v392, %v496
        %v584 = vmax.f32 %v394, %v498
        %v585 = vmax.f32 %v397, %v500
        %v586 = vmax.f32 %v399, %v502
        %v587 = vmax.f32 %v402, %v504
        %v588 = vmax.f32 %v404, %v506
        %v589 = vmax.f32 %v407, %v508
        %v590 = vmax.f32 %v409, %v510
        %v591 = vmax.f32 %v412, %v512
        %v592 = vmax.f32 %v414, %v514
        %v593 = vmax.f32 %v417, %v516
        %v594 = vmax.f32 %v419, %v518
        %v595 = vmax.f32 %v422, %v520
        %v596 = vmax.f32 %v424, %v522
        %v597 = vmax.f32 %v427, %v524
        %v598 = vmax.f32 %v429, %v526
        %v599 = vmax.f32 %v432, %v528
        %v600 = vmax.f32 %v434, %v530
        %v601 = vmax.f32 %v437, %v532
        %v602 = vmax.f32 %v439, %v534
        %v603 = vmax.f32 %v442, %v536
        %v604 = vmax.f32 %v444, %v538
        %v605 = vmax.f32 %v447, %v540
        %v606 = vmax.f32 %v449, %v542
        %v607 = vmax.f32 %v452, %v544
        %v608 = vmax.f32 %v454, %v546
        %v609 = vmax.f32 %v457, %v548
        %v610 = vmax.f32 %v459, %v550
        %611 = vrot.lane.b32.xlu0 %v387, 112
        %v612 = vpop.permute.xlu0 %611
        %613 = vrot.lane.b32.xlu0 %v389, 112
        %v614 = vpop.permute.xlu0 %613
        %615 = vrot.lane.b32.xlu0 %v392, 112
        %v616 = vpop.permute.xlu0 %615
        %617 = vrot.lane.b32.xlu0 %v394, 112
        %v618 = vpop.permute.xlu0 %617
        %619 = vrot.lane.b32.xlu0 %v397, 112
        %v620 = vpop.permute.xlu0 %619
        %621 = vrot.lane.b32.xlu0 %v399, 112
        %v622 = vpop.permute.xlu0 %621
        %623 = vrot.lane.b32.xlu0 %v402, 112
        %v624 = vpop.permute.xlu0 %623
        %625 = vrot.lane.b32.xlu0 %v404, 112
        %v626 = vpop.permute.xlu0 %625
        %627 = vrot.lane.b32.xlu0 %v407, 112
        %v628 = vpop.permute.xlu0 %627
        %629 = vrot.lane.b32.xlu0 %v409, 112
        %v630 = vpop.permute.xlu0 %629
        %631 = vrot.lane.b32.xlu0 %v412, 112
        %v632 = vpop.permute.xlu0 %631
        %633 = vrot.lane.b32.xlu0 %v414, 112
        %v634 = vpop.permute.xlu0 %633
        %635 = vrot.lane.b32.xlu0 %v417, 112
        %v636 = vpop.permute.xlu0 %635
        %637 = vrot.lane.b32.xlu0 %v419, 112
        %v638 = vpop.permute.xlu0 %637
        %639 = vrot.lane.b32.xlu0 %v422, 112
        %v640 = vpop.permute.xlu0 %639
        %641 = vrot.lane.b32.xlu0 %v424, 112
        %v642 = vpop.permute.xlu0 %641
        %643 = vrot.lane.b32.xlu0 %v427, 112
        %v644 = vpop.permute.xlu0 %643
        %645 = vrot.lane.b32.xlu0 %v429, 112
        %v646 = vpop.permute.xlu0 %645
        %647 = vrot.lane.b32.xlu0 %v432, 112
        %v648 = vpop.permute.xlu0 %647
        %649 = vrot.lane.b32.xlu0 %v434, 112
        %v650 = vpop.permute.xlu0 %649
        %651 = vrot.lane.b32.xlu0 %v437, 112
        %v652 = vpop.permute.xlu0 %651
        %653 = vrot.lane.b32.xlu0 %v439, 112
        %v654 = vpop.permute.xlu0 %653
        %655 = vrot.lane.b32.xlu0 %v442, 112
        %v656 = vpop.permute.xlu0 %655
        %657 = vrot.lane.b32.xlu0 %v444, 112
        %v658 = vpop.permute.xlu0 %657
        %659 = vrot.lane.b32.xlu0 %v447, 112
        %v660 = vpop.permute.xlu0 %659
        %661 = vrot.lane.b32.xlu0 %v449, 112
        %v662 = vpop.permute.xlu0 %661
        %663 = vrot.lane.b32.xlu0 %v452, 112
        %v664 = vpop.permute.xlu0 %663
        %665 = vrot.lane.b32.xlu0 %v454, 112
        %v666 = vpop.permute.xlu0 %665
        %667 = vrot.lane.b32.xlu0 %v457, 112
        %v668 = vpop.permute.xlu0 %667
        %669 = vrot.lane.b32.xlu0 %v459, 112
        %v670 = vpop.permute.xlu0 %669
        %v701 = vmax.f32 %v581, %v612
        %v702 = vmax.f32 %v582, %v614
        %v703 = vmax.f32 %v583, %v616
        %v704 = vmax.f32 %v584, %v618
        %v705 = vmax.f32 %v585, %v620
        %v706 = vmax.f32 %v586, %v622
        %v707 = vmax.f32 %v587, %v624
        %v708 = vmax.f32 %v588, %v626
        %v709 = vmax.f32 %v589, %v628
        %v710 = vmax.f32 %v590, %v630
        %v711 = vmax.f32 %v591, %v632
        %v712 = vmax.f32 %v592, %v634
        %v713 = vmax.f32 %v593, %v636
        %v714 = vmax.f32 %v594, %v638
        %v715 = vmax.f32 %v595, %v640
        %v716 = vmax.f32 %v596, %v642
        %v717 = vmax.f32 %v597, %v644
        %v718 = vmax.f32 %v598, %v646
        %v719 = vmax.f32 %v599, %v648
        %v720 = vmax.f32 %v600, %v650
        %v721 = vmax.f32 %v601, %v652
        %v722 = vmax.f32 %v602, %v654
        %v723 = vmax.f32 %v603, %v656
        %v724 = vmax.f32 %v604, %v658
        %v725 = vmax.f32 %v605, %v660
        %v726 = vmax.f32 %v606, %v662
        %v727 = vmax.f32 %v607, %v664
        %v728 = vmax.f32 %v608, %v666
        %v729 = vmax.f32 %v609, %v668
        %v730 = vmax.f32 %v610, %v670
        %731 = vxpose.xlu0.b32.start [1/16] %v701, 128
        %732 = vxpose.xlu0.b32.cont [2/16] %v702, 128
        %733 = vxpose.xlu0.b32.cont [3/16] 0.0, 128
        %734 = vxpose.xlu0.b32.cont [4/16] 0.0, 128
        %735 = vxpose.xlu0.b32.cont [5/16] 0.0, 128
        %736 = vxpose.xlu0.b32.cont [6/16] 0.0, 128
        %737 = vxpose.xlu0.b32.cont [7/16] 0.0, 128
        %738 = vxpose.xlu0.b32.cont [8/16] 0.0, 128
        %739 = vxpose.xlu0.b32.cont [9/16] 0.0, 128
        %740 = vxpose.xlu0.b32.cont [10/16] 0.0, 128
        %741 = vxpose.xlu0.b32.cont [11/16] 0.0, 128
        %742 = vxpose.xlu0.b32.cont [12/16] 0.0, 128
        %743 = vxpose.xlu0.b32.cont [13/16] 0.0, 128
        %744 = vxpose.xlu0.b32.cont [14/16] 0.0, 128
        %745 = vxpose.xlu0.b32.cont [15/16] 0.0, 128
        %746 = vxpose.xlu0.b32.end [16/16] 0.0, 128
        %v747 = vpop.trf.xlu0
        %v748 = vpop.trf.xlu0
        %v749 = vpop.trf.xlu0
        %v750 = vpop.trf.xlu0
        %v751 = vpop.trf.xlu0
        %v752 = vpop.trf.xlu0
        %v753 = vpop.trf.xlu0
        %v754 = vpop.trf.xlu0
        %v755 = vpop.trf.xlu0
        %v756 = vpop.trf.xlu0
        %v757 = vpop.trf.xlu0
        %v758 = vpop.trf.xlu0
        %v759 = vpop.trf.xlu0
        %v760 = vpop.trf.xlu0
        %v761 = vpop.trf.xlu0
        %v762 = vpop.trf.xlu0
        %763 = vxpose.xlu0.b32.start [1/16] %v703, 128
        %764 = vxpose.xlu0.b32.cont [2/16] %v704, 128
        %765 = vxpose.xlu0.b32.cont [3/16] 0.0, 128
        %766 = vxpose.xlu0.b32.cont [4/16] 0.0, 128
        %767 = vxpose.xlu0.b32.cont [5/16] 0.0, 128
        %768 = vxpose.xlu0.b32.cont [6/16] 0.0, 128
        %769 = vxpose.xlu0.b32.cont [7/16] 0.0, 128
        %770 = vxpose.xlu0.b32.cont [8/16] 0.0, 128
        %771 = vxpose.xlu0.b32.cont [9/16] 0.0, 128
        %772 = vxpose.xlu0.b32.cont [10/16] 0.0, 128
        %773 = vxpose.xlu0.b32.cont [11/16] 0.0, 128
        %774 = vxpose.xlu0.b32.cont [12/16] 0.0, 128
        %775 = vxpose.xlu0.b32.cont [13/16] 0.0, 128
        %776 = vxpose.xlu0.b32.cont [14/16] 0.0, 128
        %777 = vxpose.xlu0.b32.cont [15/16] 0.0, 128
        %778 = vxpose.xlu0.b32.end [16/16] 0.0, 128
        %v779 = vpop.trf.xlu0
        %v780 = vpop.trf.xlu0
        %v781 = vpop.trf.xlu0
        %v782 = vpop.trf.xlu0
        %v783 = vpop.trf.xlu0
        %v784 = vpop.trf.xlu0
        %v785 = vpop.trf.xlu0
        %v786 = vpop.trf.xlu0
        %v787 = vpop.trf.xlu0
        %v788 = vpop.trf.xlu0
        %v789 = vpop.trf.xlu0
        %v790 = vpop.trf.xlu0
        %v791 = vpop.trf.xlu0
        %v792 = vpop.trf.xlu0
        %v793 = vpop.trf.xlu0
        %v794 = vpop.trf.xlu0
        %795 = vxpose.xlu0.b32.start [1/16] %v705, 128
        %796 = vxpose.xlu0.b32.cont [2/16] %v706, 128
        %797 = vxpose.xlu0.b32.cont [3/16] 0.0, 128
        %798 = vxpose.xlu0.b32.cont [4/16] 0.0, 128
        %799 = vxpose.xlu0.b32.cont [5/16] 0.0, 128
        %800 = vxpose.xlu0.b32.cont [6/16] 0.0, 128
        %801 = vxpose.xlu0.b32.cont [7/16] 0.0, 128
        %802 = vxpose.xlu0.b32.cont [8/16] 0.0, 128
        %803 = vxpose.xlu0.b32.cont [9/16] 0.0, 128
        %804 = vxpose.xlu0.b32.cont [10/16] 0.0, 128
        %805 = vxpose.xlu0.b32.cont [11/16] 0.0, 128
        %806 = vxpose.xlu0.b32.cont [12/16] 0.0, 128
        %807 = vxpose.xlu0.b32.cont [13/16] 0.0, 128
        %808 = vxpose.xlu0.b32.cont [14/16] 0.0, 128
        %809 = vxpose.xlu0.b32.cont [15/16] 0.0, 128
        %810 = vxpose.xlu0.b32.end [16/16] 0.0, 128
        %v811 = vpop.trf.xlu0
        %v812 = vpop.trf.xlu0
        %v813 = vpop.trf.xlu0
        %v814 = vpop.trf.xlu0
        %v815 = vpop.trf.xlu0
        %v816 = vpop.trf.xlu0
        %v817 = vpop.trf.xlu0
        %v818 = vpop.trf.xlu0
        %v819 = vpop.trf.xlu0
        %v820 = vpop.trf.xlu0
        %v821 = vpop.trf.xlu0
        %v822 = vpop.trf.xlu0
        %v823 = vpop.trf.xlu0
        %v824 = vpop.trf.xlu0
        %v825 = vpop.trf.xlu0
        %v826 = vpop.trf.xlu0
        %827 = vxpose.xlu0.b32.start [1/16] %v707, 128
        %828 = vxpose.xlu0.b32.cont [2/16] %v708, 128
        %829 = vxpose.xlu0.b32.cont [3/16] 0.0, 128
        %830 = vxpose.xlu0.b32.cont [4/16] 0.0, 128
        %831 = vxpose.xlu0.b32.cont [5/16] 0.0, 128
        %832 = vxpose.xlu0.b32.cont [6/16] 0.0, 128
        %833 = vxpose.xlu0.b32.cont [7/16] 0.0, 128
        %834 = vxpose.xlu0.b32.cont [8/16] 0.0, 128
        %835 = vxpose.xlu0.b32.cont [9/16] 0.0, 128
        %836 = vxpose.xlu0.b32.cont [10/16] 0.0, 128
        %837 = vxpose.xlu0.b32.cont [11/16] 0.0, 128
        %838 = vxpose.xlu0.b32.cont [12/16] 0.0, 128
        %839 = vxpose.xlu0.b32.cont [13/16] 0.0, 128
        %840 = vxpose.xlu0.b32.cont [14/16] 0.0, 128
        %841 = vxpose.xlu0.b32.cont [15/16] 0.0, 128
        %842 = vxpose.xlu0.b32.end [16/16] 0.0, 128
        %v843 = vpop.trf.xlu0
        %v844 = vpop.trf.xlu0
        %v845 = vpop.trf.xlu0
        %v846 = vpop.trf.xlu0
        %v847 = vpop.trf.xlu0
        %v848 = vpop.trf.xlu0
        %v849 = vpop.trf.xlu0
        %v850 = vpop.trf.xlu0
        %v851 = vpop.trf.xlu0
        %v852 = vpop.trf.xlu0
        %v853 = vpop.trf.xlu0
        %v854 = vpop.trf.xlu0
        %v855 = vpop.trf.xlu0
        %v856 = vpop.trf.xlu0
        %v857 = vpop.trf.xlu0
        %v858 = vpop.trf.xlu0
        %859 = vxpose.xlu0.b32.start [1/16] %v709, 128
        %860 = vxpose.xlu0.b32.cont [2/16] %v710, 128
        %861 = vxpose.xlu0.b32.cont [3/16] 0.0, 128
        %862 = vxpose.xlu0.b32.cont [4/16] 0.0, 128
        %863 = vxpose.xlu0.b32.cont [5/16] 0.0, 128
        %864 = vxpose.xlu0.b32.cont [6/16] 0.0, 128
        %865 = vxpose.xlu0.b32.cont [7/16] 0.0, 128
        %866 = vxpose.xlu0.b32.cont [8/16] 0.0, 128
        %867 = vxpose.xlu0.b32.cont [9/16] 0.0, 128
        %868 = vxpose.xlu0.b32.cont [10/16] 0.0, 128
        %869 = vxpose.xlu0.b32.cont [11/16] 0.0, 128
        %870 = vxpose.xlu0.b32.cont [12/16] 0.0, 128
        %871 = vxpose.xlu0.b32.cont [13/16] 0.0, 128
        %872 = vxpose.xlu0.b32.cont [14/16] 0.0, 128
        %873 = vxpose.xlu0.b32.cont [15/16] 0.0, 128
        %874 = vxpose.xlu0.b32.end [16/16] 0.0, 128
        %v875 = vpop.trf.xlu0
        %v876 = vpop.trf.xlu0
        %v877 = vpop.trf.xlu0
        %v878 = vpop.trf.xlu0
        %v879 = vpop.trf.xlu0
        %v880 = vpop.trf.xlu0
        %v881 = vpop.trf.xlu0
        %v882 = vpop.trf.xlu0
        %v883 = vpop.trf.xlu0
        %v884 = vpop.trf.xlu0
        %v885 = vpop.trf.xlu0
        %v886 = vpop.trf.xlu0
        %v887 = vpop.trf.xlu0
        %v888 = vpop.trf.xlu0
        %v889 = vpop.trf.xlu0
        %v890 = vpop.trf.xlu0
        %891 = vxpose.xlu0.b32.start [1/16] %v711, 128
        %892 = vxpose.xlu0.b32.cont [2/16] %v712, 128
        %893 = vxpose.xlu0.b32.cont [3/16] 0.0, 128
        %894 = vxpose.xlu0.b32.cont [4/16] 0.0, 128
        %895 = vxpose.xlu0.b32.cont [5/16] 0.0, 128
        %896 = vxpose.xlu0.b32.cont [6/16] 0.0, 128
        %897 = vxpose.xlu0.b32.cont [7/16] 0.0, 128
        %898 = vxpose.xlu0.b32.cont [8/16] 0.0, 128
        %899 = vxpose.xlu0.b32.cont [9/16] 0.0, 128
        %900 = vxpose.xlu0.b32.cont [10/16] 0.0, 128
        %901 = vxpose.xlu0.b32.cont [11/16] 0.0, 128
        %902 = vxpose.xlu0.b32.cont [12/16] 0.0, 128
        %903 = vxpose.xlu0.b32.cont [13/16] 0.0, 128
        %904 = vxpose.xlu0.b32.cont [14/16] 0.0, 128
        %905 = vxpose.xlu0.b32.cont [15/16] 0.0, 128
        %906 = vxpose.xlu0.b32.end [16/16] 0.0, 128
        %v907 = vpop.trf.xlu0
        %v908 = vpop.trf.xlu0
        %v909 = vpop.trf.xlu0
        %v910 = vpop.trf.xlu0
        %v911 = vpop.trf.xlu0
        %v912 = vpop.trf.xlu0
        %v913 = vpop.trf.xlu0
        %v914 = vpop.trf.xlu0
        %v915 = vpop.trf.xlu0
        %v916 = vpop.trf.xlu0
        %v917 = vpop.trf.xlu0
        %v918 = vpop.trf.xlu0
        %v919 = vpop.trf.xlu0
        %v920 = vpop.trf.xlu0
        %v921 = vpop.trf.xlu0
        %v922 = vpop.trf.xlu0
        %923 = vxpose.xlu0.b32.start [1/16] %v713, 128
        %924 = vxpose.xlu0.b32.cont [2/16] %v714, 128
        %925 = vxpose.xlu0.b32.cont [3/16] 0.0, 128
        %926 = vxpose.xlu0.b32.cont [4/16] 0.0, 128
        %927 = vxpose.xlu0.b32.cont [5/16] 0.0, 128
        %928 = vxpose.xlu0.b32.cont [6/16] 0.0, 128
        %929 = vxpose.xlu0.b32.cont [7/16] 0.0, 128
        %930 = vxpose.xlu0.b32.cont [8/16] 0.0, 128
        %931 = vxpose.xlu0.b32.cont [9/16] 0.0, 128
        %932 = vxpose.xlu0.b32.cont [10/16] 0.0, 128
        %933 = vxpose.xlu0.b32.cont [11/16] 0.0, 128
        %934 = vxpose.xlu0.b32.cont [12/16] 0.0, 128
        %935 = vxpose.xlu0.b32.cont [13/16] 0.0, 128
        %936 = vxpose.xlu0.b32.cont [14/16] 0.0, 128
        %937 = vxpose.xlu0.b32.cont [15/16] 0.0, 128
        %938 = vxpose.xlu0.b32.end [16/16] 0.0, 128
        %v939 = vpop.trf.xlu0
        %v940 = vpop.trf.xlu0
        %v941 = vpop.trf.xlu0
        %v942 = vpop.trf.xlu0
        %v943 = vpop.trf.xlu0
        %v944 = vpop.trf.xlu0
        %v945 = vpop.trf.xlu0
        %v946 = vpop.trf.xlu0
        %v947 = vpop.trf.xlu0
        %v948 = vpop.trf.xlu0
        %v949 = vpop.trf.xlu0
        %v950 = vpop.trf.xlu0
        %v951 = vpop.trf.xlu0
        %v952 = vpop.trf.xlu0
        %v953 = vpop.trf.xlu0
        %v954 = vpop.trf.xlu0
        %955 = vxpose.xlu0.b32.start [1/16] %v715, 128
        %956 = vxpose.xlu0.b32.cont [2/16] %v716, 128
        %957 = vxpose.xlu0.b32.cont [3/16] 0.0, 128
        %958 = vxpose.xlu0.b32.cont [4/16] 0.0, 128
        %959 = vxpose.xlu0.b32.cont [5/16] 0.0, 128
        %960 = vxpose.xlu0.b32.cont [6/16] 0.0, 128
        %961 = vxpose.xlu0.b32.cont [7/16] 0.0, 128
        %962 = vxpose.xlu0.b32.cont [8/16] 0.0, 128
        %963 = vxpose.xlu0.b32.cont [9/16] 0.0, 128
        %964 = vxpose.xlu0.b32.cont [10/16] 0.0, 128
        %965 = vxpose.xlu0.b32.cont [11/16] 0.0, 128
        %966 = vxpose.xlu0.b32.cont [12/16] 0.0, 128
        %967 = vxpose.xlu0.b32.cont [13/16] 0.0, 128
        %968 = vxpose.xlu0.b32.cont [14/16] 0.0, 128
        %969 = vxpose.xlu0.b32.cont [15/16] 0.0, 128
        %970 = vxpose.xlu0.b32.end [16/16] 0.0, 128
        %v971 = vpop.trf.xlu0
        %v972 = vpop.trf.xlu0
        %v973 = vpop.trf.xlu0
        %v974 = vpop.trf.xlu0
        %v975 = vpop.trf.xlu0
        %v976 = vpop.trf.xlu0
        %v977 = vpop.trf.xlu0
        %v978 = vpop.trf.xlu0
        %v979 = vpop.trf.xlu0
        %v980 = vpop.trf.xlu0
        %v981 = vpop.trf.xlu0
        %v982 = vpop.trf.xlu0
        %v983 = vpop.trf.xlu0
        %v984 = vpop.trf.xlu0
        %v985 = vpop.trf.xlu0
        %v986 = vpop.trf.xlu0
        %987 = vxpose.xlu0.b32.start [1/16] %v717, 128
        %988 = vxpose.xlu0.b32.cont [2/16] %v718, 128
        %989 = vxpose.xlu0.b32.cont [3/16] 0.0, 128
        %990 = vxpose.xlu0.b32.cont [4/16] 0.0, 128
        %991 = vxpose.xlu0.b32.cont [5/16] 0.0, 128
        %992 = vxpose.xlu0.b32.cont [6/16] 0.0, 128
        %993 = vxpose.xlu0.b32.cont [7/16] 0.0, 128
        %994 = vxpose.xlu0.b32.cont [8/16] 0.0, 128
        %995 = vxpose.xlu0.b32.cont [9/16] 0.0, 128
        %996 = vxpose.xlu0.b32.cont [10/16] 0.0, 128
        %997 = vxpose.xlu0.b32.cont [11/16] 0.0, 128
        %998 = vxpose.xlu0.b32.cont [12/16] 0.0, 128
        %999 = vxpose.xlu0.b32.cont [13/16] 0.0, 128
        %1000 = vxpose.xlu0.b32.cont [14/16] 0.0, 128
        %1001 = vxpose.xlu0.b32.cont [15/16] 0.0, 128
        %1002 = vxpose.xlu0.b32.end [16/16] 0.0, 128
        %v1003 = vpop.trf.xlu0
        %v1004 = vpop.trf.xlu0
        %v1005 = vpop.trf.xlu0
        %v1006 = vpop.trf.xlu0
        %v1007 = vpop.trf.xlu0
        %v1008 = vpop.trf.xlu0
        %v1009 = vpop.trf.xlu0
        %v1010 = vpop.trf.xlu0
        %v1011 = vpop.trf.xlu0
        %v1012 = vpop.trf.xlu0
        %v1013 = vpop.trf.xlu0
        %v1014 = vpop.trf.xlu0
        %v1015 = vpop.trf.xlu0
        %v1016 = vpop.trf.xlu0
        %v1017 = vpop.trf.xlu0
        %v1018 = vpop.trf.xlu0
        %1019 = vxpose.xlu0.b32.start [1/16] %v719, 128
        %1020 = vxpose.xlu0.b32.cont [2/16] %v720, 128
        %1021 = vxpose.xlu0.b32.cont [3/16] 0.0, 128
        %1022 = vxpose.xlu0.b32.cont [4/16] 0.0, 128
        %1023 = vxpose.xlu0.b32.cont [5/16] 0.0, 128
        %1024 = vxpose.xlu0.b32.cont [6/16] 0.0, 128
        %1025 = vxpose.xlu0.b32.cont [7/16] 0.0, 128
        %1026 = vxpose.xlu0.b32.cont [8/16] 0.0, 128
        %1027 = vxpose.xlu0.b32.cont [9/16] 0.0, 128
        %1028 = vxpose.xlu0.b32.cont [10/16] 0.0, 128
        %1029 = vxpose.xlu0.b32.cont [11/16] 0.0, 128
        %1030 = vxpose.xlu0.b32.cont [12/16] 0.0, 128
        %1031 = vxpose.xlu0.b32.cont [13/16] 0.0, 128
        %1032 = vxpose.xlu0.b32.cont [14/16] 0.0, 128
        %1033 = vxpose.xlu0.b32.cont [15/16] 0.0, 128
        %1034 = vxpose.xlu0.b32.end [16/16] 0.0, 128
        %v1035 = vpop.trf.xlu0
        %v1036 = vpop.trf.xlu0
        %v1037 = vpop.trf.xlu0
        %v1038 = vpop.trf.xlu0
        %v1039 = vpop.trf.xlu0
        %v1040 = vpop.trf.xlu0
        %v1041 = vpop.trf.xlu0
        %v1042 = vpop.trf.xlu0
        %v1043 = vpop.trf.xlu0
        %v1044 = vpop.trf.xlu0
        %v1045 = vpop.trf.xlu0
        %v1046 = vpop.trf.xlu0
        %v1047 = vpop.trf.xlu0
        %v1048 = vpop.trf.xlu0
        %v1049 = vpop.trf.xlu0
        %v1050 = vpop.trf.xlu0
        %1051 = vxpose.xlu0.b32.start [1/16] %v721, 128
        %1052 = vxpose.xlu0.b32.cont [2/16] %v722, 128
        %1053 = vxpose.xlu0.b32.cont [3/16] 0.0, 128
        %1054 = vxpose.xlu0.b32.cont [4/16] 0.0, 128
        %1055 = vxpose.xlu0.b32.cont [5/16] 0.0, 128
        %1056 = vxpose.xlu0.b32.cont [6/16] 0.0, 128
        %1057 = vxpose.xlu0.b32.cont [7/16] 0.0, 128
        %1058 = vxpose.xlu0.b32.cont [8/16] 0.0, 128
        %1059 = vxpose.xlu0.b32.cont [9/16] 0.0, 128
        %1060 = vxpose.xlu0.b32.cont [10/16] 0.0, 128
        %1061 = vxpose.xlu0.b32.cont [11/16] 0.0, 128
        %1062 = vxpose.xlu0.b32.cont [12/16] 0.0, 128
        %1063 = vxpose.xlu0.b32.cont [13/16] 0.0, 128
        %1064 = vxpose.xlu0.b32.cont [14/16] 0.0, 128
        %1065 = vxpose.xlu0.b32.cont [15/16] 0.0, 128
        %1066 = vxpose.xlu0.b32.end [16/16] 0.0, 128
        %v1067 = vpop.trf.xlu0
        %v1068 = vpop.trf.xlu0
        %v1069 = vpop.trf.xlu0
        %v1070 = vpop.trf.xlu0
        %v1071 = vpop.trf.xlu0
        %v1072 = vpop.trf.xlu0
        %v1073 = vpop.trf.xlu0
        %v1074 = vpop.trf.xlu0
        %v1075 = vpop.trf.xlu0
        %v1076 = vpop.trf.xlu0
        %v1077 = vpop.trf.xlu0
        %v1078 = vpop.trf.xlu0
        %v1079 = vpop.trf.xlu0
        %v1080 = vpop.trf.xlu0
        %v1081 = vpop.trf.xlu0
        %v1082 = vpop.trf.xlu0
        %1083 = vxpose.xlu0.b32.start [1/16] %v723, 128
        %1084 = vxpose.xlu0.b32.cont [2/16] %v724, 128
        %1085 = vxpose.xlu0.b32.cont [3/16] 0.0, 128
        %1086 = vxpose.xlu0.b32.cont [4/16] 0.0, 128
        %1087 = vxpose.xlu0.b32.cont [5/16] 0.0, 128
        %1088 = vxpose.xlu0.b32.cont [6/16] 0.0, 128
        %1089 = vxpose.xlu0.b32.cont [7/16] 0.0, 128
        %1090 = vxpose.xlu0.b32.cont [8/16] 0.0, 128
        %1091 = vxpose.xlu0.b32.cont [9/16] 0.0, 128
        %1092 = vxpose.xlu0.b32.cont [10/16] 0.0, 128
        %1093 = vxpose.xlu0.b32.cont [11/16] 0.0, 128
        %1094 = vxpose.xlu0.b32.cont [12/16] 0.0, 128
        %1095 = vxpose.xlu0.b32.cont [13/16] 0.0, 128
        %1096 = vxpose.xlu0.b32.cont [14/16] 0.0, 128
        %1097 = vxpose.xlu0.b32.cont [15/16] 0.0, 128
        %1098 = vxpose.xlu0.b32.end [16/16] 0.0, 128
        %v1099 = vpop.trf.xlu0
        %v1100 = vpop.trf.xlu0
        %v1101 = vpop.trf.xlu0
        %v1102 = vpop.trf.xlu0
        %v1103 = vpop.trf.xlu0
        %v1104 = vpop.trf.xlu0
        %v1105 = vpop.trf.xlu0
        %v1106 = vpop.trf.xlu0
        %v1107 = vpop.trf.xlu0
        %v1108 = vpop.trf.xlu0
        %v1109 = vpop.trf.xlu0
        %v1110 = vpop.trf.xlu0
        %v1111 = vpop.trf.xlu0
        %v1112 = vpop.trf.xlu0
        %v1113 = vpop.trf.xlu0
        %v1114 = vpop.trf.xlu0
        %1115 = vxpose.xlu0.b32.start [1/16] %v725, 128
        %1116 = vxpose.xlu0.b32.cont [2/16] %v726, 128
        %1117 = vxpose.xlu0.b32.cont [3/16] 0.0, 128
        %1118 = vxpose.xlu0.b32.cont [4/16] 0.0, 128
        %1119 = vxpose.xlu0.b32.cont [5/16] 0.0, 128
        %1120 = vxpose.xlu0.b32.cont [6/16] 0.0, 128
        %1121 = vxpose.xlu0.b32.cont [7/16] 0.0, 128
        %1122 = vxpose.xlu0.b32.cont [8/16] 0.0, 128
        %1123 = vxpose.xlu0.b32.cont [9/16] 0.0, 128
        %1124 = vxpose.xlu0.b32.cont [10/16] 0.0, 128
        %1125 = vxpose.xlu0.b32.cont [11/16] 0.0, 128
        %1126 = vxpose.xlu0.b32.cont [12/16] 0.0, 128
        %1127 = vxpose.xlu0.b32.cont [13/16] 0.0, 128
        %1128 = vxpose.xlu0.b32.cont [14/16] 0.0, 128
        %1129 = vxpose.xlu0.b32.cont [15/16] 0.0, 128
        %1130 = vxpose.xlu0.b32.end [16/16] 0.0, 128
        %v1131 = vpop.trf.xlu0
        %v1132 = vpop.trf.xlu0
        %v1133 = vpop.trf.xlu0
        %v1134 = vpop.trf.xlu0
        %v1135 = vpop.trf.xlu0
        %v1136 = vpop.trf.xlu0
        %v1137 = vpop.trf.xlu0
        %v1138 = vpop.trf.xlu0
        %v1139 = vpop.trf.xlu0
        %v1140 = vpop.trf.xlu0
        %v1141 = vpop.trf.xlu0
        %v1142 = vpop.trf.xlu0
        %v1143 = vpop.trf.xlu0
        %v1144 = vpop.trf.xlu0
        %v1145 = vpop.trf.xlu0
        %v1146 = vpop.trf.xlu0
        %1147 = vxpose.xlu0.b32.start [1/16] %v727, 128
        %1148 = vxpose.xlu0.b32.cont [2/16] %v728, 128
        %1149 = vxpose.xlu0.b32.cont [3/16] 0.0, 128
        %1150 = vxpose.xlu0.b32.cont [4/16] 0.0, 128
        %1151 = vxpose.xlu0.b32.cont [5/16] 0.0, 128
        %1152 = vxpose.xlu0.b32.cont [6/16] 0.0, 128
        %1153 = vxpose.xlu0.b32.cont [7/16] 0.0, 128
        %1154 = vxpose.xlu0.b32.cont [8/16] 0.0, 128
        %1155 = vxpose.xlu0.b32.cont [9/16] 0.0, 128
        %1156 = vxpose.xlu0.b32.cont [10/16] 0.0, 128
        %1157 = vxpose.xlu0.b32.cont [11/16] 0.0, 128
        %1158 = vxpose.xlu0.b32.cont [12/16] 0.0, 128
        %1159 = vxpose.xlu0.b32.cont [13/16] 0.0, 128
        %1160 = vxpose.xlu0.b32.cont [14/16] 0.0, 128
        %1161 = vxpose.xlu0.b32.cont [15/16] 0.0, 128
        %1162 = vxpose.xlu0.b32.end [16/16] 0.0, 128
        %v1163 = vpop.trf.xlu0
        %v1164 = vpop.trf.xlu0
        %v1165 = vpop.trf.xlu0
        %v1166 = vpop.trf.xlu0
        %v1167 = vpop.trf.xlu0
        %v1168 = vpop.trf.xlu0
        %v1169 = vpop.trf.xlu0
        %v1170 = vpop.trf.xlu0
        %v1171 = vpop.trf.xlu0
        %v1172 = vpop.trf.xlu0
        %v1173 = vpop.trf.xlu0
        %v1174 = vpop.trf.xlu0
        %v1175 = vpop.trf.xlu0
        %v1176 = vpop.trf.xlu0
        %v1177 = vpop.trf.xlu0
        %v1178 = vpop.trf.xlu0
        %1179 = vxpose.xlu0.b32.start [1/16] %v729, 128
        %1180 = vxpose.xlu0.b32.cont [2/16] %v730, 128
        %1181 = vxpose.xlu0.b32.cont [3/16] 0.0, 128
        %1182 = vxpose.xlu0.b32.cont [4/16] 0.0, 128
        %1183 = vxpose.xlu0.b32.cont [5/16] 0.0, 128
        %1184 = vxpose.xlu0.b32.cont [6/16] 0.0, 128
        %1185 = vxpose.xlu0.b32.cont [7/16] 0.0, 128
        %1186 = vxpose.xlu0.b32.cont [8/16] 0.0, 128
        %1187 = vxpose.xlu0.b32.cont [9/16] 0.0, 128
        %1188 = vxpose.xlu0.b32.cont [10/16] 0.0, 128
        %1189 = vxpose.xlu0.b32.cont [11/16] 0.0, 128
        %1190 = vxpose.xlu0.b32.cont [12/16] 0.0, 128
        %1191 = vxpose.xlu0.b32.cont [13/16] 0.0, 128
        %1192 = vxpose.xlu0.b32.cont [14/16] 0.0, 128
        %1193 = vxpose.xlu0.b32.cont [15/16] 0.0, 128
        %1194 = vxpose.xlu0.b32.end [16/16] 0.0, 128
        %v1195 = vpop.trf.xlu0
        %v1196 = vpop.trf.xlu0
        %v1197 = vpop.trf.xlu0
        %v1198 = vpop.trf.xlu0
        %v1199 = vpop.trf.xlu0
        %v1200 = vpop.trf.xlu0
        %v1201 = vpop.trf.xlu0
        %v1202 = vpop.trf.xlu0
        %v1203 = vpop.trf.xlu0
        %v1204 = vpop.trf.xlu0
        %v1205 = vpop.trf.xlu0
        %v1206 = vpop.trf.xlu0
        %v1207 = vpop.trf.xlu0
        %v1208 = vpop.trf.xlu0
        %v1209 = vpop.trf.xlu0
        %v1210 = vpop.trf.xlu0
        %v1211 = vpack.c.bf16 %v779, %v747
        %v1212 = vpack.c.bf16 %v843, %v811
        %v1213 = vpack.c.bf16 %v907, %v875
        %v1214 = vpack.c.bf16 %v971, %v939
        %v1215 = vpack.c.bf16 %v1035, %v1003
        %v1216 = vpack.c.bf16 %v1099, %v1067
        %v1217 = vpack.c.bf16 %v1163, %v1131
        %v1218 = vpack.c.bf16 %v1195, %v1195
        %v1219 = vld [vmem:[%s2] sm:$0xf]
        %v1220 = vld [vmem:[%s2 + $0x4] sm:$0xf]
        %v1223 = vunpack.c.l.b16 %v1219
        %v1224 = vunpack.c.l.b16 %v1220
        %v1225 = vpack.c.b16 %v1224, %v1223
        %v1228 = vsel %vm331, %v1211, 0
        %v1231 = vsel %vm331, %v1212, 0
        %v1234 = vsel %vm331, %v1213, 0
        %v1237 = vsel %vm331, %v1214, 0
        %v1240 = vsel %vm331, %v1215, 0
        %v1243 = vsel %vm331, %v1216, 0
        %v1246 = vsel %vm331, %v1217, 0
        %v1249 = vsel %vm331, %v1218, 0
        %1251 = vmatpush.bf16.msra.mxu0 0
        %1252 = vmatpush.bf16.msra.mxu0 0
        %1253 = vmatpush.bf16.msra.mxu0 0
        %1254 = vmatpush.bf16.msra.mxu0 0
        %1255 = vmatpush.bf16.msra.mxu0 0
        %1256 = vmatpush.bf16.msra.mxu0 0
        %1257 = vmatpush.bf16.msra.mxu0 0
        %1258 = vmatpush.bf16.msra.mxu0 %v1225
        %1259 = vmatmul.bf16.gmra.mxu0 %v1228
        %v1260 = vpop.f32.mrf.mxu0
        %v1261 = vadd.f32 0.0, %v1260
        %v1262 = vpop.f32.mrf.mxu0
        %v1263 = vadd.f32 0.0, %v1262
        %1264 = vmatmul.bf16.gmra.mxu0 %v1231
        %v1265 = vpop.f32.mrf.mxu0
        %v1266 = vadd.f32 0.0, %v1265
        %v1267 = vpop.f32.mrf.mxu0
        %v1268 = vadd.f32 0.0, %v1267
        %1269 = vmatmul.bf16.gmra.mxu0 %v1234
        %v1270 = vpop.f32.mrf.mxu0
        %v1271 = vadd.f32 0.0, %v1270
        %v1272 = vpop.f32.mrf.mxu0
        %v1273 = vadd.f32 0.0, %v1272
        %1274 = vmatmul.bf16.gmra.mxu0 %v1237
        %v1275 = vpop.f32.mrf.mxu0
        %v1276 = vadd.f32 0.0, %v1275
        %v1277 = vpop.f32.mrf.mxu0
        %v1278 = vadd.f32 0.0, %v1277
        %1279 = vmatmul.bf16.gmra.mxu0 %v1240
        %v1280 = vpop.f32.mrf.mxu0
        %v1281 = vadd.f32 0.0, %v1280
        %v1282 = vpop.f32.mrf.mxu0
        %v1283 = vadd.f32 0.0, %v1282
        %1284 = vmatmul.bf16.gmra.mxu0 %v1243
        %v1285 = vpop.f32.mrf.mxu0
        %v1286 = vadd.f32 0.0, %v1285
        %v1287 = vpop.f32.mrf.mxu0
        %v1288 = vadd.f32 0.0, %v1287
        %1289 = vmatmul.bf16.gmra.mxu0 %v1246
        %v1290 = vpop.f32.mrf.mxu0
        %v1291 = vadd.f32 0.0, %v1290
        %v1292 = vpop.f32.mrf.mxu0
        %v1293 = vadd.f32 0.0, %v1292
        %1294 = vmatmul.bf16.gmra.mxu0 %v1249
        %v1295 = vpop.f32.mrf.mxu0
        %v1296 = vadd.f32 0.0, %v1295
        %v1297 = vpop.f32.mrf.mxu0
        %1298 = vdwg.mxu0
        %1314 = vrot.lane.b32.xlu0 %v1261, 120
        %v1315 = vpop.permute.xlu0 %1314
        %1316 = vrot.lane.b32.xlu0 %v1263, 120
        %v1317 = vpop.permute.xlu0 %1316
        %1318 = vrot.lane.b32.xlu0 %v1266, 120
        %v1319 = vpop.permute.xlu0 %1318
        %1320 = vrot.lane.b32.xlu0 %v1268, 120
        %v1321 = vpop.permute.xlu0 %1320
        %1322 = vrot.lane.b32.xlu0 %v1271, 120
        %v1323 = vpop.permute.xlu0 %1322
        %1324 = vrot.lane.b32.xlu0 %v1273, 120
        %v1325 = vpop.permute.xlu0 %1324
        %1326 = vrot.lane.b32.xlu0 %v1276, 120
        %v1327 = vpop.permute.xlu0 %1326
        %1328 = vrot.lane.b32.xlu0 %v1278, 120
        %v1329 = vpop.permute.xlu0 %1328
        %1330 = vrot.lane.b32.xlu0 %v1281, 120
        %v1331 = vpop.permute.xlu0 %1330
        %1332 = vrot.lane.b32.xlu0 %v1283, 120
        %v1333 = vpop.permute.xlu0 %1332
        %1334 = vrot.lane.b32.xlu0 %v1286, 120
        %v1335 = vpop.permute.xlu0 %1334
        %1336 = vrot.lane.b32.xlu0 %v1288, 120
        %v1337 = vpop.permute.xlu0 %1336
        %1338 = vrot.lane.b32.xlu0 %v1291, 120
        %v1339 = vpop.permute.xlu0 %1338
        %1340 = vrot.lane.b32.xlu0 %v1293, 120
        %v1341 = vpop.permute.xlu0 %1340
        %1342 = vrot.lane.b32.xlu0 %v1296, 120
        %v1343 = vpop.permute.xlu0 %1342
        %v1359 = vmax.f32 %v1261, %v1315
        %v1360 = vmax.f32 %v1263, %v1317
        %v1361 = vmax.f32 %v1266, %v1319
        %v1362 = vmax.f32 %v1268, %v1321
        %v1363 = vmax.f32 %v1271, %v1323
        %v1364 = vmax.f32 %v1273, %v1325
        %v1365 = vmax.f32 %v1276, %v1327
        %v1366 = vmax.f32 %v1278, %v1329
        %v1367 = vmax.f32 %v1281, %v1331
        %v1368 = vmax.f32 %v1283, %v1333
        %v1369 = vmax.f32 %v1286, %v1335
        %v1370 = vmax.f32 %v1288, %v1337
        %v1371 = vmax.f32 %v1291, %v1339
        %v1372 = vmax.f32 %v1293, %v1341
        %v1373 = vmax.f32 %v1296, %v1343
        %1374 = vrot.lane.b32.xlu0 %v1261, 112
        %v1375 = vpop.permute.xlu0 %1374
        %1376 = vrot.lane.b32.xlu0 %v1263, 112
        %v1377 = vpop.permute.xlu0 %1376
        %1378 = vrot.lane.b32.xlu0 %v1266, 112
        %v1379 = vpop.permute.xlu0 %1378
        %1380 = vrot.lane.b32.xlu0 %v1268, 112
        %v1381 = vpop.permute.xlu0 %1380
        %1382 = vrot.lane.b32.xlu0 %v1271, 112
        %v1383 = vpop.permute.xlu0 %1382
        %1384 = vrot.lane.b32.xlu0 %v1273, 112
        %v1385 = vpop.permute.xlu0 %1384
        %1386 = vrot.lane.b32.xlu0 %v1276, 112
        %v1387 = vpop.permute.xlu0 %1386
        %1388 = vrot.lane.b32.xlu0 %v1278, 112
        %v1389 = vpop.permute.xlu0 %1388
        %1390 = vrot.lane.b32.xlu0 %v1281, 112
        %v1391 = vpop.permute.xlu0 %1390
        %1392 = vrot.lane.b32.xlu0 %v1283, 112
        %v1393 = vpop.permute.xlu0 %1392
        %1394 = vrot.lane.b32.xlu0 %v1286, 112
        %v1395 = vpop.permute.xlu0 %1394
        %1396 = vrot.lane.b32.xlu0 %v1288, 112
        %v1397 = vpop.permute.xlu0 %1396
        %1398 = vrot.lane.b32.xlu0 %v1291, 112
        %v1399 = vpop.permute.xlu0 %1398
        %1400 = vrot.lane.b32.xlu0 %v1293, 112
        %v1401 = vpop.permute.xlu0 %1400
        %1402 = vrot.lane.b32.xlu0 %v1296, 112
        %v1403 = vpop.permute.xlu0 %1402
        %v1419 = vmax.f32 %v1359, %v1375
        %v1420 = vmax.f32 %v1360, %v1377
        %v1421 = vmax.f32 %v1361, %v1379
        %v1422 = vmax.f32 %v1362, %v1381
        %v1423 = vmax.f32 %v1363, %v1383
        %v1424 = vmax.f32 %v1364, %v1385
        %v1425 = vmax.f32 %v1365, %v1387
        %v1426 = vmax.f32 %v1366, %v1389
        %v1427 = vmax.f32 %v1367, %v1391
        %v1428 = vmax.f32 %v1368, %v1393
        %v1429 = vmax.f32 %v1369, %v1395
        %v1430 = vmax.f32 %v1370, %v1397
        %v1431 = vmax.f32 %v1371, %v1399
        %v1432 = vmax.f32 %v1372, %v1401
        %v1433 = vmax.f32 %v1373, %v1403
        %v1434 = vpack.c.bf16 %v1419, %v1419
        %v1435 = vpack.c.bf16 %v1420, %v1420
        %v1436 = vpack.c.bf16 %v1421, %v1421
        %v1437 = vpack.c.bf16 %v1422, %v1422
        %v1438 = vpack.c.bf16 %v1423, %v1423
        %v1439 = vpack.c.bf16 %v1424, %v1424
        %v1440 = vpack.c.bf16 %v1425, %v1425
        %v1441 = vpack.c.bf16 %v1426, %v1426
        %v1442 = vpack.c.bf16 %v1427, %v1427
        %v1443 = vpack.c.bf16 %v1428, %v1428
        %v1444 = vpack.c.bf16 %v1429, %v1429
        %v1445 = vpack.c.bf16 %v1430, %v1430
        %v1446 = vpack.c.bf16 %v1431, %v1431
        %v1447 = vpack.c.bf16 %v1432, %v1432
        %v1448 = vpack.c.bf16 %v1433, %v1433
        %v1454 = vunpack.c.l.b16 %v1439
        %v1455 = vunpack.c.l.b16 %v1440
        %v1456 = vunpack.c.l.b16 %v1441
        %v1457 = vunpack.c.l.b16 %v1442
        %v1458 = vunpack.c.l.b16 %v1443
        %v1459 = vpack.c.b16 %v1454, %v1454
        %v1460 = vpack.c.b16 %v1455, %v1455
        %v1461 = vpack.c.b16 %v1456, %v1456
        %v1462 = vpack.c.b16 %v1457, %v1457
        %v1463 = vpack.c.b16 %v1458, %v1458
        %1464 = vrot.lane.b32.xlu0 %v1459, 8
        %v1465 = vpop.permute.xlu0 %1464
        %1466 = vrot.lane.b32.xlu0 %v1460, 8
        %v1467 = vpop.permute.xlu0 %1466
        %1468 = vrot.lane.b32.xlu0 %v1461, 8
        %v1469 = vpop.permute.xlu0 %1468
        %1470 = vrot.lane.b32.xlu0 %v1462, 8
        %v1471 = vpop.permute.xlu0 %1470
        %1472 = vrot.lane.b32.xlu0 %v1463, 8
        %v1473 = vpop.permute.xlu0 %1472
        %v1479 = vunpack.c.l.b16 %v1444
        %v1480 = vunpack.c.l.b16 %v1445
        %v1481 = vunpack.c.l.b16 %v1446
        %v1482 = vunpack.c.l.b16 %v1447
        %v1483 = vunpack.c.l.b16 %v1448
        %v1484 = vpack.c.b16 %v1479, %v1479
        %v1485 = vpack.c.b16 %v1480, %v1480
        %v1486 = vpack.c.b16 %v1481, %v1481
        %v1487 = vpack.c.b16 %v1482, %v1482
        %v1488 = vpack.c.b16 %v1483, %v1483
        %1489 = vrot.lane.b32.xlu0 %v1484, 16
        %v1490 = vpop.permute.xlu0 %1489
        %1491 = vrot.lane.b32.xlu0 %v1485, 16
        %v1492 = vpop.permute.xlu0 %1491
        %1493 = vrot.lane.b32.xlu0 %v1486, 16
        %v1494 = vpop.permute.xlu0 %1493
        %1495 = vrot.lane.b32.xlu0 %v1487, 16
        %v1496 = vpop.permute.xlu0 %1495
        %1497 = vrot.lane.b32.xlu0 %v1488, 16
        %v1498 = vpop.permute.xlu0 %1497
        %vm1499 = vcmask 64512
        %v1502 = vsel %vm1499, %v1434, %v1465
        %v1505 = vsel %vm1499, %v1435, %v1467
        %v1508 = vsel %vm1499, %v1436, %v1469
        %v1511 = vsel %vm1499, %v1437, %v1471
        %v1514 = vsel %vm1499, %v1438, %v1473
        %v1516 = vsel %vm331, %v1502, %v1490
        %v1518 = vsel %vm331, %v1505, %v1492
        %v1520 = vsel %vm331, %v1508, %v1494
        %v1522 = vsel %vm331, %v1511, %v1496
        %v1524 = vsel %vm331, %v1514, %v1498
        %v1530 = vrot.slane %v1516, 7
        %v1531 = vrot.slane %v1518, 7
        %v1532 = vrot.slane %v1520, 7
        %v1533 = vrot.slane %v1522, 7
        %v1534 = vrot.slane %v1524, 7
        %vm1535 = vcmask 1040384
        %v1538 = vsel %vm1535, 0, %v1530
        %v1540 = vsel %vm1535, 0, %v1531
        %v1542 = vsel %vm1535, 0, %v1532
        %v1544 = vsel %vm1535, 0, %v1533
        %v1546 = vsel %vm1535, 0, %v1534
        %vm1547 = vcmask 1044480
        %v1548 = vsel %vm1547, %v1538, 0
        %v1549 = vsel %vm1547, %v1540, 0
        %v1550 = vsel %vm1547, %v1542, 0
        %v1551 = vsel %vm1547, %v1544, 0
        %v1552 = vsel %vm1547, %v1546, 0
        %v1553 = vld [vmem:[%s6] sm:$0x1]
        %v1555 = vperm.slane %v1553, 0
        %v1557 = vld [vmem:[%s3] sm:$0xf]
        %v1558 = vld [vmem:[%s3 + $0x4] sm:$0xf]
        %v1559 = vld [vmem:[%s3 + $0x8] sm:$0xf]
        %v1565 = vunpack.c.l.b16 %v1548
        %v1566 = vunpack.c.l.b16 %v1549
        %v1567 = vunpack.c.l.b16 %v1550
        %v1568 = vunpack.c.l.b16 %v1551
        %v1569 = vunpack.c.l.b16 %v1552
        %v1570 = vpack.c.b16 %v1566, %v1565
        %v1571 = vpack.c.b16 %v1568, %v1567
        %v1572 = vpack.c.b16 %v1569, %v1569
        %v1576 = vunpack.c.l.b16 %v1557
        %v1577 = vunpack.c.l.b16 %v1558
        %v1578 = vunpack.c.l.b16 %v1559
        %v1579 = vpack.c.b16 %v1577, %v1576
        %v1580 = vpack.c.b16 %v1578, %v1578
        %vm1582 = vcmask 195584
        %v1584 = vsel %vm1582, %v1570, 0
        %v1587 = vsel %vm1582, %v1571, 0
        %v1590 = vsel %vm1582, %v1572, 0
        %vm1592 = vcmask 1043456
        %v1594 = vsel %vm1592, %v1580, 0
        %1596 = vmatpush.bf16.msra.mxu0 0
        %1597 = vmatpush.bf16.msra.mxu0 0
        %1598 = vmatpush.bf16.msra.mxu0 0
        %1599 = vmatpush.bf16.msra.mxu0 0
        %1600 = vmatpush.bf16.msra.mxu0 0
        %1601 = vmatpush.bf16.msra.mxu0 0
        %1602 = vmatpush.bf16.msra.mxu0 %v1594
        %1603 = vmatpush.bf16.msra.mxu0 %v1579
        %1604 = vmatmul.bf16.gmra.mxu0 %v1584
        %v1605 = vpop.f32.mrf.mxu0
        %v1606 = vadd.f32 0.0, %v1605
        %v1607 = vpop.f32.mrf.mxu0
        %v1608 = vadd.f32 0.0, %v1607
        %1609 = vmatmul.bf16.gmra.mxu0 %v1587
        %v1610 = vpop.f32.mrf.mxu0
        %v1611 = vadd.f32 0.0, %v1610
        %v1612 = vpop.f32.mrf.mxu0
        %v1613 = vadd.f32 0.0, %v1612
        %1614 = vmatmul.bf16.gmra.mxu0 %v1590
        %v1615 = vpop.f32.mrf.mxu0
        %v1616 = vadd.f32 0.0, %v1615
        %v1617 = vpop.f32.mrf.mxu0
        %1618 = vdwg.mxu0
        %v1619 = vadd.f32 %v1555, %v1606
        %v1620 = vadd.f32 %v1555, %v1608
        %v1621 = vadd.f32 %v1555, %v1611
        %v1622 = vadd.f32 %v1555, %v1613
        %v1623 = vadd.f32 %v1555, %v1616
        %v1624 = vunpack.c.h.b16 %v1548
        %v1625 = vunpack.c.h.b16 %v1549
        %v1626 = vunpack.c.h.b16 %v1550
        %v1627 = vunpack.c.h.b16 %v1551
        %v1628 = vunpack.c.h.b16 %v1552
        %v1629 = vpack.c.b16 %v1565, %v1565
        %v1630 = vpack.c.b16 %v1624, %v1624
        %v1631 = vpack.c.b16 %v1566, %v1566
        %v1632 = vpack.c.b16 %v1625, %v1625
        %v1633 = vpack.c.b16 %v1567, %v1567
        %v1634 = vpack.c.b16 %v1626, %v1626
        %v1635 = vpack.c.b16 %v1568, %v1568
        %v1636 = vpack.c.b16 %v1627, %v1627
        %v1637 = vpack.c.b16 %v1628, %v1628
        %vm1638 = vsmask.f32 3328
        %vm1639 = vsmask.f32 7440
        %vm1640 = vmor %vm1638, %vm1639
        %v1642 = vshrl.u32 %v1629, 16
        %v1644 = vrot.slane %v1642, 4
        %v1645 = vshll.u32 %v1629, 16
        %v1647 = vrot.slane %v1645, 5
        %v1648 = vor.u32 %v1644, %v1647
        %v1649 = vrot.slane %v1648, 4
        %v1651 = vshll.u32 %v1630, 16
        %v1653 = vrot.slane %v1651, 5
        %v1654 = vsel %vm1640, %v1649, %v1653
        %v1656 = vshrl.u32 %v1631, 16
        %v1658 = vrot.slane %v1656, 4
        %v1659 = vshll.u32 %v1631, 16
        %v1661 = vrot.slane %v1659, 5
        %v1662 = vor.u32 %v1658, %v1661
        %v1663 = vrot.slane %v1662, 4
        %v1665 = vshll.u32 %v1632, 16
        %v1667 = vrot.slane %v1665, 5
        %v1668 = vsel %vm1640, %v1663, %v1667
        %v1670 = vshrl.u32 %v1633, 16
        %v1672 = vrot.slane %v1670, 4
        %v1673 = vshll.u32 %v1633, 16
        %v1675 = vrot.slane %v1673, 5
        %v1676 = vor.u32 %v1672, %v1675
        %v1677 = vrot.slane %v1676, 4
        %v1679 = vshll.u32 %v1634, 16
        %v1681 = vrot.slane %v1679, 5
        %v1682 = vsel %vm1640, %v1677, %v1681
        %v1684 = vshrl.u32 %v1635, 16
        %v1686 = vrot.slane %v1684, 4
        %v1687 = vshll.u32 %v1635, 16
        %v1689 = vrot.slane %v1687, 5
        %v1690 = vor.u32 %v1686, %v1689
        %v1691 = vrot.slane %v1690, 4
        %v1693 = vshll.u32 %v1636, 16
        %v1695 = vrot.slane %v1693, 5
        %v1696 = vsel %vm1640, %v1691, %v1695
        %v1697 = vshrl.u32 %v1572, 16
        %v1699 = vrot.slane %v1697, 4
        %v1700 = vshll.u32 %v1572, 16
        %v1702 = vrot.slane %v1700, 5
        %v1703 = vor.u32 %v1699, %v1702
        %v1704 = vrot.slane %v1703, 4
        %v1706 = vshll.u32 %v1637, 16
        %v1708 = vrot.slane %v1706, 5
        %v1709 = vsel %vm1640, %v1704, %v1708
        %s1710 = scalar_lea.vmem %s3, 12
        %v1711 = vld [vmem:[%s1710] sm:$0xf]
        %v1712 = vld [vmem:[%s1710 + $0x4] sm:$0xf]
        %v1713 = vld [vmem:[%s1710 + $0x8] sm:$0xf]
        %v1714 = vunpack.c.l.b16 %v1654
        %v1715 = vunpack.c.l.b16 %v1668
        %v1716 = vunpack.c.l.b16 %v1682
        %v1717 = vunpack.c.l.b16 %v1696
        %v1718 = vunpack.c.l.b16 %v1709
        %v1719 = vpack.c.b16 %v1715, %v1714
        %v1720 = vpack.c.b16 %v1717, %v1716
        %v1721 = vpack.c.b16 %v1718, %v1718
        %v1725 = vunpack.c.l.b16 %v1711
        %v1726 = vunpack.c.l.b16 %v1712
        %v1727 = vunpack.c.l.b16 %v1713
        %v1728 = vpack.c.b16 %v1726, %v1725
        %v1729 = vpack.c.b16 %v1727, %v1727
        %v1732 = vsel %vm1582, %v1719, 0
        %v1735 = vsel %vm1582, %v1720, 0
        %v1738 = vsel %vm1582, %v1721, 0
        %v1741 = vsel %vm1592, %v1729, 0
        %1743 = vmatpush.bf16.msra.mxu0 0
        %1744 = vmatpush.bf16.msra.mxu0 0
        %1745 = vmatpush.bf16.msra.mxu0 0
        %1746 = vmatpush.bf16.msra.mxu0 0
        %1747 = vmatpush.bf16.msra.mxu0 0
        %1748 = vmatpush.bf16.msra.mxu0 0
        %1749 = vmatpush.bf16.msra.mxu0 %v1741
        %1750 = vmatpush.bf16.msra.mxu0 %v1728
        %1751 = vmatmul.bf16.gmra.mxu0 %v1732
        %v1752 = vpop.f32.mrf.mxu0
        %v1753 = vadd.f32 0.0, %v1752
        %v1754 = vpop.f32.mrf.mxu0
        %v1755 = vadd.f32 0.0, %v1754
        %1756 = vmatmul.bf16.gmra.mxu0 %v1735
        %v1757 = vpop.f32.mrf.mxu0
        %v1758 = vadd.f32 0.0, %v1757
        %v1759 = vpop.f32.mrf.mxu0
        %v1760 = vadd.f32 0.0, %v1759
        %1761 = vmatmul.bf16.gmra.mxu0 %v1738
        %v1762 = vpop.f32.mrf.mxu0
        %v1763 = vadd.f32 0.0, %v1762
        %v1764 = vpop.f32.mrf.mxu0
        %1765 = vdwg.mxu0
        %v1766 = vadd.f32 %v1619, %v1753
        %v1767 = vadd.f32 %v1620, %v1755
        %v1768 = vadd.f32 %v1621, %v1758
        %v1769 = vadd.f32 %v1622, %v1760
        %v1770 = vadd.f32 %v1623, %v1763
        %vm1771 = vcmask 1042432
        %vm1772 = vcmask 1046532
        %vm1773 = vmor %vm1771, %vm1772
        %v1774 = vrot.slane %v1629, 5
        %v1775 = vrot.slane %v1774, 4
        %v1776 = vrot.slane %v1630, 5
        %v1777 = vsel %vm1773, %v1775, %v1776
        %v1778 = vrot.slane %v1631, 5
        %v1779 = vrot.slane %v1778, 4
        %v1780 = vrot.slane %v1632, 5
        %v1781 = vsel %vm1773, %v1779, %v1780
        %v1782 = vrot.slane %v1633, 5
        %v1783 = vrot.slane %v1782, 4
        %v1784 = vrot.slane %v1634, 5
        %v1785 = vsel %vm1773, %v1783, %v1784
        %v1786 = vrot.slane %v1635, 5
        %v1787 = vrot.slane %v1786, 4
        %v1788 = vrot.slane %v1636, 5
        %v1789 = vsel %vm1773, %v1787, %v1788
        %v1790 = vrot.slane %v1572, 5
        %v1791 = vrot.slane %v1790, 4
        %v1792 = vrot.slane %v1637, 5
        %v1793 = vsel %vm1773, %v1791, %v1792
        %s1794 = scalar_lea.vmem %s3, 24
        %v1795 = vld [vmem:[%s1794] sm:$0xf]
        %v1796 = vld [vmem:[%s1794 + $0x4] sm:$0xf]
        %v1797 = vld [vmem:[%s1794 + $0x8] sm:$0xf]
        %v1798 = vunpack.c.l.b16 %v1777
        %v1799 = vunpack.c.l.b16 %v1781
        %v1800 = vunpack.c.l.b16 %v1785
        %v1801 = vunpack.c.l.b16 %v1789
        %v1802 = vunpack.c.l.b16 %v1793
        %v1803 = vpack.c.b16 %v1799, %v1798
        %v1804 = vpack.c.b16 %v1801, %v1800
        %v1805 = vpack.c.b16 %v1802, %v1802
        %v1809 = vunpack.c.l.b16 %v1795
        %v1810 = vunpack.c.l.b16 %v1796
        %v1811 = vunpack.c.l.b16 %v1797
        %v1812 = vpack.c.b16 %v1810, %v1809
        %v1813 = vpack.c.b16 %v1811, %v1811
        %v1816 = vsel %vm1582, %v1803, 0
        %v1819 = vsel %vm1582, %v1804, 0
        %v1822 = vsel %vm1582, %v1805, 0
        %v1825 = vsel %vm1592, %v1813, 0
        %1827 = vmatpush.bf16.msra.mxu0 0
        %1828 = vmatpush.bf16.msra.mxu0 0
        %1829 = vmatpush.bf16.msra.mxu0 0
        %1830 = vmatpush.bf16.msra.mxu0 0
        %1831 = vmatpush.bf16.msra.mxu0 0
        %1832 = vmatpush.bf16.msra.mxu0 0
        %1833 = vmatpush.bf16.msra.mxu0 %v1825
        %1834 = vmatpush.bf16.msra.mxu0 %v1812
        %1835 = vmatmul.bf16.gmra.mxu0 %v1816
        %v1836 = vpop.f32.mrf.mxu0
        %v1837 = vadd.f32 0.0, %v1836
        %v1838 = vpop.f32.mrf.mxu0
        %v1839 = vadd.f32 0.0, %v1838
        %1840 = vmatmul.bf16.gmra.mxu0 %v1819
        %v1841 = vpop.f32.mrf.mxu0
        %v1842 = vadd.f32 0.0, %v1841
        %v1843 = vpop.f32.mrf.mxu0
        %v1844 = vadd.f32 0.0, %v1843
        %1845 = vmatmul.bf16.gmra.mxu0 %v1822
        %v1846 = vpop.f32.mrf.mxu0
        %v1847 = vadd.f32 0.0, %v1846
        %v1848 = vpop.f32.mrf.mxu0
        %1849 = vdwg.mxu0
        %v1850 = vadd.f32 %v1766, %v1837
        %v1851 = vadd.f32 %v1767, %v1839
        %v1852 = vadd.f32 %v1768, %v1842
        %v1853 = vadd.f32 %v1769, %v1844
        %v1854 = vadd.f32 %v1770, %v1847
        %vm1855 = vsmask.f32 2304
        %vm1856 = vsmask.f32 6416
        %vm1857 = vmor %vm1855, %vm1856
        %v1858 = vrot.slane %v1642, 5
        %v1859 = vrot.slane %v1645, 6
        %v1860 = vor.u32 %v1858, %v1859
        %v1861 = vrot.slane %v1860, 4
        %v1862 = vshrl.u32 %v1630, 16
        %v1864 = vrot.slane %v1862, 5
        %v1865 = vrot.slane %v1651, 6
        %v1866 = vor.u32 %v1864, %v1865
        %v1867 = vsel %vm1857, %v1861, %v1866
        %v1868 = vrot.slane %v1656, 5
        %v1869 = vrot.slane %v1659, 6
        %v1870 = vor.u32 %v1868, %v1869
        %v1871 = vrot.slane %v1870, 4
        %v1872 = vshrl.u32 %v1632, 16
        %v1874 = vrot.slane %v1872, 5
        %v1875 = vrot.slane %v1665, 6
        %v1876 = vor.u32 %v1874, %v1875
        %v1877 = vsel %vm1857, %v1871, %v1876
        %v1878 = vrot.slane %v1670, 5
        %v1879 = vrot.slane %v1673, 6
        %v1880 = vor.u32 %v1878, %v1879
        %v1881 = vrot.slane %v1880, 4
        %v1882 = vshrl.u32 %v1634, 16
        %v1884 = vrot.slane %v1882, 5
        %v1885 = vrot.slane %v1679, 6
        %v1886 = vor.u32 %v1884, %v1885
        %v1887 = vsel %vm1857, %v1881, %v1886
        %v1888 = vrot.slane %v1684, 5
        %v1889 = vrot.slane %v1687, 6
        %v1890 = vor.u32 %v1888, %v1889
        %v1891 = vrot.slane %v1890, 4
        %v1892 = vshrl.u32 %v1636, 16
        %v1894 = vrot.slane %v1892, 5
        %v1895 = vrot.slane %v1693, 6
        %v1896 = vor.u32 %v1894, %v1895
        %v1897 = vsel %vm1857, %v1891, %v1896
        %v1898 = vrot.slane %v1697, 5
        %v1899 = vrot.slane %v1700, 6
        %v1900 = vor.u32 %v1898, %v1899
        %v1901 = vrot.slane %v1900, 4
        %v1902 = vshrl.u32 %v1637, 16
        %v1904 = vrot.slane %v1902, 5
        %v1905 = vrot.slane %v1706, 6
        %v1906 = vor.u32 %v1904, %v1905
        %v1907 = vsel %vm1857, %v1901, %v1906
        %s1908 = scalar_lea.vmem %s3, 36
        %v1909 = vld [vmem:[%s1908] sm:$0xf]
        %v1910 = vld [vmem:[%s1908 + $0x4] sm:$0xf]
        %v1911 = vld [vmem:[%s1908 + $0x8] sm:$0xf]
        %v1912 = vunpack.c.l.b16 %v1867
        %v1913 = vunpack.c.l.b16 %v1877
        %v1914 = vunpack.c.l.b16 %v1887
        %v1915 = vunpack.c.l.b16 %v1897
        %v1916 = vunpack.c.l.b16 %v1907
        %v1917 = vpack.c.b16 %v1913, %v1912
        %v1918 = vpack.c.b16 %v1915, %v1914
        %v1919 = vpack.c.b16 %v1916, %v1916
        %v1923 = vunpack.c.l.b16 %v1909
        %v1924 = vunpack.c.l.b16 %v1910
        %v1925 = vunpack.c.l.b16 %v1911
        %v1926 = vpack.c.b16 %v1924, %v1923
        %v1927 = vpack.c.b16 %v1925, %v1925
        %v1930 = vsel %vm1582, %v1917, 0
        %v1933 = vsel %vm1582, %v1918, 0
        %v1936 = vsel %vm1582, %v1919, 0
        %v1939 = vsel %vm1592, %v1927, 0
        %1941 = vmatpush.bf16.msra.mxu0 0
        %1942 = vmatpush.bf16.msra.mxu0 0
        %1943 = vmatpush.bf16.msra.mxu0 0
        %1944 = vmatpush.bf16.msra.mxu0 0
        %1945 = vmatpush.bf16.msra.mxu0 0
        %1946 = vmatpush.bf16.msra.mxu0 0
        %1947 = vmatpush.bf16.msra.mxu0 %v1939
        %1948 = vmatpush.bf16.msra.mxu0 %v1926
        %1949 = vmatmul.bf16.gmra.mxu0 %v1930
        %v1950 = vpop.f32.mrf.mxu0
        %v1951 = vadd.f32 0.0, %v1950
        %v1952 = vpop.f32.mrf.mxu0
        %v1953 = vadd.f32 0.0, %v1952
        %1954 = vmatmul.bf16.gmra.mxu0 %v1933
        %v1955 = vpop.f32.mrf.mxu0
        %v1956 = vadd.f32 0.0, %v1955
        %v1957 = vpop.f32.mrf.mxu0
        %v1958 = vadd.f32 0.0, %v1957
        %1959 = vmatmul.bf16.gmra.mxu0 %v1936
        %v1960 = vpop.f32.mrf.mxu0
        %v1961 = vadd.f32 0.0, %v1960
        %v1962 = vpop.f32.mrf.mxu0
        %1963 = vdwg.mxu0
        %v1964 = vadd.f32 %v1850, %v1951
        %v1965 = vadd.f32 %v1851, %v1953
        %v1966 = vadd.f32 %v1852, %v1956
        %v1967 = vadd.f32 %v1853, %v1958
        %v1968 = vadd.f32 %v1854, %v1961
        %vm1969 = vcmask 1041408
        %vm1970 = vcmask 1045508
        %vm1971 = vmor %vm1969, %vm1970
        %v1972 = vrot.slane %v1629, 6
        %v1973 = vrot.slane %v1972, 4
        %v1974 = vrot.slane %v1630, 6
        %v1975 = vsel %vm1971, %v1973, %v1974
        %v1976 = vrot.slane %v1631, 6
        %v1977 = vrot.slane %v1976, 4
        %v1978 = vrot.slane %v1632, 6
        %v1979 = vsel %vm1971, %v1977, %v1978
        %v1980 = vrot.slane %v1633, 6
        %v1981 = vrot.slane %v1980, 4
        %v1982 = vrot.slane %v1634, 6
        %v1983 = vsel %vm1971, %v1981, %v1982
        %v1984 = vrot.slane %v1635, 6
        %v1985 = vrot.slane %v1984, 4
        %v1986 = vrot.slane %v1636, 6
        %v1987 = vsel %vm1971, %v1985, %v1986
        %v1988 = vrot.slane %v1572, 6
        %v1989 = vrot.slane %v1988, 4
        %v1990 = vrot.slane %v1637, 6
        %v1991 = vsel %vm1971, %v1989, %v1990
        %s1992 = scalar_lea.vmem %s3, 48
        %v1993 = vld [vmem:[%s1992] sm:$0xf]
        %v1994 = vld [vmem:[%s1992 + $0x4] sm:$0xf]
        %v1995 = vld [vmem:[%s1992 + $0x8] sm:$0xf]
        %v1996 = vunpack.c.l.b16 %v1975
        %v1997 = vunpack.c.l.b16 %v1979
        %v1998 = vunpack.c.l.b16 %v1983
        %v1999 = vunpack.c.l.b16 %v1987
        %v2000 = vunpack.c.l.b16 %v1991
        %v2001 = vpack.c.b16 %v1997, %v1996
        %v2002 = vpack.c.b16 %v1999, %v1998
        %v2003 = vpack.c.b16 %v2000, %v2000
        %v2007 = vunpack.c.l.b16 %v1993
        %v2008 = vunpack.c.l.b16 %v1994
        %v2009 = vunpack.c.l.b16 %v1995
        %v2010 = vpack.c.b16 %v2008, %v2007
        %v2011 = vpack.c.b16 %v2009, %v2009
        %v2014 = vsel %vm1582, %v2001, 0
        %v2017 = vsel %vm1582, %v2002, 0
        %v2020 = vsel %vm1582, %v2003, 0
        %v2023 = vsel %vm1592, %v2011, 0
        %2025 = vmatpush.bf16.msra.mxu0 0
        %2026 = vmatpush.bf16.msra.mxu0 0
        %2027 = vmatpush.bf16.msra.mxu0 0
        %2028 = vmatpush.bf16.msra.mxu0 0
        %2029 = vmatpush.bf16.msra.mxu0 0
        %2030 = vmatpush.bf16.msra.mxu0 0
        %2031 = vmatpush.bf16.msra.mxu0 %v2023
        %2032 = vmatpush.bf16.msra.mxu0 %v2010
        %2033 = vmatmul.bf16.gmra.mxu0 %v2014
        %v2034 = vpop.f32.mrf.mxu0
        %v2035 = vadd.f32 0.0, %v2034
        %v2036 = vpop.f32.mrf.mxu0
        %v2037 = vadd.f32 0.0, %v2036
        %2038 = vmatmul.bf16.gmra.mxu0 %v2017
        %v2039 = vpop.f32.mrf.mxu0
        %v2040 = vadd.f32 0.0, %v2039
        %v2041 = vpop.f32.mrf.mxu0
        %v2042 = vadd.f32 0.0, %v2041
        %2043 = vmatmul.bf16.gmra.mxu0 %v2020
        %v2044 = vpop.f32.mrf.mxu0
        %v2045 = vadd.f32 0.0, %v2044
        %v2046 = vpop.f32.mrf.mxu0
        %2047 = vdwg.mxu0
        %v2048 = vadd.f32 %v1964, %v2035
        %v2049 = vadd.f32 %v1965, %v2037
        %v2050 = vadd.f32 %v1966, %v2040
        %v2051 = vadd.f32 %v1967, %v2042
        %v2052 = vadd.f32 %v1968, %v2045
        %2058 = vrot.lane.b32.xlu0 %v2048, 120
        %v2059 = vpop.permute.xlu0 %2058
        %2060 = vrot.lane.b32.xlu0 %v2049, 120
        %v2061 = vpop.permute.xlu0 %2060
        %2062 = vrot.lane.b32.xlu0 %v2050, 120
        %v2063 = vpop.permute.xlu0 %2062
        %2064 = vrot.lane.b32.xlu0 %v2051, 120
        %v2065 = vpop.permute.xlu0 %2064
        %2066 = vrot.lane.b32.xlu0 %v2052, 120
        %v2067 = vpop.permute.xlu0 %2066
        %2073 = vrot.lane.b32.xlu0 %v2048, 112
        %v2074 = vpop.permute.xlu0 %2073
        %2075 = vrot.lane.b32.xlu0 %v2049, 112
        %v2076 = vpop.permute.xlu0 %2075
        %2077 = vrot.lane.b32.xlu0 %v2050, 112
        %v2078 = vpop.permute.xlu0 %2077
        %2079 = vrot.lane.b32.xlu0 %v2051, 112
        %v2080 = vpop.permute.xlu0 %2079
        %2081 = vrot.lane.b32.xlu0 %v2052, 112
        %v2082 = vpop.permute.xlu0 %2081
        %v2088 = vpack.c.bf16 %v2049, %v2048
        %v2089 = vpack.c.bf16 %v2051, %v2050
        %v2090 = vpack.c.bf16 %v2059, %v2052
        %v2091 = vpack.c.bf16 %v2063, %v2061
        %v2092 = vpack.c.bf16 %v2067, %v2065
        %v2093 = vpack.c.bf16 %v2076, %v2074
        %v2094 = vpack.c.bf16 %v2080, %v2078
        %v2095 = vpack.c.bf16 %v2082, %v2082
        %v2096 = vld [vmem:[%s4] sm:$0xf]
        %v2098 = vsel %vm1499, %v2088, 0
        %v2101 = vsel %vm1499, %v2089, 0
        %v2104 = vsel %vm1499, %v2090, 0
        %v2107 = vsel %vm1499, %v2091, 0
        %v2110 = vsel %vm1499, %v2092, 0
        %v2113 = vsel %vm1499, %v2093, 0
        %v2116 = vsel %vm1499, %v2094, 0
        %v2119 = vsel %vm1499, %v2095, 0
        %v2122 = vsel %vm1592, %v2096, 0
        %2124 = vmatpush.bf16.msra.mxu0 0
        %2125 = vmatpush.bf16.msra.mxu0 0
        %2126 = vmatpush.bf16.msra.mxu0 0
        %2127 = vmatpush.bf16.msra.mxu0 0
        %2128 = vmatpush.bf16.msra.mxu0 0
        %2129 = vmatpush.bf16.msra.mxu0 0
        %2130 = vmatpush.bf16.msra.mxu0 0
        %2131 = vmatpush.bf16.msra.mxu0 %v2122
        %2132 = vmatmul.bf16.gmra.mxu0 %v2098
        %v2133 = vpop.f32.mrf.mxu0
        %v2134 = vadd.f32 0.0, %v2133
        %v2135 = vpop.f32.mrf.mxu0
        %v2136 = vadd.f32 0.0, %v2135
        %2137 = vmatmul.bf16.gmra.mxu0 %v2101
        %v2138 = vpop.f32.mrf.mxu0
        %v2139 = vadd.f32 0.0, %v2138
        %v2140 = vpop.f32.mrf.mxu0
        %v2141 = vadd.f32 0.0, %v2140
        %2142 = vmatmul.bf16.gmra.mxu0 %v2104
        %v2143 = vpop.f32.mrf.mxu0
        %v2144 = vadd.f32 0.0, %v2143
        %v2145 = vpop.f32.mrf.mxu0
        %v2146 = vadd.f32 0.0, %v2145
        %2147 = vmatmul.bf16.gmra.mxu0 %v2107
        %v2148 = vpop.f32.mrf.mxu0
        %v2149 = vadd.f32 0.0, %v2148
        %v2150 = vpop.f32.mrf.mxu0
        %v2151 = vadd.f32 0.0, %v2150
        %2152 = vmatmul.bf16.gmra.mxu0 %v2110
        %v2153 = vpop.f32.mrf.mxu0
        %v2154 = vadd.f32 0.0, %v2153
        %v2155 = vpop.f32.mrf.mxu0
        %v2156 = vadd.f32 0.0, %v2155
        %2157 = vmatmul.bf16.gmra.mxu0 %v2113
        %v2158 = vpop.f32.mrf.mxu0
        %v2159 = vadd.f32 0.0, %v2158
        %v2160 = vpop.f32.mrf.mxu0
        %v2161 = vadd.f32 0.0, %v2160
        %2162 = vmatmul.bf16.gmra.mxu0 %v2116
        %v2163 = vpop.f32.mrf.mxu0
        %v2164 = vadd.f32 0.0, %v2163
        %v2165 = vpop.f32.mrf.mxu0
        %v2166 = vadd.f32 0.0, %v2165
        %2167 = vmatmul.bf16.gmra.mxu0 %v2119
        %v2168 = vpop.f32.mrf.mxu0
        %v2169 = vadd.f32 0.0, %v2168
        %v2170 = vpop.f32.mrf.mxu0
        %2171 = vdwg.mxu0
        %2172 = vxpose.xlu0.b32.start [1/16] %v2134, 128
        %2173 = vxpose.xlu0.b32.cont [2/16] 0.0, 128
        %2174 = vxpose.xlu0.b32.cont [3/16] 0.0, 128
        %2175 = vxpose.xlu0.b32.cont [4/16] 0.0, 128
        %2176 = vxpose.xlu0.b32.cont [5/16] 0.0, 128
        %2177 = vxpose.xlu0.b32.cont [6/16] 0.0, 128
        %2178 = vxpose.xlu0.b32.cont [7/16] 0.0, 128
        %2179 = vxpose.xlu0.b32.cont [8/16] 0.0, 128
        %2180 = vxpose.xlu0.b32.cont [9/16] 0.0, 128
        %2181 = vxpose.xlu0.b32.cont [10/16] 0.0, 128
        %2182 = vxpose.xlu0.b32.cont [11/16] 0.0, 128
        %2183 = vxpose.xlu0.b32.cont [12/16] 0.0, 128
        %2184 = vxpose.xlu0.b32.cont [13/16] 0.0, 128
        %2185 = vxpose.xlu0.b32.cont [14/16] 0.0, 128
        %2186 = vxpose.xlu0.b32.cont [15/16] 0.0, 128
        %2187 = vxpose.xlu0.b32.end [16/16] 0.0, 128
        %v2188 = vpop.trf.xlu0
        %v2189 = vpop.trf.xlu0
        %v2190 = vpop.trf.xlu0
        %v2191 = vpop.trf.xlu0
        %v2192 = vpop.trf.xlu0
        %v2193 = vpop.trf.xlu0
        %v2194 = vpop.trf.xlu0
        %v2195 = vpop.trf.xlu0
        %v2196 = vpop.trf.xlu0
        %v2197 = vpop.trf.xlu0
        %v2198 = vpop.trf.xlu0
        %v2199 = vpop.trf.xlu0
        %v2200 = vpop.trf.xlu0
        %v2201 = vpop.trf.xlu0
        %v2202 = vpop.trf.xlu0
        %v2203 = vpop.trf.xlu0
        %2204 = vxpose.xlu0.b32.start [1/16] %v2136, 128
        %2205 = vxpose.xlu0.b32.cont [2/16] 0.0, 128
        %2206 = vxpose.xlu0.b32.cont [3/16] 0.0, 128
        %2207 = vxpose.xlu0.b32.cont [4/16] 0.0, 128
        %2208 = vxpose.xlu0.b32.cont [5/16] 0.0, 128
        %2209 = vxpose.xlu0.b32.cont [6/16] 0.0, 128
        %2210 = vxpose.xlu0.b32.cont [7/16] 0.0, 128
        %2211 = vxpose.xlu0.b32.cont [8/16] 0.0, 128
        %2212 = vxpose.xlu0.b32.cont [9/16] 0.0, 128
        %2213 = vxpose.xlu0.b32.cont [10/16] 0.0, 128
        %2214 = vxpose.xlu0.b32.cont [11/16] 0.0, 128
        %2215 = vxpose.xlu0.b32.cont [12/16] 0.0, 128
        %2216 = vxpose.xlu0.b32.cont [13/16] 0.0, 128
        %2217 = vxpose.xlu0.b32.cont [14/16] 0.0, 128
        %2218 = vxpose.xlu0.b32.cont [15/16] 0.0, 128
        %2219 = vxpose.xlu0.b32.end [16/16] 0.0, 128
        %v2220 = vpop.trf.xlu0
        %v2221 = vpop.trf.xlu0
        %v2222 = vpop.trf.xlu0
        %v2223 = vpop.trf.xlu0
        %v2224 = vpop.trf.xlu0
        %v2225 = vpop.trf.xlu0
        %v2226 = vpop.trf.xlu0
        %v2227 = vpop.trf.xlu0
        %v2228 = vpop.trf.xlu0
        %v2229 = vpop.trf.xlu0
        %v2230 = vpop.trf.xlu0
        %v2231 = vpop.trf.xlu0
        %v2232 = vpop.trf.xlu0
        %v2233 = vpop.trf.xlu0
        %v2234 = vpop.trf.xlu0
        %v2235 = vpop.trf.xlu0
        %2236 = vxpose.xlu0.b32.start [1/16] %v2139, 128
        %2237 = vxpose.xlu0.b32.cont [2/16] 0.0, 128
        %2238 = vxpose.xlu0.b32.cont [3/16] 0.0, 128
        %2239 = vxpose.xlu0.b32.cont [4/16] 0.0, 128
        %2240 = vxpose.xlu0.b32.cont [5/16] 0.0, 128
        %2241 = vxpose.xlu0.b32.cont [6/16] 0.0, 128
        %2242 = vxpose.xlu0.b32.cont [7/16] 0.0, 128
        %2243 = vxpose.xlu0.b32.cont [8/16] 0.0, 128
        %2244 = vxpose.xlu0.b32.cont [9/16] 0.0, 128
        %2245 = vxpose.xlu0.b32.cont [10/16] 0.0, 128
        %2246 = vxpose.xlu0.b32.cont [11/16] 0.0, 128
        %2247 = vxpose.xlu0.b32.cont [12/16] 0.0, 128
        %2248 = vxpose.xlu0.b32.cont [13/16] 0.0, 128
        %2249 = vxpose.xlu0.b32.cont [14/16] 0.0, 128
        %2250 = vxpose.xlu0.b32.cont [15/16] 0.0, 128
        %2251 = vxpose.xlu0.b32.end [16/16] 0.0, 128
        %v2252 = vpop.trf.xlu0
        %v2253 = vpop.trf.xlu0
        %v2254 = vpop.trf.xlu0
        %v2255 = vpop.trf.xlu0
        %v2256 = vpop.trf.xlu0
        %v2257 = vpop.trf.xlu0
        %v2258 = vpop.trf.xlu0
        %v2259 = vpop.trf.xlu0
        %v2260 = vpop.trf.xlu0
        %v2261 = vpop.trf.xlu0
        %v2262 = vpop.trf.xlu0
        %v2263 = vpop.trf.xlu0
        %v2264 = vpop.trf.xlu0
        %v2265 = vpop.trf.xlu0
        %v2266 = vpop.trf.xlu0
        %v2267 = vpop.trf.xlu0
        %2268 = vxpose.xlu0.b32.start [1/16] %v2141, 128
        %2269 = vxpose.xlu0.b32.cont [2/16] 0.0, 128
        %2270 = vxpose.xlu0.b32.cont [3/16] 0.0, 128
        %2271 = vxpose.xlu0.b32.cont [4/16] 0.0, 128
        %2272 = vxpose.xlu0.b32.cont [5/16] 0.0, 128
        %2273 = vxpose.xlu0.b32.cont [6/16] 0.0, 128
        %2274 = vxpose.xlu0.b32.cont [7/16] 0.0, 128
        %2275 = vxpose.xlu0.b32.cont [8/16] 0.0, 128
        %2276 = vxpose.xlu0.b32.cont [9/16] 0.0, 128
        %2277 = vxpose.xlu0.b32.cont [10/16] 0.0, 128
        %2278 = vxpose.xlu0.b32.cont [11/16] 0.0, 128
        %2279 = vxpose.xlu0.b32.cont [12/16] 0.0, 128
        %2280 = vxpose.xlu0.b32.cont [13/16] 0.0, 128
        %2281 = vxpose.xlu0.b32.cont [14/16] 0.0, 128
        %2282 = vxpose.xlu0.b32.cont [15/16] 0.0, 128
        %2283 = vxpose.xlu0.b32.end [16/16] 0.0, 128
        %v2284 = vpop.trf.xlu0
        %v2285 = vpop.trf.xlu0
        %v2286 = vpop.trf.xlu0
        %v2287 = vpop.trf.xlu0
        %v2288 = vpop.trf.xlu0
        %v2289 = vpop.trf.xlu0
        %v2290 = vpop.trf.xlu0
        %v2291 = vpop.trf.xlu0
        %v2292 = vpop.trf.xlu0
        %v2293 = vpop.trf.xlu0
        %v2294 = vpop.trf.xlu0
        %v2295 = vpop.trf.xlu0
        %v2296 = vpop.trf.xlu0
        %v2297 = vpop.trf.xlu0
        %v2298 = vpop.trf.xlu0
        %v2299 = vpop.trf.xlu0
        %2300 = vxpose.xlu0.b32.start [1/16] %v2144, 128
        %2301 = vxpose.xlu0.b32.cont [2/16] 0.0, 128
        %2302 = vxpose.xlu0.b32.cont [3/16] 0.0, 128
        %2303 = vxpose.xlu0.b32.cont [4/16] 0.0, 128
        %2304 = vxpose.xlu0.b32.cont [5/16] 0.0, 128
        %2305 = vxpose.xlu0.b32.cont [6/16] 0.0, 128
        %2306 = vxpose.xlu0.b32.cont [7/16] 0.0, 128
        %2307 = vxpose.xlu0.b32.cont [8/16] 0.0, 128
        %2308 = vxpose.xlu0.b32.cont [9/16] 0.0, 128
        %2309 = vxpose.xlu0.b32.cont [10/16] 0.0, 128
        %2310 = vxpose.xlu0.b32.cont [11/16] 0.0, 128
        %2311 = vxpose.xlu0.b32.cont [12/16] 0.0, 128
        %2312 = vxpose.xlu0.b32.cont [13/16] 0.0, 128
        %2313 = vxpose.xlu0.b32.cont [14/16] 0.0, 128
        %2314 = vxpose.xlu0.b32.cont [15/16] 0.0, 128
        %2315 = vxpose.xlu0.b32.end [16/16] 0.0, 128
        %v2316 = vpop.trf.xlu0
        %v2317 = vpop.trf.xlu0
        %v2318 = vpop.trf.xlu0
        %v2319 = vpop.trf.xlu0
        %v2320 = vpop.trf.xlu0
        %v2321 = vpop.trf.xlu0
        %v2322 = vpop.trf.xlu0
        %v2323 = vpop.trf.xlu0
        %v2324 = vpop.trf.xlu0
        %v2325 = vpop.trf.xlu0
        %v2326 = vpop.trf.xlu0
        %v2327 = vpop.trf.xlu0
        %v2328 = vpop.trf.xlu0
        %v2329 = vpop.trf.xlu0
        %v2330 = vpop.trf.xlu0
        %v2331 = vpop.trf.xlu0
        %2332 = vxpose.xlu0.b32.start [1/16] %v2146, 128
        %2333 = vxpose.xlu0.b32.cont [2/16] 0.0, 128
        %2334 = vxpose.xlu0.b32.cont [3/16] 0.0, 128
        %2335 = vxpose.xlu0.b32.cont [4/16] 0.0, 128
        %2336 = vxpose.xlu0.b32.cont [5/16] 0.0, 128
        %2337 = vxpose.xlu0.b32.cont [6/16] 0.0, 128
        %2338 = vxpose.xlu0.b32.cont [7/16] 0.0, 128
        %2339 = vxpose.xlu0.b32.cont [8/16] 0.0, 128
        %2340 = vxpose.xlu0.b32.cont [9/16] 0.0, 128
        %2341 = vxpose.xlu0.b32.cont [10/16] 0.0, 128
        %2342 = vxpose.xlu0.b32.cont [11/16] 0.0, 128
        %2343 = vxpose.xlu0.b32.cont [12/16] 0.0, 128
        %2344 = vxpose.xlu0.b32.cont [13/16] 0.0, 128
        %2345 = vxpose.xlu0.b32.cont [14/16] 0.0, 128
        %2346 = vxpose.xlu0.b32.cont [15/16] 0.0, 128
        %2347 = vxpose.xlu0.b32.end [16/16] 0.0, 128
        %v2348 = vpop.trf.xlu0
        %v2349 = vpop.trf.xlu0
        %v2350 = vpop.trf.xlu0
        %v2351 = vpop.trf.xlu0
        %v2352 = vpop.trf.xlu0
        %v2353 = vpop.trf.xlu0
        %v2354 = vpop.trf.xlu0
        %v2355 = vpop.trf.xlu0
        %v2356 = vpop.trf.xlu0
        %v2357 = vpop.trf.xlu0
        %v2358 = vpop.trf.xlu0
        %v2359 = vpop.trf.xlu0
        %v2360 = vpop.trf.xlu0
        %v2361 = vpop.trf.xlu0
        %v2362 = vpop.trf.xlu0
        %v2363 = vpop.trf.xlu0
        %2364 = vxpose.xlu0.b32.start [1/16] %v2149, 128
        %2365 = vxpose.xlu0.b32.cont [2/16] 0.0, 128
        %2366 = vxpose.xlu0.b32.cont [3/16] 0.0, 128
        %2367 = vxpose.xlu0.b32.cont [4/16] 0.0, 128
        %2368 = vxpose.xlu0.b32.cont [5/16] 0.0, 128
        %2369 = vxpose.xlu0.b32.cont [6/16] 0.0, 128
        %2370 = vxpose.xlu0.b32.cont [7/16] 0.0, 128
        %2371 = vxpose.xlu0.b32.cont [8/16] 0.0, 128
        %2372 = vxpose.xlu0.b32.cont [9/16] 0.0, 128
        %2373 = vxpose.xlu0.b32.cont [10/16] 0.0, 128
        %2374 = vxpose.xlu0.b32.cont [11/16] 0.0, 128
        %2375 = vxpose.xlu0.b32.cont [12/16] 0.0, 128
        %2376 = vxpose.xlu0.b32.cont [13/16] 0.0, 128
        %2377 = vxpose.xlu0.b32.cont [14/16] 0.0, 128
        %2378 = vxpose.xlu0.b32.cont [15/16] 0.0, 128
        %2379 = vxpose.xlu0.b32.end [16/16] 0.0, 128
        %v2380 = vpop.trf.xlu0
        %v2381 = vpop.trf.xlu0
        %v2382 = vpop.trf.xlu0
        %v2383 = vpop.trf.xlu0
        %v2384 = vpop.trf.xlu0
        %v2385 = vpop.trf.xlu0
        %v2386 = vpop.trf.xlu0
        %v2387 = vpop.trf.xlu0
        %v2388 = vpop.trf.xlu0
        %v2389 = vpop.trf.xlu0
        %v2390 = vpop.trf.xlu0
        %v2391 = vpop.trf.xlu0
        %v2392 = vpop.trf.xlu0
        %v2393 = vpop.trf.xlu0
        %v2394 = vpop.trf.xlu0
        %v2395 = vpop.trf.xlu0
        %2396 = vxpose.xlu0.b32.start [1/16] %v2151, 128
        %2397 = vxpose.xlu0.b32.cont [2/16] 0.0, 128
        %2398 = vxpose.xlu0.b32.cont [3/16] 0.0, 128
        %2399 = vxpose.xlu0.b32.cont [4/16] 0.0, 128
        %2400 = vxpose.xlu0.b32.cont [5/16] 0.0, 128
        %2401 = vxpose.xlu0.b32.cont [6/16] 0.0, 128
        %2402 = vxpose.xlu0.b32.cont [7/16] 0.0, 128
        %2403 = vxpose.xlu0.b32.cont [8/16] 0.0, 128
        %2404 = vxpose.xlu0.b32.cont [9/16] 0.0, 128
        %2405 = vxpose.xlu0.b32.cont [10/16] 0.0, 128
        %2406 = vxpose.xlu0.b32.cont [11/16] 0.0, 128
        %2407 = vxpose.xlu0.b32.cont [12/16] 0.0, 128
        %2408 = vxpose.xlu0.b32.cont [13/16] 0.0, 128
        %2409 = vxpose.xlu0.b32.cont [14/16] 0.0, 128
        %2410 = vxpose.xlu0.b32.cont [15/16] 0.0, 128
        %2411 = vxpose.xlu0.b32.end [16/16] 0.0, 128
        %v2412 = vpop.trf.xlu0
        %v2413 = vpop.trf.xlu0
        %v2414 = vpop.trf.xlu0
        %v2415 = vpop.trf.xlu0
        %v2416 = vpop.trf.xlu0
        %v2417 = vpop.trf.xlu0
        %v2418 = vpop.trf.xlu0
        %v2419 = vpop.trf.xlu0
        %v2420 = vpop.trf.xlu0
        %v2421 = vpop.trf.xlu0
        %v2422 = vpop.trf.xlu0
        %v2423 = vpop.trf.xlu0
        %v2424 = vpop.trf.xlu0
        %v2425 = vpop.trf.xlu0
        %v2426 = vpop.trf.xlu0
        %v2427 = vpop.trf.xlu0
        %2428 = vxpose.xlu0.b32.start [1/16] %v2154, 128
        %2429 = vxpose.xlu0.b32.cont [2/16] 0.0, 128
        %2430 = vxpose.xlu0.b32.cont [3/16] 0.0, 128
        %2431 = vxpose.xlu0.b32.cont [4/16] 0.0, 128
        %2432 = vxpose.xlu0.b32.cont [5/16] 0.0, 128
        %2433 = vxpose.xlu0.b32.cont [6/16] 0.0, 128
        %2434 = vxpose.xlu0.b32.cont [7/16] 0.0, 128
        %2435 = vxpose.xlu0.b32.cont [8/16] 0.0, 128
        %2436 = vxpose.xlu0.b32.cont [9/16] 0.0, 128
        %2437 = vxpose.xlu0.b32.cont [10/16] 0.0, 128
        %2438 = vxpose.xlu0.b32.cont [11/16] 0.0, 128
        %2439 = vxpose.xlu0.b32.cont [12/16] 0.0, 128
        %2440 = vxpose.xlu0.b32.cont [13/16] 0.0, 128
        %2441 = vxpose.xlu0.b32.cont [14/16] 0.0, 128
        %2442 = vxpose.xlu0.b32.cont [15/16] 0.0, 128
        %2443 = vxpose.xlu0.b32.end [16/16] 0.0, 128
        %v2444 = vpop.trf.xlu0
        %v2445 = vpop.trf.xlu0
        %v2446 = vpop.trf.xlu0
        %v2447 = vpop.trf.xlu0
        %v2448 = vpop.trf.xlu0
        %v2449 = vpop.trf.xlu0
        %v2450 = vpop.trf.xlu0
        %v2451 = vpop.trf.xlu0
        %v2452 = vpop.trf.xlu0
        %v2453 = vpop.trf.xlu0
        %v2454 = vpop.trf.xlu0
        %v2455 = vpop.trf.xlu0
        %v2456 = vpop.trf.xlu0
        %v2457 = vpop.trf.xlu0
        %v2458 = vpop.trf.xlu0
        %v2459 = vpop.trf.xlu0
        %2460 = vxpose.xlu0.b32.start [1/16] %v2156, 128
        %2461 = vxpose.xlu0.b32.cont [2/16] 0.0, 128
        %2462 = vxpose.xlu0.b32.cont [3/16] 0.0, 128
        %2463 = vxpose.xlu0.b32.cont [4/16] 0.0, 128
        %2464 = vxpose.xlu0.b32.cont [5/16] 0.0, 128
        %2465 = vxpose.xlu0.b32.cont [6/16] 0.0, 128
        %2466 = vxpose.xlu0.b32.cont [7/16] 0.0, 128
        %2467 = vxpose.xlu0.b32.cont [8/16] 0.0, 128
        %2468 = vxpose.xlu0.b32.cont [9/16] 0.0, 128
        %2469 = vxpose.xlu0.b32.cont [10/16] 0.0, 128
        %2470 = vxpose.xlu0.b32.cont [11/16] 0.0, 128
        %2471 = vxpose.xlu0.b32.cont [12/16] 0.0, 128
        %2472 = vxpose.xlu0.b32.cont [13/16] 0.0, 128
        %2473 = vxpose.xlu0.b32.cont [14/16] 0.0, 128
        %2474 = vxpose.xlu0.b32.cont [15/16] 0.0, 128
        %2475 = vxpose.xlu0.b32.end [16/16] 0.0, 128
        %v2476 = vpop.trf.xlu0
        %v2477 = vpop.trf.xlu0
        %v2478 = vpop.trf.xlu0
        %v2479 = vpop.trf.xlu0
        %v2480 = vpop.trf.xlu0
        %v2481 = vpop.trf.xlu0
        %v2482 = vpop.trf.xlu0
        %v2483 = vpop.trf.xlu0
        %v2484 = vpop.trf.xlu0
        %v2485 = vpop.trf.xlu0
        %v2486 = vpop.trf.xlu0
        %v2487 = vpop.trf.xlu0
        %v2488 = vpop.trf.xlu0
        %v2489 = vpop.trf.xlu0
        %v2490 = vpop.trf.xlu0
        %v2491 = vpop.trf.xlu0
        %2492 = vxpose.xlu0.b32.start [1/16] %v2159, 128
        %2493 = vxpose.xlu0.b32.cont [2/16] 0.0, 128
        %2494 = vxpose.xlu0.b32.cont [3/16] 0.0, 128
        %2495 = vxpose.xlu0.b32.cont [4/16] 0.0, 128
        %2496 = vxpose.xlu0.b32.cont [5/16] 0.0, 128
        %2497 = vxpose.xlu0.b32.cont [6/16] 0.0, 128
        %2498 = vxpose.xlu0.b32.cont [7/16] 0.0, 128
        %2499 = vxpose.xlu0.b32.cont [8/16] 0.0, 128
        %2500 = vxpose.xlu0.b32.cont [9/16] 0.0, 128
        %2501 = vxpose.xlu0.b32.cont [10/16] 0.0, 128
        %2502 = vxpose.xlu0.b32.cont [11/16] 0.0, 128
        %2503 = vxpose.xlu0.b32.cont [12/16] 0.0, 128
        %2504 = vxpose.xlu0.b32.cont [13/16] 0.0, 128
        %2505 = vxpose.xlu0.b32.cont [14/16] 0.0, 128
        %2506 = vxpose.xlu0.b32.cont [15/16] 0.0, 128
        %2507 = vxpose.xlu0.b32.end [16/16] 0.0, 128
        %v2508 = vpop.trf.xlu0
        %v2509 = vpop.trf.xlu0
        %v2510 = vpop.trf.xlu0
        %v2511 = vpop.trf.xlu0
        %v2512 = vpop.trf.xlu0
        %v2513 = vpop.trf.xlu0
        %v2514 = vpop.trf.xlu0
        %v2515 = vpop.trf.xlu0
        %v2516 = vpop.trf.xlu0
        %v2517 = vpop.trf.xlu0
        %v2518 = vpop.trf.xlu0
        %v2519 = vpop.trf.xlu0
        %v2520 = vpop.trf.xlu0
        %v2521 = vpop.trf.xlu0
        %v2522 = vpop.trf.xlu0
        %v2523 = vpop.trf.xlu0
        %2524 = vxpose.xlu0.b32.start [1/16] %v2161, 128
        %2525 = vxpose.xlu0.b32.cont [2/16] 0.0, 128
        %2526 = vxpose.xlu0.b32.cont [3/16] 0.0, 128
        %2527 = vxpose.xlu0.b32.cont [4/16] 0.0, 128
        %2528 = vxpose.xlu0.b32.cont [5/16] 0.0, 128
        %2529 = vxpose.xlu0.b32.cont [6/16] 0.0, 128
        %2530 = vxpose.xlu0.b32.cont [7/16] 0.0, 128
        %2531 = vxpose.xlu0.b32.cont [8/16] 0.0, 128
        %2532 = vxpose.xlu0.b32.cont [9/16] 0.0, 128
        %2533 = vxpose.xlu0.b32.cont [10/16] 0.0, 128
        %2534 = vxpose.xlu0.b32.cont [11/16] 0.0, 128
        %2535 = vxpose.xlu0.b32.cont [12/16] 0.0, 128
        %2536 = vxpose.xlu0.b32.cont [13/16] 0.0, 128
        %2537 = vxpose.xlu0.b32.cont [14/16] 0.0, 128
        %2538 = vxpose.xlu0.b32.cont [15/16] 0.0, 128
        %2539 = vxpose.xlu0.b32.end [16/16] 0.0, 128
        %v2540 = vpop.trf.xlu0
        %v2541 = vpop.trf.xlu0
        %v2542 = vpop.trf.xlu0
        %v2543 = vpop.trf.xlu0
        %v2544 = vpop.trf.xlu0
        %v2545 = vpop.trf.xlu0
        %v2546 = vpop.trf.xlu0
        %v2547 = vpop.trf.xlu0
        %v2548 = vpop.trf.xlu0
        %v2549 = vpop.trf.xlu0
        %v2550 = vpop.trf.xlu0
        %v2551 = vpop.trf.xlu0
        %v2552 = vpop.trf.xlu0
        %v2553 = vpop.trf.xlu0
        %v2554 = vpop.trf.xlu0
        %v2555 = vpop.trf.xlu0
        %2556 = vxpose.xlu0.b32.start [1/16] %v2164, 128
        %2557 = vxpose.xlu0.b32.cont [2/16] 0.0, 128
        %2558 = vxpose.xlu0.b32.cont [3/16] 0.0, 128
        %2559 = vxpose.xlu0.b32.cont [4/16] 0.0, 128
        %2560 = vxpose.xlu0.b32.cont [5/16] 0.0, 128
        %2561 = vxpose.xlu0.b32.cont [6/16] 0.0, 128
        %2562 = vxpose.xlu0.b32.cont [7/16] 0.0, 128
        %2563 = vxpose.xlu0.b32.cont [8/16] 0.0, 128
        %2564 = vxpose.xlu0.b32.cont [9/16] 0.0, 128
        %2565 = vxpose.xlu0.b32.cont [10/16] 0.0, 128
        %2566 = vxpose.xlu0.b32.cont [11/16] 0.0, 128
        %2567 = vxpose.xlu0.b32.cont [12/16] 0.0, 128
        %2568 = vxpose.xlu0.b32.cont [13/16] 0.0, 128
        %2569 = vxpose.xlu0.b32.cont [14/16] 0.0, 128
        %2570 = vxpose.xlu0.b32.cont [15/16] 0.0, 128
        %2571 = vxpose.xlu0.b32.end [16/16] 0.0, 128
        %v2572 = vpop.trf.xlu0
        %v2573 = vpop.trf.xlu0
        %v2574 = vpop.trf.xlu0
        %v2575 = vpop.trf.xlu0
        %v2576 = vpop.trf.xlu0
        %v2577 = vpop.trf.xlu0
        %v2578 = vpop.trf.xlu0
        %v2579 = vpop.trf.xlu0
        %v2580 = vpop.trf.xlu0
        %v2581 = vpop.trf.xlu0
        %v2582 = vpop.trf.xlu0
        %v2583 = vpop.trf.xlu0
        %v2584 = vpop.trf.xlu0
        %v2585 = vpop.trf.xlu0
        %v2586 = vpop.trf.xlu0
        %v2587 = vpop.trf.xlu0
        %2588 = vxpose.xlu0.b32.start [1/16] %v2166, 128
        %2589 = vxpose.xlu0.b32.cont [2/16] 0.0, 128
        %2590 = vxpose.xlu0.b32.cont [3/16] 0.0, 128
        %2591 = vxpose.xlu0.b32.cont [4/16] 0.0, 128
        %2592 = vxpose.xlu0.b32.cont [5/16] 0.0, 128
        %2593 = vxpose.xlu0.b32.cont [6/16] 0.0, 128
        %2594 = vxpose.xlu0.b32.cont [7/16] 0.0, 128
        %2595 = vxpose.xlu0.b32.cont [8/16] 0.0, 128
        %2596 = vxpose.xlu0.b32.cont [9/16] 0.0, 128
        %2597 = vxpose.xlu0.b32.cont [10/16] 0.0, 128
        %2598 = vxpose.xlu0.b32.cont [11/16] 0.0, 128
        %2599 = vxpose.xlu0.b32.cont [12/16] 0.0, 128
        %2600 = vxpose.xlu0.b32.cont [13/16] 0.0, 128
        %2601 = vxpose.xlu0.b32.cont [14/16] 0.0, 128
        %2602 = vxpose.xlu0.b32.cont [15/16] 0.0, 128
        %2603 = vxpose.xlu0.b32.end [16/16] 0.0, 128
        %v2604 = vpop.trf.xlu0
        %v2605 = vpop.trf.xlu0
        %v2606 = vpop.trf.xlu0
        %v2607 = vpop.trf.xlu0
        %v2608 = vpop.trf.xlu0
        %v2609 = vpop.trf.xlu0
        %v2610 = vpop.trf.xlu0
        %v2611 = vpop.trf.xlu0
        %v2612 = vpop.trf.xlu0
        %v2613 = vpop.trf.xlu0
        %v2614 = vpop.trf.xlu0
        %v2615 = vpop.trf.xlu0
        %v2616 = vpop.trf.xlu0
        %v2617 = vpop.trf.xlu0
        %v2618 = vpop.trf.xlu0
        %v2619 = vpop.trf.xlu0
        %2620 = vxpose.xlu0.b32.start [1/16] %v2169, 128
        %2621 = vxpose.xlu0.b32.cont [2/16] 0.0, 128
        %2622 = vxpose.xlu0.b32.cont [3/16] 0.0, 128
        %2623 = vxpose.xlu0.b32.cont [4/16] 0.0, 128
        %2624 = vxpose.xlu0.b32.cont [5/16] 0.0, 128
        %2625 = vxpose.xlu0.b32.cont [6/16] 0.0, 128
        %2626 = vxpose.xlu0.b32.cont [7/16] 0.0, 128
        %2627 = vxpose.xlu0.b32.cont [8/16] 0.0, 128
        %2628 = vxpose.xlu0.b32.cont [9/16] 0.0, 128
        %2629 = vxpose.xlu0.b32.cont [10/16] 0.0, 128
        %2630 = vxpose.xlu0.b32.cont [11/16] 0.0, 128
        %2631 = vxpose.xlu0.b32.cont [12/16] 0.0, 128
        %2632 = vxpose.xlu0.b32.cont [13/16] 0.0, 128
        %2633 = vxpose.xlu0.b32.cont [14/16] 0.0, 128
        %2634 = vxpose.xlu0.b32.cont [15/16] 0.0, 128
        %2635 = vxpose.xlu0.b32.end [16/16] 0.0, 128
        %v2636 = vpop.trf.xlu0
        %v2637 = vpop.trf.xlu0
        %v2638 = vpop.trf.xlu0
        %v2639 = vpop.trf.xlu0
        %v2640 = vpop.trf.xlu0
        %v2641 = vpop.trf.xlu0
        %v2642 = vpop.trf.xlu0
        %v2643 = vpop.trf.xlu0
        %v2644 = vpop.trf.xlu0
        %v2645 = vpop.trf.xlu0
        %v2646 = vpop.trf.xlu0
        %v2647 = vpop.trf.xlu0
        %v2648 = vpop.trf.xlu0
        %v2649 = vpop.trf.xlu0
        %v2650 = vpop.trf.xlu0
        %v2651 = vpop.trf.xlu0
        %v2652 = vpack.c.bf16 %v2189, %v2188
        %v2653 = vpack.c.bf16 %v2221, %v2220
        %v2654 = vpack.c.bf16 %v2253, %v2252
        %v2655 = vpack.c.bf16 %v2285, %v2284
        %v2656 = vpack.c.bf16 %v2317, %v2316
        %v2657 = vpack.c.bf16 %v2349, %v2348
        %v2658 = vpack.c.bf16 %v2381, %v2380
        %v2659 = vpack.c.bf16 %v2413, %v2412
        %v2660 = vpack.c.bf16 %v2445, %v2444
        %v2661 = vpack.c.bf16 %v2477, %v2476
        %v2662 = vpack.c.bf16 %v2509, %v2508
        %v2663 = vpack.c.bf16 %v2541, %v2540
        %v2664 = vpack.c.bf16 %v2573, %v2572
        %v2665 = vpack.c.bf16 %v2605, %v2604
        %v2666 = vpack.c.bf16 %v2637, %v2636
        %v2667 = vld [vmem:[%s5] sm:$0xf]
        %v2669 = vsel %vm1499, %v2652, 0
        %v2672 = vsel %vm1499, %v2653, 0
        %v2675 = vsel %vm1499, %v2654, 0
        %v2678 = vsel %vm1499, %v2655, 0
        %v2681 = vsel %vm1499, %v2656, 0
        %v2684 = vsel %vm1499, %v2657, 0
        %v2687 = vsel %vm1499, %v2658, 0
        %v2690 = vsel %vm1499, %v2659, 0
        %v2693 = vsel %vm1499, %v2660, 0
        %v2696 = vsel %vm1499, %v2661, 0
        %v2699 = vsel %vm1499, %v2662, 0
        %v2702 = vsel %vm1499, %v2663, 0
        %v2705 = vsel %vm1499, %v2664, 0
        %v2708 = vsel %vm1499, %v2665, 0
        %v2711 = vsel %vm1499, %v2666, 0
        %v2714 = vsel %vm1592, %v2667, 0
        %2716 = vmatpush.bf16.msra.mxu0 0
        %2717 = vmatpush.bf16.msra.mxu0 0
        %2718 = vmatpush.bf16.msra.mxu0 0
        %2719 = vmatpush.bf16.msra.mxu0 0
        %2720 = vmatpush.bf16.msra.mxu0 0
        %2721 = vmatpush.bf16.msra.mxu0 0
        %2722 = vmatpush.bf16.msra.mxu0 0
        %2723 = vmatpush.bf16.msra.mxu0 %v2714
        %2724 = vmatmul.bf16.gmra.mxu0 %v2669
        %v2725 = vpop.f32.mrf.mxu0
        %v2726 = vadd.f32 0.0, %v2725
        %v2727 = vpop.f32.mrf.mxu0
        %v2728 = vadd.f32 0.0, %v2727
        %2729 = vmatmul.bf16.gmra.mxu0 %v2672
        %v2730 = vpop.f32.mrf.mxu0
        %v2731 = vadd.f32 0.0, %v2730
        %v2732 = vpop.f32.mrf.mxu0
        %v2733 = vadd.f32 0.0, %v2732
        %2734 = vmatmul.bf16.gmra.mxu0 %v2675
        %v2735 = vpop.f32.mrf.mxu0
        %v2736 = vadd.f32 0.0, %v2735
        %v2737 = vpop.f32.mrf.mxu0
        %v2738 = vadd.f32 0.0, %v2737
        %2739 = vmatmul.bf16.gmra.mxu0 %v2678
        %v2740 = vpop.f32.mrf.mxu0
        %v2741 = vadd.f32 0.0, %v2740
        %v2742 = vpop.f32.mrf.mxu0
        %v2743 = vadd.f32 0.0, %v2742
        %2744 = vmatmul.bf16.gmra.mxu0 %v2681
        %v2745 = vpop.f32.mrf.mxu0
        %v2746 = vadd.f32 0.0, %v2745
        %v2747 = vpop.f32.mrf.mxu0
        %v2748 = vadd.f32 0.0, %v2747
        %2749 = vmatmul.bf16.gmra.mxu0 %v2684
        %v2750 = vpop.f32.mrf.mxu0
        %v2751 = vadd.f32 0.0, %v2750
        %v2752 = vpop.f32.mrf.mxu0
        %v2753 = vadd.f32 0.0, %v2752
        %2754 = vmatmul.bf16.gmra.mxu0 %v2687
        %v2755 = vpop.f32.mrf.mxu0
        %v2756 = vadd.f32 0.0, %v2755
        %v2757 = vpop.f32.mrf.mxu0
        %v2758 = vadd.f32 0.0, %v2757
        %2759 = vmatmul.bf16.gmra.mxu0 %v2690
        %v2760 = vpop.f32.mrf.mxu0
        %v2761 = vadd.f32 0.0, %v2760
        %v2762 = vpop.f32.mrf.mxu0
        %v2763 = vadd.f32 0.0, %v2762
        %2764 = vmatmul.bf16.gmra.mxu0 %v2693
        %v2765 = vpop.f32.mrf.mxu0
        %v2766 = vadd.f32 0.0, %v2765
        %v2767 = vpop.f32.mrf.mxu0
        %v2768 = vadd.f32 0.0, %v2767
        %2769 = vmatmul.bf16.gmra.mxu0 %v2696
        %v2770 = vpop.f32.mrf.mxu0
        %v2771 = vadd.f32 0.0, %v2770
        %v2772 = vpop.f32.mrf.mxu0
        %v2773 = vadd.f32 0.0, %v2772
        %2774 = vmatmul.bf16.gmra.mxu0 %v2699
        %v2775 = vpop.f32.mrf.mxu0
        %v2776 = vadd.f32 0.0, %v2775
        %v2777 = vpop.f32.mrf.mxu0
        %v2778 = vadd.f32 0.0, %v2777
        %2779 = vmatmul.bf16.gmra.mxu0 %v2702
        %v2780 = vpop.f32.mrf.mxu0
        %v2781 = vadd.f32 0.0, %v2780
        %v2782 = vpop.f32.mrf.mxu0
        %v2783 = vadd.f32 0.0, %v2782
        %2784 = vmatmul.bf16.gmra.mxu0 %v2705
        %v2785 = vpop.f32.mrf.mxu0
        %v2786 = vadd.f32 0.0, %v2785
        %v2787 = vpop.f32.mrf.mxu0
        %v2788 = vadd.f32 0.0, %v2787
        %2789 = vmatmul.bf16.gmra.mxu0 %v2708
        %v2790 = vpop.f32.mrf.mxu0
        %v2791 = vadd.f32 0.0, %v2790
        %v2792 = vpop.f32.mrf.mxu0
        %v2793 = vadd.f32 0.0, %v2792
        %2794 = vmatmul.bf16.gmra.mxu0 %v2711
        %v2795 = vpop.f32.mrf.mxu0
        %v2796 = vadd.f32 0.0, %v2795
        %v2797 = vpop.f32.mrf.mxu0
        %v2798 = vadd.f32 0.0, %v2797
        %2799 = vdwg.mxu0
        %2800 = vst.msk [vmem:[%s271] sm:$0xff] %vm331, %v2726
        %2801 = vst.msk [vmem:[%s271 + $0x8] sm:$0xff] %vm331, %v2728
        %2802 = vst.msk [vmem:[%s271 + $0x10] sm:$0xff] %vm331, %v2731
        %2803 = vst.msk [vmem:[%s271 + $0x18] sm:$0xff] %vm331, %v2733
        %2804 = vst.msk [vmem:[%s271 + $0x20] sm:$0xff] %vm331, %v2736
        %2805 = vst.msk [vmem:[%s271 + $0x28] sm:$0xff] %vm331, %v2738
        %2806 = vst.msk [vmem:[%s271 + $0x30] sm:$0xff] %vm331, %v2741
        %2807 = vst.msk [vmem:[%s271 + $0x38] sm:$0xff] %vm331, %v2743
        %2808 = vst.msk [vmem:[%s271 + $0x40] sm:$0xff] %vm331, %v2746
        %2809 = vst.msk [vmem:[%s271 + $0x48] sm:$0xff] %vm331, %v2748
        %2810 = vst.msk [vmem:[%s271 + $0x50] sm:$0xff] %vm331, %v2751
        %2811 = vst.msk [vmem:[%s271 + $0x58] sm:$0xff] %vm331, %v2753
        %2812 = vst.msk [vmem:[%s271 + $0x60] sm:$0xff] %vm331, %v2756
        %2813 = vst.msk [vmem:[%s271 + $0x68] sm:$0xff] %vm331, %v2758
        %2814 = vst.msk [vmem:[%s271 + $0x70] sm:$0xff] %vm331, %v2761
        %2815 = vst.msk [vmem:[%s271 + $0x78] sm:$0xff] %vm331, %v2763
        %2816 = vst.msk [vmem:[%s271 + $0x80] sm:$0xff] %vm331, %v2766
        %2817 = vst.msk [vmem:[%s271 + $0x88] sm:$0xff] %vm331, %v2768
        %2818 = vst.msk [vmem:[%s271 + $0x90] sm:$0xff] %vm331, %v2771
        %2819 = vst.msk [vmem:[%s271 + $0x98] sm:$0xff] %vm331, %v2773
        %2820 = vst.msk [vmem:[%s271 + $0xa0] sm:$0xff] %vm331, %v2776
        %2821 = vst.msk [vmem:[%s271 + $0xa8] sm:$0xff] %vm331, %v2778
        %2822 = vst.msk [vmem:[%s271 + $0xb0] sm:$0xff] %vm331, %v2781
        %2823 = vst.msk [vmem:[%s271 + $0xb8] sm:$0xff] %vm331, %v2783
        %2824 = vst.msk [vmem:[%s271 + $0xc0] sm:$0xff] %vm331, %v2786
        %2825 = vst.msk [vmem:[%s271 + $0xc8] sm:$0xff] %vm331, %v2788
        %2826 = vst.msk [vmem:[%s271 + $0xd0] sm:$0xff] %vm331, %v2791
        %2827 = vst.msk [vmem:[%s271 + $0xd8] sm:$0xff] %vm331, %v2793
        %2828 = vst.msk [vmem:[%s271 + $0xe0] sm:$0xff] %vm331, %v2796
        %2829 = vst.msk [vmem:[%s271 + $0xe8] sm:$0xff] %vm331, %v2798
        %s2830 = sand.u32 %s181, 1
        %s2831 = scalar_lea.sflag [#allocation3], %s2830
        %s2832 = sand.u32 %s181, 1
        %s2833 = smul.addr %s2832, 240
        %s2834 = scalar_lea.vmem [#allocation2], %s2833
        // Predicated region
        $region49: #{_lambda_.1} parent=47 // pred_check
          %p2835 = pneg %p191
        $region50: #{_lambda_.1} parent=47 // pred_check_branch
          %2837 = sbr.rel (%p2835) target = $region52
        $region51: #{_lambda_.1} parent=47 // pred_region
          %2839 = vsyncadd %s2831, 0
          %s2840 = smul.addr %s21, 30
          %s2841 = smul.addr %s2840, 8
          %s2842 = scalar_lea.hbm %s7, %s2841
          %s2843 = sshll.u32 %s2834, 4
          %s2844 = int_to_ptr.vmem [resolvable:$true] %s2843
          %s2845 = sshll.u32 %s2842, 4
          %s2846 = int_to_ptr.hbm [resolvable:$true] %s2845
          %2851 = dma.vmem_to_hbm [thread:$0]  %s2844, 3840, %s2846, %s2831, 128, 128, 8
        $region52: #{_lambda_.1} parent=47 // pred_fallthru
          _
      $region48: #{_lambda_.1} parent=5 // pred_fallthru
        _
      %p2852 = scmp.le.s32.totalorder 2, %s16
      // Predicated region
      $region53: #{_lambda_.1} parent=5 // pred_check
        %p2853 = pneg %p2852
      $region54: #{_lambda_.1} parent=5 // pred_check_branch
        %2855 = sbr.rel (%p2853) target = $region56
      $region55: #{_lambda_.1} parent=5 // pred_region
        %s2856 = ssub.s32 %s16, 2
        // Predicated region
        $region57: #{_lambda_.1} parent=55 // pred_check
          %p2857 = pneg %p197
        $region58: #{_lambda_.1} parent=55 // pred_check_branch
          %2859 = sbr.rel (%p2857) target = $region60
        $region59: #{_lambda_.1} parent=55 // pred_region
          %s2860 = sand.u32 %s182, 1
          %s2861 = scalar_lea.sflag [#allocation3], %s2860
          %s2862 = sand.u32 %s182, 1
          %s2863 = smul.addr %s2862, 240
          %s2864 = scalar_lea.vmem [#allocation2], %s2863
          %2866 = dma.done %s2861, 3840
        $region60: #{_lambda_.1} parent=55 // pred_fallthru
          _
      $region56: #{_lambda_.1} parent=5 // pred_fallthru
        _
    $region6: #{_lambda_.1} parent=1 // loop_footer
      %s20 = sadd.s32 1, %s16
    $region7: #{_lambda_.1} parent=1 // loop_footer_branch
      %15 = sbr.rel target = $region3
    $region8: #{_lambda_.1} parent=1 // loop_exit
      _
    %2867 = vsyncpa [#allocation3], 1
    %s2868 = scalar_lea.sflag [#allocation3], 1
    %2869 = vsyncpa %s2868, 1

// kernel: _lambda_.1
$region0: #{_lambda_.1}
  #allocation0 [shape = 'u32[]', space=smem, size = 0x4, offset = 0x4, fixed_abs, tag = 'smem constant byte address 0x4 - core index']
  #allocation1 [shape = 'u32[72,128]{1,0:T(1,128)}', space=vmem, size = 0x9000, scoped, tag = 'internal scratch']
  %s0 = inlined_call_operand.vmem [shape: f32[2,15,16,16], index: 0, kind: input, shape index: {}]
  %s1 = inlined_call_operand.vmem [shape: bf16[16,24], index: 1, kind: input, shape index: {}, may-alias: {1,2}]
  %s2 = inlined_call_operand.vmem [shape: bf16[16,24], index: 2, kind: input, shape index: {}, may-alias: {1,2}]
  %s3 = inlined_call_operand.vmem [shape: bf16[5,24,24], index: 3, kind: input, shape index: {}]
  %s4 = inlined_call_operand.vmem [shape: bf16[8,16], index: 4, kind: input, shape index: {}, may-alias: {4,5}]
  %s5 = inlined_call_operand.vmem [shape: bf16[8,16], index: 5, kind: input, shape index: {}, may-alias: {4,5}]
  %s6 = inlined_call_operand.vmem [shape: f32[1,24], index: 6, kind: input, shape index: {}]
  %s7 = inlined_call_operand.hbm [shape: f32[2,3,5,16,16], index: 7, kind: output, shape index: {}]
  %s8 = sld [smem:[#allocation0]]
  $region61: #{_lambda_.1} parent=0
    _
  %s10 = ssub.s32 1, %s8
  %s11 = scalar_select 0, %s10, %s8
  $region1: #{_lambda_.1} parent=0
    #allocation2 [shape = 'u8[245760]{0}', space=vmem, size = 0x3c000, scoped, tag = 'output window, operand 0']
    #allocation3 [shape = 's32[2]{0}', space=sflag, size = 0x8, scoped, tag = 'scoped memory for _lambda_.1']
    %12 = vsyncpa [#allocation3], 0
    %s13 = scalar_lea.sflag [#allocation3], 1
    %14 = vsyncpa %s13, 0
    loop: start=0, step=1, limit=4
    $region2: #{_lambda_.1} parent=1 // loop_pre_header
      _
    $region3: #{_lambda_.1} parent=1 // loop_header
      %s16 = sphi 0, %s20
      %p17 = scmp.ge.s32.totalorder %s16, 4
      %s26 = sphi 0, %s28
      %s29 = sphi 0, %s26
      %s30 = sphi 0, %s29
      %s46 = sphi 0, %s30
      %s50 = sphi 0, %s50
      %s52 = sphi 0, %s50
      %s53 = sphi 0, %s52
      %s67 = sphi 0, %s53
      %s71 = sphi 0, %s71
      %s73 = sphi 0, %s71
      %s74 = sphi 0, %s73
      %s88 = sphi 0, %s74
      %s92 = sphi 0, %s92
      %s94 = sphi 0, %s92
      %s95 = sphi 0, %s94
      %s109 = sphi 0, %s95
      %s113 = sphi 0, %s113
      %s115 = sphi 0, %s113
      %s116 = sphi 0, %s115
      %s130 = sphi 0, %s116
      %s134 = sphi 0, %s134
      %s136 = sphi 0, %s134
      %s137 = sphi 0, %s136
      %s151 = sphi 0, %s137
      %s155 = sphi 0, %s155
      %s157 = sphi 0, %s155
      %s158 = sphi 0, %s157
      %s172 = sphi 0, %s158
      %s178 = sphi 0, %s180
      %s181 = sphi 0, %s178
      %s182 = sphi 0, %s181
      %s198 = sphi 0, %s182
    $region4: #{_lambda_.1} parent=1 // loop_header_branch
      %19 = sbr.rel (%p17) target = $region8
    $region5: #{_lambda_.1} parent=1 // loop_body
      %s21 = ssub.s32 %s16, 1
      %s22 = ssub.s32 %s16, 2
      %s23 = sadd.s32 %s16, 1
      %s24 = ssub.s32 %s16, %s23
      %p25 = scmp.eq.s32.totalorder %s24, 0
      %s27 = sadd.s32 %s26, 1
      %s28 = scalar_select %p25, %s26, %s27
      %p31 = pneg %p25
      %p32 = scmp.eq.s32.totalorder %s16, 1
      %p33 = por %p31, %p32
      %p34 = scmp.ne.s32.totalorder %s26, %s29
      %p35 = scmp.eq.s32.totalorder %s16, 0
      %p36 = por %p34, %p35
      %p37 = scmp.ne.s32.totalorder %s26, %s29
      %p38 = scmp.eq.s32.totalorder %s21, 1
      %p39 = por %p37, %p38
      %p40 = scmp.ne.s32.totalorder %s29, %s30
      %p41 = scmp.eq.s32.totalorder %s21, 0
      %p42 = por %p40, %p41
      %p43 = scmp.ne.s32.totalorder %s29, %s30
      %p44 = scmp.eq.s32.totalorder %s22, 1
      %p45 = por %p43, %p44
      %p47 = scmp.ne.s32.totalorder %s30, %s46
      %p48 = scmp.eq.s32.totalorder %s22, 0
      %p49 = por %p47, %p48
      %s51 = sadd.s32 %s50, 1
      %p54 = scmp.eq.s32.totalorder %s16, 1
      %p55 = scmp.ne.s32.totalorder %s50, %s52
      %p56 = scmp.eq.s32.totalorder %s16, 0
      %p57 = por %p55, %p56
      %p58 = scmp.ne.s32.totalorder %s50, %s52
      %p59 = scmp.eq.s32.totalorder %s21, 1
      %p60 = por %p58, %p59
      %p61 = scmp.ne.s32.totalorder %s52, %s53
      %p62 = scmp.eq.s32.totalorder %s21, 0
      %p63 = por %p61, %p62
      %p64 = scmp.ne.s32.totalorder %s52, %s53
      %p65 = scmp.eq.s32.totalorder %s22, 1
      %p66 = por %p64, %p65
      %p68 = scmp.ne.s32.totalorder %s53, %s67
      %p69 = scmp.eq.s32.totalorder %s22, 0
      %p70 = por %p68, %p69
      %s72 = sadd.s32 %s71, 1
      %p75 = scmp.eq.s32.totalorder %s16, 1
      %p76 = scmp.ne.s32.totalorder %s71, %s73
      %p77 = scmp.eq.s32.totalorder %s16, 0
      %p78 = por %p76, %p77
      %p79 = scmp.ne.s32.totalorder %s71, %s73
      %p80 = scmp.eq.s32.totalorder %s21, 1
      %p81 = por %p79, %p80
      %p82 = scmp.ne.s32.totalorder %s73, %s74
      %p83 = scmp.eq.s32.totalorder %s21, 0
      %p84 = por %p82, %p83
      %p85 = scmp.ne.s32.totalorder %s73, %s74
      %p86 = scmp.eq.s32.totalorder %s22, 1
      %p87 = por %p85, %p86
      %p89 = scmp.ne.s32.totalorder %s74, %s88
      %p90 = scmp.eq.s32.totalorder %s22, 0
      %p91 = por %p89, %p90
      %s93 = sadd.s32 %s92, 1
      %p96 = scmp.eq.s32.totalorder %s16, 1
      %p97 = scmp.ne.s32.totalorder %s92, %s94
      %p98 = scmp.eq.s32.totalorder %s16, 0
      %p99 = por %p97, %p98
      %p100 = scmp.ne.s32.totalorder %s92, %s94
      %p101 = scmp.eq.s32.totalorder %s21, 1
      %p102 = por %p100, %p101
      %p103 = scmp.ne.s32.totalorder %s94, %s95
      %p104 = scmp.eq.s32.totalorder %s21, 0
      %p105 = por %p103, %p104
      %p106 = scmp.ne.s32.totalorder %s94, %s95
      %p107 = scmp.eq.s32.totalorder %s22, 1
      %p108 = por %p106, %p107
      %p110 = scmp.ne.s32.totalorder %s95, %s109
      %p111 = scmp.eq.s32.totalorder %s22, 0
      %p112 = por %p110, %p111
      %s114 = sadd.s32 %s113, 1
      %p117 = scmp.eq.s32.totalorder %s16, 1
      %p118 = scmp.ne.s32.totalorder %s113, %s115
      %p119 = scmp.eq.s32.totalorder %s16, 0
      %p120 = por %p118, %p119
      %p121 = scmp.ne.s32.totalorder %s113, %s115
      %p122 = scmp.eq.s32.totalorder %s21, 1
      %p123 = por %p121, %p122
      %p124 = scmp.ne.s32.totalorder %s115, %s116
      %p125 = scmp.eq.s32.totalorder %s21, 0
      %p126 = por %p124, %p125
      %p127 = scmp.ne.s32.totalorder %s115, %s116
      %p128 = scmp.eq.s32.totalorder %s22, 1
      %p129 = por %p127, %p128
      %p131 = scmp.ne.s32.totalorder %s116, %s130
      %p132 = scmp.eq.s32.totalorder %s22, 0
      %p133 = por %p131, %p132
      %s135 = sadd.s32 %s134, 1
      %p138 = scmp.eq.s32.totalorder %s16, 1
      %p139 = scmp.ne.s32.totalorder %s134, %s136
      %p140 = scmp.eq.s32.totalorder %s16, 0
      %p141 = por %p139, %p140
      %p142 = scmp.ne.s32.totalorder %s134, %s136
      %p143 = scmp.eq.s32.totalorder %s21, 1
      %p144 = por %p142, %p143
      %p145 = scmp.ne.s32.totalorder %s136, %s137
      %p146 = scmp.eq.s32.totalorder %s21, 0
      %p147 = por %p145, %p146
      %p148 = scmp.ne.s32.totalorder %s136, %s137
      %p149 = scmp.eq.s32.totalorder %s22, 1
      %p150 = por %p148, %p149
      %p152 = scmp.ne.s32.totalorder %s137, %s151
      %p153 = scmp.eq.s32.totalorder %s22, 0
      %p154 = por %p152, %p153
      %s156 = sadd.s32 %s155, 1
      %p159 = scmp.eq.s32.totalorder %s16, 1
      %p160 = scmp.ne.s32.totalorder %s155, %s157
      %p161 = scmp.eq.s32.totalorder %s16, 0
      %p162 = por %p160, %p161
      %p163 = scmp.ne.s32.totalorder %s155, %s157
      %p164 = scmp.eq.s32.totalorder %s21, 1
      %p165 = por %p163, %p164
      %p166 = scmp.ne.s32.totalorder %s157, %s158
      %p167 = scmp.eq.s32.totalorder %s21, 0
      %p168 = por %p166, %p167
      %p169 = scmp.ne.s32.totalorder %s157, %s158
      %p170 = scmp.eq.s32.totalorder %s22, 1
      %p171 = por %p169, %p170
      %p173 = scmp.ne.s32.totalorder %s158, %s172
      %p174 = scmp.eq.s32.totalorder %s22, 0
      %p175 = por %p173, %p174
      %s176 = ssub.s32 %s16, %s23
      %p177 = scmp.eq.s32.totalorder %s176, 0
      %s179 = sadd.s32 %s178, 1
      %s180 = scalar_select %p177, %s178, %s179
      %p183 = pneg %p177
      %p184 = scmp.eq.s32.totalorder %s16, 1
      %p185 = por %p183, %p184
      %p186 = scmp.ne.s32.totalorder %s178, %s181
      %p187 = scmp.eq.s32.totalorder %s16, 0
      %p188 = por %p186, %p187
      %p189 = scmp.ne.s32.totalorder %s178, %s181
      %p190 = scmp.eq.s32.totalorder %s21, 1
      %p191 = por %p189, %p190
      %p192 = scmp.ne.s32.totalorder %s181, %s182
      %p193 = scmp.eq.s32.totalorder %s21, 0
      %p194 = por %p192, %p193
      %p195 = scmp.ne.s32.totalorder %s181, %s182
      %p196 = scmp.eq.s32.totalorder %s22, 1
      %p197 = por %p195, %p196
      %p199 = scmp.ne.s32.totalorder %s182, %s198
      %p200 = scmp.eq.s32.totalorder %s22, 0
      %p201 = por %p199, %p200
      %p202 = scmp.le.s32.totalorder 1, %s16
      %p203 = scmp.lt.s32.totalorder %s16, 3
      %p204 = pnand %p202, %p203
      %p205 = pneg %p204
      // Predicated region
      $region9: #{_lambda_.1} parent=5 // pred_check
        _
      $region10: #{_lambda_.1} parent=5 // pred_check_branch
        %207 = sbr.rel (%p204) target = $region12
      $region11: #{_lambda_.1} parent=5 // pred_region
        %s208 = ssub.s32 %s16, 1
        // Predicated region
        $region13: #{_lambda_.1} parent=11 // pred_check
          %p209 = pneg %p63
        $region14: #{_lambda_.1} parent=11 // pred_check_branch
          %211 = sbr.rel (%p209) target = $region16
        $region15: #{_lambda_.1} parent=11 // pred_region
          _
        $region16: #{_lambda_.1} parent=11 // pred_fallthru
          _
        // Predicated region
        $region17: #{_lambda_.1} parent=11 // pred_check
          %p212 = pneg %p84
        $region18: #{_lambda_.1} parent=11 // pred_check_branch
          %214 = sbr.rel (%p212) target = $region20
        $region19: #{_lambda_.1} parent=11 // pred_region
          _
        $region20: #{_lambda_.1} parent=11 // pred_fallthru
          _
        // Predicated region
        $region21: #{_lambda_.1} parent=11 // pred_check
          %p215 = pneg %p105
        $region22: #{_lambda_.1} parent=11 // pred_check_branch
          %217 = sbr.rel (%p215) target = $region24
        $region23: #{_lambda_.1} parent=11 // pred_region
          _
        $region24: #{_lambda_.1} parent=11 // pred_fallthru
          _
        // Predicated region
        $region25: #{_lambda_.1} parent=11 // pred_check
          %p218 = pneg %p126
        $region26: #{_lambda_.1} parent=11 // pred_check_branch
          %220 = sbr.rel (%p218) target = $region28
        $region27: #{_lambda_.1} parent=11 // pred_region
          _
        $region28: #{_lambda_.1} parent=11 // pred_fallthru
          _
        // Predicated region
        $region29: #{_lambda_.1} parent=11 // pred_check
          %p221 = pneg %p147
        $region30: #{_lambda_.1} parent=11 // pred_check_branch
          %223 = sbr.rel (%p221) target = $region32
        $region31: #{_lambda_.1} parent=11 // pred_region
          _
        $region32: #{_lambda_.1} parent=11 // pred_fallthru
          _
        // Predicated region
        $region33: #{_lambda_.1} parent=11 // pred_check
          %p224 = pneg %p168
        $region34: #{_lambda_.1} parent=11 // pred_check_branch
          %226 = sbr.rel (%p224) target = $region36
        $region35: #{_lambda_.1} parent=11 // pred_region
          _
        $region36: #{_lambda_.1} parent=11 // pred_fallthru
          _
      $region12: #{_lambda_.1} parent=5 // pred_fallthru
        _
      %p227 = scmp.lt.s32.totalorder %s16, 2
      // Predicated region
      $region37: #{_lambda_.1} parent=5 // pred_check
        %p228 = pneg %p227
      $region38: #{_lambda_.1} parent=5 // pred_check_branch
        %230 = sbr.rel (%p228) target = $region40
      $region39: #{_lambda_.1} parent=5 // pred_region
        // Predicated region
        $region41: #{_lambda_.1} parent=39 // pred_check
          %p231 = pneg %p36
        $region42: #{_lambda_.1} parent=39 // pred_check_branch
          %233 = sbr.rel (%p231) target = $region44
        $region43: #{_lambda_.1} parent=39 // pred_region
          %p234 = scmp.lt.s32.totalorder %s16, 1
          %s235 = scalar_select %p234, %s16, 1
          %s236 = smul.addr %s235, 30
          %s237 = smul.addr %s236, 8
          %s238 = scalar_lea.vmem %s0, %s237
        $region44: #{_lambda_.1} parent=39 // pred_fallthru
          _
      $region40: #{_lambda_.1} parent=5 // pred_fallthru
        _
      %p239 = scmp.le.s32.totalorder 1, %s16
      %p240 = scmp.lt.s32.totalorder %s16, 3
      %p241 = pnand %p239, %p240
      %p242 = pneg %p241
      // Predicated region
      $region45: #{_lambda_.1} parent=5 // pred_check
        _
      $region46: #{_lambda_.1} parent=5 // pred_check_branch
        %244 = sbr.rel (%p241) target = $region48
      $region47: #{_lambda_.1} parent=5 // pred_region
        %s245 = ssub.s32 %s16, 1
        %p246 = scmp.lt.s32.totalorder %s21, 1
        %s247 = scalar_select %p246, %s21, 1
        %s248 = smul.addr %s247, 30
        %s249 = smul.addr %s248, 8
        %s250 = scalar_lea.vmem %s0, %s249
        %p251 = pneg %p42
        %p252 = pneg %p39
        %p253 = pneg %p63
        %p254 = pneg %p60
        %p255 = pneg %p84
        %p256 = pneg %p81
        %p257 = pneg %p105
        %p258 = pneg %p102
        %p259 = pneg %p126
        %p260 = pneg %p123
        %p261 = pneg %p147
        %p262 = pneg %p144
        %p263 = pneg %p168
        %p264 = pneg %p165
        %p265 = pneg %p194
        %p266 = pneg %p191
        %s267 = sand.u32 %s181, 1
        %s268 = scalar_lea.sflag [#allocation3], %s267
        %s269 = sand.u32 %s181, 1
        %s270 = smul.addr %s269, 240
        %s271 = scalar_lea.vmem [#allocation2], %s270
        %p272 = scmp.lt.s32.totalorder %s21, 1
        %s273 = scalar_select %p272, %s21, 1
        %s274 = smul.addr %s273, 30
        %s275 = smul.addr %s274, 8
        %s276 = scalar_lea.vmem %s0, %s275
        %v278 = vld [vmem:[%s276] sm:$0xff]
        %v279 = vld [vmem:[%s276 + $0x8] sm:$0xff]
        %v280 = vld [vmem:[%s276 + $0x10] sm:$0xff]
        %v281 = vld [vmem:[%s276 + $0x18] sm:$0xff]
        %v282 = vld [vmem:[%s276 + $0x20] sm:$0xff]
        %v283 = vld [vmem:[%s276 + $0x28] sm:$0xff]
        %v284 = vld [vmem:[%s276 + $0x30] sm:$0xff]
        %v285 = vld [vmem:[%s276 + $0x38] sm:$0xff]
        %v286 = vld [vmem:[%s276 + $0x40] sm:$0xff]
        %v287 = vld [vmem:[%s276 + $0x48] sm:$0xff]
        %v288 = vld [vmem:[%s276 + $0x50] sm:$0xff]
        %v289 = vld [vmem:[%s276 + $0x58] sm:$0xff]
        %v290 = vld [vmem:[%s276 + $0x60] sm:$0xff]
        %v291 = vld [vmem:[%s276 + $0x68] sm:$0xff]
        %v292 = vld [vmem:[%s276 + $0x70] sm:$0xff]
        %v293 = vld [vmem:[%s276 + $0x78] sm:$0xff]
        %v294 = vld [vmem:[%s276 + $0x80] sm:$0xff]
        %v295 = vld [vmem:[%s276 + $0x88] sm:$0xff]
        %v296 = vld [vmem:[%s276 + $0x90] sm:$0xff]
        %v297 = vld [vmem:[%s276 + $0x98] sm:$0xff]
        %v298 = vld [vmem:[%s276 + $0xa0] sm:$0xff]
        %v299 = vld [vmem:[%s276 + $0xa8] sm:$0xff]
        %v300 = vld [vmem:[%s276 + $0xb0] sm:$0xff]
        %v301 = vld [vmem:[%s276 + $0xb8] sm:$0xff]
        %v302 = vld [vmem:[%s276 + $0xc0] sm:$0xff]
        %v303 = vld [vmem:[%s276 + $0xc8] sm:$0xff]
        %v304 = vld [vmem:[%s276 + $0xd0] sm:$0xff]
        %v305 = vld [vmem:[%s276 + $0xd8] sm:$0xff]
        %v306 = vld [vmem:[%s276 + $0xe0] sm:$0xff]
        %v307 = vld [vmem:[%s276 + $0xe8] sm:$0xff]
        %v308 = vpack.c.bf16 %v279, %v278
        %v309 = vpack.c.bf16 %v281, %v280
        %v310 = vpack.c.bf16 %v283, %v282
        %v311 = vpack.c.bf16 %v285, %v284
        %v312 = vpack.c.bf16 %v287, %v286
        %v313 = vpack.c.bf16 %v289, %v288
        %v314 = vpack.c.bf16 %v291, %v290
        %v315 = vpack.c.bf16 %v293, %v292
        %v316 = vpack.c.bf16 %v295, %v294
        %v317 = vpack.c.bf16 %v297, %v296
        %v318 = vpack.c.bf16 %v299, %v298
        %v319 = vpack.c.bf16 %v301, %v300
        %v320 = vpack.c.bf16 %v303, %v302
        %v321 = vpack.c.bf16 %v305, %v304
        %v322 = vpack.c.bf16 %v307, %v306
        %v323 = vld [vmem:[%s1] sm:$0xf]
        %v324 = vld [vmem:[%s1 + $0x4] sm:$0xf]
        %v327 = vunpack.c.l.b16 %v323
        %v328 = vunpack.c.l.b16 %v324
        %v329 = vpack.c.b16 %v328, %v327
        %vm331 = vcmask 130048
        %v333 = vsel %vm331, %v308, 0
        %v336 = vsel %vm331, %v309, 0
        %v339 = vsel %vm331, %v310, 0
        %v342 = vsel %vm331, %v311, 0
        %v345 = vsel %vm331, %v312, 0
        %v348 = vsel %vm331, %v313, 0
        %v351 = vsel %vm331, %v314, 0
        %v354 = vsel %vm331, %v315, 0
        %v357 = vsel %vm331, %v316, 0
        %v360 = vsel %vm331, %v317, 0
        %v363 = vsel %vm331, %v318, 0
        %v366 = vsel %vm331, %v319, 0
        %v369 = vsel %vm331, %v320, 0
        %v372 = vsel %vm331, %v321, 0
        %v375 = vsel %vm331, %v322, 0
        %377 = vmatpush.bf16.msra.mxu0 0
        %378 = vmatpush.bf16.msra.mxu0 0
        %379 = vmatpush.bf16.msra.mxu0 0
        %380 = vmatpush.bf16.msra.mxu0 0
        %381 = vmatpush.bf16.msra.mxu0 0
        %382 = vmatpush.bf16.msra.mxu0 0
        %383 = vmatpush.bf16.msra.mxu0 0
        %384 = vmatpush.bf16.msra.mxu0 %v329
        %385 = vmatmul.bf16.gmra.mxu0 %v333
        %v386 = vpop.f32.mrf.mxu0
        %v387 = vadd.f32 0.0, %v386
        %v388 = vpop.f32.mrf.mxu0
        %v389 = vadd.f32 0.0, %v388
        %390 = vmatmul.bf16.gmra.mxu0 %v336
        %v391 = vpop.f32.mrf.mxu0
        %v392 = vadd.f32 0.0, %v391
        %v393 = vpop.f32.mrf.mxu0
        %v394 = vadd.f32 0.0, %v393
        %395 = vmatmul.bf16.gmra.mxu0 %v339
        %v396 = vpop.f32.mrf.mxu0
        %v397 = vadd.f32 0.0, %v396
        %v398 = vpop.f32.mrf.mxu0
        %v399 = vadd.f32 0.0, %v398
        %400 = vmatmul.bf16.gmra.mxu0 %v342
        %v401 = vpop.f32.mrf.mxu0
        %v402 = vadd.f32 0.0, %v401
        %v403 = vpop.f32.mrf.mxu0
        %v404 = vadd.f32 0.0, %v403
        %405 = vmatmul.bf16.gmra.mxu0 %v345
        %v406 = vpop.f32.mrf.mxu0
        %v407 = vadd.f32 0.0, %v406
        %v408 = vpop.f32.mrf.mxu0
        %v409 = vadd.f32 0.0, %v408
        %410 = vmatmul.bf16.gmra.mxu0 %v348
        %v411 = vpop.f32.mrf.mxu0
        %v412 = vadd.f32 0.0, %v411
        %v413 = vpop.f32.mrf.mxu0
        %v414 = vadd.f32 0.0, %v413
        %415 = vmatmul.bf16.gmra.mxu0 %v351
        %v416 = vpop.f32.mrf.mxu0
        %v417 = vadd.f32 0.0, %v416
        %v418 = vpop.f32.mrf.mxu0
        %v419 = vadd.f32 0.0, %v418
        %420 = vmatmul.bf16.gmra.mxu0 %v354
        %v421 = vpop.f32.mrf.mxu0
        %v422 = vadd.f32 0.0, %v421
        %v423 = vpop.f32.mrf.mxu0
        %v424 = vadd.f32 0.0, %v423
        %425 = vmatmul.bf16.gmra.mxu0 %v357
        %v426 = vpop.f32.mrf.mxu0
        %v427 = vadd.f32 0.0, %v426
        %v428 = vpop.f32.mrf.mxu0
        %v429 = vadd.f32 0.0, %v428
        %430 = vmatmul.bf16.gmra.mxu0 %v360
        %v431 = vpop.f32.mrf.mxu0
        %v432 = vadd.f32 0.0, %v431
        %v433 = vpop.f32.mrf.mxu0
        %v434 = vadd.f32 0.0, %v433
        %435 = vmatmul.bf16.gmra.mxu0 %v363
        %v436 = vpop.f32.mrf.mxu0
        %v437 = vadd.f32 0.0, %v436
        %v438 = vpop.f32.mrf.mxu0
        %v439 = vadd.f32 0.0, %v438
        %440 = vmatmul.bf16.gmra.mxu0 %v366
        %v441 = vpop.f32.mrf.mxu0
        %v442 = vadd.f32 0.0, %v441
        %v443 = vpop.f32.mrf.mxu0
        %v444 = vadd.f32 0.0, %v443
        %445 = vmatmul.bf16.gmra.mxu0 %v369
        %v446 = vpop.f32.mrf.mxu0
        %v447 = vadd.f32 0.0, %v446
        %v448 = vpop.f32.mrf.mxu0
        %v449 = vadd.f32 0.0, %v448
        %450 = vmatmul.bf16.gmra.mxu0 %v372
        %v451 = vpop.f32.mrf.mxu0
        %v452 = vadd.f32 0.0, %v451
        %v453 = vpop.f32.mrf.mxu0
        %v454 = vadd.f32 0.0, %v453
        %455 = vmatmul.bf16.gmra.mxu0 %v375
        %v456 = vpop.f32.mrf.mxu0
        %v457 = vadd.f32 0.0, %v456
        %v458 = vpop.f32.mrf.mxu0
        %v459 = vadd.f32 0.0, %v458
        %460 = vdwg.mxu0
        %491 = vrot.lane.b32.xlu0 %v387, 120
        %v492 = vpop.permute.xlu0 %491
        %493 = vrot.lane.b32.xlu0 %v389, 120
        %v494 = vpop.permute.xlu0 %493
        %495 = vrot.lane.b32.xlu0 %v392, 120
        %v496 = vpop.permute.xlu0 %495
        %497 = vrot.lane.b32.xlu0 %v394, 120
        %v498 = vpop.permute.xlu0 %497
        %499 = vrot.lane.b32.xlu0 %v397, 120
        %v500 = vpop.permute.xlu0 %499
        %501 = vrot.lane.b32.xlu0 %v399, 120
        %v502 = vpop.permute.xlu0 %501
        %503 = vrot.lane.b32.xlu0 %v402, 120
        %v504 = vpop.permute.xlu0 %503
        %505 = vrot.lane.b32.xlu0 %v404, 120
        %v506 = vpop.permute.xlu0 %505
        %507 = vrot.lane.b32.xlu0 %v407, 120
        %v508 = vpop.permute.xlu0 %507
        %509 = vrot.lane.b32.xlu0 %v409, 120
        %v510 = vpop.permute.xlu0 %509
        %511 = vrot.lane.b32.xlu0 %v412, 120
        %v512 = vpop.permute.xlu0 %511
        %513 = vrot.lane.b32.xlu0 %v414, 120
        %v514 = vpop.permute.xlu0 %513
        %515 = vrot.lane.b32.xlu0 %v417, 120
        %v516 = vpop.permute.xlu0 %515
        %517 = vrot.lane.b32.xlu0 %v419, 120
        %v518 = vpop.permute.xlu0 %517
        %519 = vrot.lane.b32.xlu0 %v422, 120
        %v520 = vpop.permute.xlu0 %519
        %521 = vrot.lane.b32.xlu0 %v424, 120
        %v522 = vpop.permute.xlu0 %521
        %523 = vrot.lane.b32.xlu0 %v427, 120
        %v524 = vpop.permute.xlu0 %523
        %525 = vrot.lane.b32.xlu0 %v429, 120
        %v526 = vpop.permute.xlu0 %525
        %527 = vrot.lane.b32.xlu0 %v432, 120
        %v528 = vpop.permute.xlu0 %527
        %529 = vrot.lane.b32.xlu0 %v434, 120
        %v530 = vpop.permute.xlu0 %529
        %531 = vrot.lane.b32.xlu0 %v437, 120
        %v532 = vpop.permute.xlu0 %531
        %533 = vrot.lane.b32.xlu0 %v439, 120
        %v534 = vpop.permute.xlu0 %533
        %535 = vrot.lane.b32.xlu0 %v442, 120
        %v536 = vpop.permute.xlu0 %535
        %537 = vrot.lane.b32.xlu0 %v444, 120
        %v538 = vpop.permute.xlu0 %537
        %539 = vrot.lane.b32.xlu0 %v447, 120
        %v540 = vpop.permute.xlu0 %539
        %541 = vrot.lane.b32.xlu0 %v449, 120
        %v542 = vpop.permute.xlu0 %541
        %543 = vrot.lane.b32.xlu0 %v452, 120
        %v544 = vpop.permute.xlu0 %543
        %545 = vrot.lane.b32.xlu0 %v454, 120
        %v546 = vpop.permute.xlu0 %545
        %547 = vrot.lane.b32.xlu0 %v457, 120
        %v548 = vpop.permute.xlu0 %547
        %549 = vrot.lane.b32.xlu0 %v459, 120
        %v550 = vpop.permute.xlu0 %549
        %v581 = vmax.f32 %v387, %v492
        %v582 = vmax.f32 %v389, %v494
        %v583 = vmax.f32 %v392, %v496
        %v584 = vmax.f32 %v394, %v498
        %v585 = vmax.f32 %v397, %v500
        %v586 = vmax.f32 %v399, %v502
        %v587 = vmax.f32 %v402, %v504
        %v588 = vmax.f32 %v404, %v506
        %v589 = vmax.f32 %v407, %v508
        %v590 = vmax.f32 %v409, %v510
        %v591 = vmax.f32 %v412, %v512
        %v592 = vmax.f32 %v414, %v514
        %v593 = vmax.f32 %v417, %v516
        %v594 = vmax.f32 %v419, %v518
        %v595 = vmax.f32 %v422, %v520
        %v596 = vmax.f32 %v424, %v522
        %v597 = vmax.f32 %v427, %v524
        %v598 = vmax.f32 %v429, %v526
        %v599 = vmax.f32 %v432, %v528
        %v600 = vmax.f32 %v434, %v530
        %v601 = vmax.f32 %v437, %v532
        %v602 = vmax.f32 %v439, %v534
        %v603 = vmax.f32 %v442, %v536
        %v604 = vmax.f32 %v444, %v538
        %v605 = vmax.f32 %v447, %v540
        %v606 = vmax.f32 %v449, %v542
        %v607 = vmax.f32 %v452, %v544
        %v608 = vmax.f32 %v454, %v546
        %v609 = vmax.f32 %v457, %v548
        %v610 = vmax.f32 %v459, %v550
        %611 = vrot.lane.b32.xlu0 %v387, 112
        %v612 = vpop.permute.xlu0 %611
        %613 = vrot.lane.b32.xlu0 %v389, 112
        %v614 = vpop.permute.xlu0 %613
        %615 = vrot.lane.b32.xlu0 %v392, 112
        %v616 = vpop.permute.xlu0 %615
        %617 = vrot.lane.b32.xlu0 %v394, 112
        %v618 = vpop.permute.xlu0 %617
        %619 = vrot.lane.b32.xlu0 %v397, 112
        %v620 = vpop.permute.xlu0 %619
        %621 = vrot.lane.b32.xlu0 %v399, 112
        %v622 = vpop.permute.xlu0 %621
        %623 = vrot.lane.b32.xlu0 %v402, 112
        %v624 = vpop.permute.xlu0 %623
        %625 = vrot.lane.b32.xlu0 %v404, 112
        %v626 = vpop.permute.xlu0 %625
        %627 = vrot.lane.b32.xlu0 %v407, 112
        %v628 = vpop.permute.xlu0 %627
        %629 = vrot.lane.b32.xlu0 %v409, 112
        %v630 = vpop.permute.xlu0 %629
        %631 = vrot.lane.b32.xlu0 %v412, 112
        %v632 = vpop.permute.xlu0 %631
        %633 = vrot.lane.b32.xlu0 %v414, 112
        %v634 = vpop.permute.xlu0 %633
        %635 = vrot.lane.b32.xlu0 %v417, 112
        %v636 = vpop.permute.xlu0 %635
        %637 = vrot.lane.b32.xlu0 %v419, 112
        %v638 = vpop.permute.xlu0 %637
        %639 = vrot.lane.b32.xlu0 %v422, 112
        %v640 = vpop.permute.xlu0 %639
        %641 = vrot.lane.b32.xlu0 %v424, 112
        %v642 = vpop.permute.xlu0 %641
        %643 = vrot.lane.b32.xlu0 %v427, 112
        %v644 = vpop.permute.xlu0 %643
        %645 = vrot.lane.b32.xlu0 %v429, 112
        %v646 = vpop.permute.xlu0 %645
        %647 = vrot.lane.b32.xlu0 %v432, 112
        %v648 = vpop.permute.xlu0 %647
        %649 = vrot.lane.b32.xlu0 %v434, 112
        %v650 = vpop.permute.xlu0 %649
        %651 = vrot.lane.b32.xlu0 %v437, 112
        %v652 = vpop.permute.xlu0 %651
        %653 = vrot.lane.b32.xlu0 %v439, 112
        %v654 = vpop.permute.xlu0 %653
        %655 = vrot.lane.b32.xlu0 %v442, 112
        %v656 = vpop.permute.xlu0 %655
        %657 = vrot.lane.b32.xlu0 %v444, 112
        %v658 = vpop.permute.xlu0 %657
        %659 = vrot.lane.b32.xlu0 %v447, 112
        %v660 = vpop.permute.xlu0 %659
        %661 = vrot.lane.b32.xlu0 %v449, 112
        %v662 = vpop.permute.xlu0 %661
        %663 = vrot.lane.b32.xlu0 %v452, 112
        %v664 = vpop.permute.xlu0 %663
        %665 = vrot.lane.b32.xlu0 %v454, 112
        %v666 = vpop.permute.xlu0 %665
        %667 = vrot.lane.b32.xlu0 %v457, 112
        %v668 = vpop.permute.xlu0 %667
        %669 = vrot.lane.b32.xlu0 %v459, 112
        %v670 = vpop.permute.xlu0 %669
        %v701 = vmax.f32 %v581, %v612
        %v702 = vmax.f32 %v582, %v614
        %v703 = vmax.f32 %v583, %v616
        %v704 = vmax.f32 %v584, %v618
        %v705 = vmax.f32 %v585, %v620
        %v706 = vmax.f32 %v586, %v622
        %v707 = vmax.f32 %v587, %v624
        %v708 = vmax.f32 %v588, %v626
        %v709 = vmax.f32 %v589, %v628
        %v710 = vmax.f32 %v590, %v630
        %v711 = vmax.f32 %v591, %v632
        %v712 = vmax.f32 %v592, %v634
        %v713 = vmax.f32 %v593, %v636
        %v714 = vmax.f32 %v594, %v638
        %v715 = vmax.f32 %v595, %v640
        %v716 = vmax.f32 %v596, %v642
        %v717 = vmax.f32 %v597, %v644
        %v718 = vmax.f32 %v598, %v646
        %v719 = vmax.f32 %v599, %v648
        %v720 = vmax.f32 %v600, %v650
        %v721 = vmax.f32 %v601, %v652
        %v722 = vmax.f32 %v602, %v654
        %v723 = vmax.f32 %v603, %v656
        %v724 = vmax.f32 %v604, %v658
        %v725 = vmax.f32 %v605, %v660
        %v726 = vmax.f32 %v606, %v662
        %v727 = vmax.f32 %v607, %v664
        %v728 = vmax.f32 %v608, %v666
        %v729 = vmax.f32 %v609, %v668
        %v730 = vmax.f32 %v610, %v670
        %731 = vxpose.xlu0.b32.start [1/16] %v701, 128
        %732 = vxpose.xlu0.b32.cont [2/16] %v702, 128
        %733 = vxpose.xlu0.b32.cont [3/16] 0.0, 128
        %734 = vxpose.xlu0.b32.cont [4/16] 0.0, 128
        %735 = vxpose.xlu0.b32.cont [5/16] 0.0, 128
        %736 = vxpose.xlu0.b32.cont [6/16] 0.0, 128
        %737 = vxpose.xlu0.b32.cont [7/16] 0.0, 128
        %738 = vxpose.xlu0.b32.cont [8/16] 0.0, 128
        %739 = vxpose.xlu0.b32.cont [9/16] 0.0, 128
        %740 = vxpose.xlu0.b32.cont [10/16] 0.0, 128
        %741 = vxpose.xlu0.b32.cont [11/16] 0.0, 128
        %742 = vxpose.xlu0.b32.cont [12/16] 0.0, 128
        %743 = vxpose.xlu0.b32.cont [13/16] 0.0, 128
        %744 = vxpose.xlu0.b32.cont [14/16] 0.0, 128
        %745 = vxpose.xlu0.b32.cont [15/16] 0.0, 128
        %746 = vxpose.xlu0.b32.end [16/16] 0.0, 128
        %v747 = vpop.trf.xlu0
        %v748 = vpop.trf.xlu0
        %v749 = vpop.trf.xlu0
        %v750 = vpop.trf.xlu0
        %v751 = vpop.trf.xlu0
        %v752 = vpop.trf.xlu0
        %v753 = vpop.trf.xlu0
        %v754 = vpop.trf.xlu0
        %v755 = vpop.trf.xlu0
        %v756 = vpop.trf.xlu0
        %v757 = vpop.trf.xlu0
        %v758 = vpop.trf.xlu0
        %v759 = vpop.trf.xlu0
        %v760 = vpop.trf.xlu0
        %v761 = vpop.trf.xlu0
        %v762 = vpop.trf.xlu0
        %763 = vxpose.xlu0.b32.start [1/16] %v703, 128
        %764 = vxpose.xlu0.b32.cont [2/16] %v704, 128
        %765 = vxpose.xlu0.b32.cont [3/16] 0.0, 128
        %766 = vxpose.xlu0.b32.cont [4/16] 0.0, 128
        %767 = vxpose.xlu0.b32.cont [5/16] 0.0, 128
        %768 = vxpose.xlu0.b32.cont [6/16] 0.0, 128
        %769 = vxpose.xlu0.b32.cont [7/16] 0.0, 128
        %770 = vxpose.xlu0.b32.cont [8/16] 0.0, 128
        %771 = vxpose.xlu0.b32.cont [9/16] 0.0, 128
        %772 = vxpose.xlu0.b32.cont [10/16] 0.0, 128
        %773 = vxpose.xlu0.b32.cont [11/16] 0.0, 128
        %774 = vxpose.xlu0.b32.cont [12/16] 0.0, 128
        %775 = vxpose.xlu0.b32.cont [13/16] 0.0, 128
        %776 = vxpose.xlu0.b32.cont [14/16] 0.0, 128
        %777 = vxpose.xlu0.b32.cont [15/16] 0.0, 128
        %778 = vxpose.xlu0.b32.end [16/16] 0.0, 128
        %v779 = vpop.trf.xlu0
        %v780 = vpop.trf.xlu0
        %v781 = vpop.trf.xlu0
        %v782 = vpop.trf.xlu0
        %v783 = vpop.trf.xlu0
        %v784 = vpop.trf.xlu0
        %v785 = vpop.trf.xlu0
        %v786 = vpop.trf.xlu0
        %v787 = vpop.trf.xlu0
        %v788 = vpop.trf.xlu0
        %v789 = vpop.trf.xlu0
        %v790 = vpop.trf.xlu0
        %v791 = vpop.trf.xlu0
        %v792 = vpop.trf.xlu0
        %v793 = vpop.trf.xlu0
        %v794 = vpop.trf.xlu0
        %795 = vxpose.xlu0.b32.start [1/16] %v705, 128
        %796 = vxpose.xlu0.b32.cont [2/16] %v706, 128
        %797 = vxpose.xlu0.b32.cont [3/16] 0.0, 128
        %798 = vxpose.xlu0.b32.cont [4/16] 0.0, 128
        %799 = vxpose.xlu0.b32.cont [5/16] 0.0, 128
        %800 = vxpose.xlu0.b32.cont [6/16] 0.0, 128
        %801 = vxpose.xlu0.b32.cont [7/16] 0.0, 128
        %802 = vxpose.xlu0.b32.cont [8/16] 0.0, 128
        %803 = vxpose.xlu0.b32.cont [9/16] 0.0, 128
        %804 = vxpose.xlu0.b32.cont [10/16] 0.0, 128
        %805 = vxpose.xlu0.b32.cont [11/16] 0.0, 128
        %806 = vxpose.xlu0.b32.cont [12/16] 0.0, 128
        %807 = vxpose.xlu0.b32.cont [13/16] 0.0, 128
        %808 = vxpose.xlu0.b32.cont [14/16] 0.0, 128
        %809 = vxpose.xlu0.b32.cont [15/16] 0.0, 128
        %810 = vxpose.xlu0.b32.end [16/16] 0.0, 128
        %v811 = vpop.trf.xlu0
        %v812 = vpop.trf.xlu0
        %v813 = vpop.trf.xlu0
        %v814 = vpop.trf.xlu0
        %v815 = vpop.trf.xlu0
        %v816 = vpop.trf.xlu0
        %v817 = vpop.trf.xlu0
        %v818 = vpop.trf.xlu0
        %v819 = vpop.trf.xlu0
        %v820 = vpop.trf.xlu0
        %v821 = vpop.trf.xlu0
        %v822 = vpop.trf.xlu0
        %v823 = vpop.trf.xlu0
        %v824 = vpop.trf.xlu0
        %v825 = vpop.trf.xlu0
        %v826 = vpop.trf.xlu0
        %827 = vxpose.xlu0.b32.start [1/16] %v707, 128
        %828 = vxpose.xlu0.b32.cont [2/16] %v708, 128
        %829 = vxpose.xlu0.b32.cont [3/16] 0.0, 128
        %830 = vxpose.xlu0.b32.cont [4/16] 0.0, 128
        %831 = vxpose.xlu0.b32.cont [5/16] 0.0, 128
        %832 = vxpose.xlu0.b32.cont [6/16] 0.0, 128
        %833 = vxpose.xlu0.b32.cont [7/16] 0.0, 128
        %834 = vxpose.xlu0.b32.cont [8/16] 0.0, 128
        %835 = vxpose.xlu0.b32.cont [9/16] 0.0, 128
        %836 = vxpose.xlu0.b32.cont [10/16] 0.0, 128
        %837 = vxpose.xlu0.b32.cont [11/16] 0.0, 128
        %838 = vxpose.xlu0.b32.cont [12/16] 0.0, 128
        %839 = vxpose.xlu0.b32.cont [13/16] 0.0, 128
        %840 = vxpose.xlu0.b32.cont [14/16] 0.0, 128
        %841 = vxpose.xlu0.b32.cont [15/16] 0.0, 128
        %842 = vxpose.xlu0.b32.end [16/16] 0.0, 128
        %v843 = vpop.trf.xlu0
        %v844 = vpop.trf.xlu0
        %v845 = vpop.trf.xlu0
        %v846 = vpop.trf.xlu0
        %v847 = vpop.trf.xlu0
        %v848 = vpop.trf.xlu0
        %v849 = vpop.trf.xlu0
        %v850 = vpop.trf.xlu0
        %v851 = vpop.trf.xlu0
        %v852 = vpop.trf.xlu0
        %v853 = vpop.trf.xlu0
        %v854 = vpop.trf.xlu0
        %v855 = vpop.trf.xlu0
        %v856 = vpop.trf.xlu0
        %v857 = vpop.trf.xlu0
        %v858 = vpop.trf.xlu0
        %859 = vxpose.xlu0.b32.start [1/16] %v709, 128
        %860 = vxpose.xlu0.b32.cont [2/16] %v710, 128
        %861 = vxpose.xlu0.b32.cont [3/16] 0.0, 128
        %862 = vxpose.xlu0.b32.cont [4/16] 0.0, 128
        %863 = vxpose.xlu0.b32.cont [5/16] 0.0, 128
        %864 = vxpose.xlu0.b32.cont [6/16] 0.0, 128
        %865 = vxpose.xlu0.b32.cont [7/16] 0.0, 128
        %866 = vxpose.xlu0.b32.cont [8/16] 0.0, 128
        %867 = vxpose.xlu0.b32.cont [9/16] 0.0, 128
        %868 = vxpose.xlu0.b32.cont [10/16] 0.0, 128
        %869 = vxpose.xlu0.b32.cont [11/16] 0.0, 128
        %870 = vxpose.xlu0.b32.cont [12/16] 0.0, 128
        %871 = vxpose.xlu0.b32.cont [13/16] 0.0, 128
        %872 = vxpose.xlu0.b32.cont [14/16] 0.0, 128
        %873 = vxpose.xlu0.b32.cont [15/16] 0.0, 128
        %874 = vxpose.xlu0.b32.end [16/16] 0.0, 128
        %v875 = vpop.trf.xlu0
        %v876 = vpop.trf.xlu0
        %v877 = vpop.trf.xlu0
        %v878 = vpop.trf.xlu0
        %v879 = vpop.trf.xlu0
        %v880 = vpop.trf.xlu0
        %v881 = vpop.trf.xlu0
        %v882 = vpop.trf.xlu0
        %v883 = vpop.trf.xlu0
        %v884 = vpop.trf.xlu0
        %v885 = vpop.trf.xlu0
        %v886 = vpop.trf.xlu0
        %v887 = vpop.trf.xlu0
        %v888 = vpop.trf.xlu0
        %v889 = vpop.trf.xlu0
        %v890 = vpop.trf.xlu0
        %891 = vxpose.xlu0.b32.start [1/16] %v711, 128
        %892 = vxpose.xlu0.b32.cont [2/16] %v712, 128
        %893 = vxpose.xlu0.b32.cont [3/16] 0.0, 128
        %894 = vxpose.xlu0.b32.cont [4/16] 0.0, 128
        %895 = vxpose.xlu0.b32.cont [5/16] 0.0, 128
        %896 = vxpose.xlu0.b32.cont [6/16] 0.0, 128
        %897 = vxpose.xlu0.b32.cont [7/16] 0.0, 128
        %898 = vxpose.xlu0.b32.cont [8/16] 0.0, 128
        %899 = vxpose.xlu0.b32.cont [9/16] 0.0, 128
        %900 = vxpose.xlu0.b32.cont [10/16] 0.0, 128
        %901 = vxpose.xlu0.b32.cont [11/16] 0.0, 128
        %902 = vxpose.xlu0.b32.cont [12/16] 0.0, 128
        %903 = vxpose.xlu0.b32.cont [13/16] 0.0, 128
        %904 = vxpose.xlu0.b32.cont [14/16] 0.0, 128
        %905 = vxpose.xlu0.b32.cont [15/16] 0.0, 128
        %906 = vxpose.xlu0.b32.end [16/16] 0.0, 128
        %v907 = vpop.trf.xlu0
        %v908 = vpop.trf.xlu0
        %v909 = vpop.trf.xlu0
        %v910 = vpop.trf.xlu0
        %v911 = vpop.trf.xlu0
        %v912 = vpop.trf.xlu0
        %v913 = vpop.trf.xlu0
        %v914 = vpop.trf.xlu0
        %v915 = vpop.trf.xlu0
        %v916 = vpop.trf.xlu0
        %v917 = vpop.trf.xlu0
        %v918 = vpop.trf.xlu0
        %v919 = vpop.trf.xlu0
        %v920 = vpop.trf.xlu0
        %v921 = vpop.trf.xlu0
        %v922 = vpop.trf.xlu0
        %923 = vxpose.xlu0.b32.start [1/16] %v713, 128
        %924 = vxpose.xlu0.b32.cont [2/16] %v714, 128
        %925 = vxpose.xlu0.b32.cont [3/16] 0.0, 128
        %926 = vxpose.xlu0.b32.cont [4/16] 0.0, 128
        %927 = vxpose.xlu0.b32.cont [5/16] 0.0, 128
        %928 = vxpose.xlu0.b32.cont [6/16] 0.0, 128
        %929 = vxpose.xlu0.b32.cont [7/16] 0.0, 128
        %930 = vxpose.xlu0.b32.cont [8/16] 0.0, 128
        %931 = vxpose.xlu0.b32.cont [9/16] 0.0, 128
        %932 = vxpose.xlu0.b32.cont [10/16] 0.0, 128
        %933 = vxpose.xlu0.b32.cont [11/16] 0.0, 128
        %934 = vxpose.xlu0.b32.cont [12/16] 0.0, 128
        %935 = vxpose.xlu0.b32.cont [13/16] 0.0, 128
        %936 = vxpose.xlu0.b32.cont [14/16] 0.0, 128
        %937 = vxpose.xlu0.b32.cont [15/16] 0.0, 128
        %938 = vxpose.xlu0.b32.end [16/16] 0.0, 128
        %v939 = vpop.trf.xlu0
        %v940 = vpop.trf.xlu0
        %v941 = vpop.trf.xlu0
        %v942 = vpop.trf.xlu0
        %v943 = vpop.trf.xlu0
        %v944 = vpop.trf.xlu0
        %v945 = vpop.trf.xlu0
        %v946 = vpop.trf.xlu0
        %v947 = vpop.trf.xlu0
        %v948 = vpop.trf.xlu0
        %v949 = vpop.trf.xlu0
        %v950 = vpop.trf.xlu0
        %v951 = vpop.trf.xlu0
        %v952 = vpop.trf.xlu0
        %v953 = vpop.trf.xlu0
        %v954 = vpop.trf.xlu0
        %955 = vxpose.xlu0.b32.start [1/16] %v715, 128
        %956 = vxpose.xlu0.b32.cont [2/16] %v716, 128
        %957 = vxpose.xlu0.b32.cont [3/16] 0.0, 128
        %958 = vxpose.xlu0.b32.cont [4/16] 0.0, 128
        %959 = vxpose.xlu0.b32.cont [5/16] 0.0, 128
        %960 = vxpose.xlu0.b32.cont [6/16] 0.0, 128
        %961 = vxpose.xlu0.b32.cont [7/16] 0.0, 128
        %962 = vxpose.xlu0.b32.cont [8/16] 0.0, 128
        %963 = vxpose.xlu0.b32.cont [9/16] 0.0, 128
        %964 = vxpose.xlu0.b32.cont [10/16] 0.0, 128
        %965 = vxpose.xlu0.b32.cont [11/16] 0.0, 128
        %966 = vxpose.xlu0.b32.cont [12/16] 0.0, 128
        %967 = vxpose.xlu0.b32.cont [13/16] 0.0, 128
        %968 = vxpose.xlu0.b32.cont [14/16] 0.0, 128
        %969 = vxpose.xlu0.b32.cont [15/16] 0.0, 128
        %970 = vxpose.xlu0.b32.end [16/16] 0.0, 128
        %v971 = vpop.trf.xlu0
        %v972 = vpop.trf.xlu0
        %v973 = vpop.trf.xlu0
        %v974 = vpop.trf.xlu0
        %v975 = vpop.trf.xlu0
        %v976 = vpop.trf.xlu0
        %v977 = vpop.trf.xlu0
        %v978 = vpop.trf.xlu0
        %v979 = vpop.trf.xlu0
        %v980 = vpop.trf.xlu0
        %v981 = vpop.trf.xlu0
        %v982 = vpop.trf.xlu0
        %v983 = vpop.trf.xlu0
        %v984 = vpop.trf.xlu0
        %v985 = vpop.trf.xlu0
        %v986 = vpop.trf.xlu0
        %987 = vxpose.xlu0.b32.start [1/16] %v717, 128
        %988 = vxpose.xlu0.b32.cont [2/16] %v718, 128
        %989 = vxpose.xlu0.b32.cont [3/16] 0.0, 128
        %990 = vxpose.xlu0.b32.cont [4/16] 0.0, 128
        %991 = vxpose.xlu0.b32.cont [5/16] 0.0, 128
        %992 = vxpose.xlu0.b32.cont [6/16] 0.0, 128
        %993 = vxpose.xlu0.b32.cont [7/16] 0.0, 128
        %994 = vxpose.xlu0.b32.cont [8/16] 0.0, 128
        %995 = vxpose.xlu0.b32.cont [9/16] 0.0, 128
        %996 = vxpose.xlu0.b32.cont [10/16] 0.0, 128
        %997 = vxpose.xlu0.b32.cont [11/16] 0.0, 128
        %998 = vxpose.xlu0.b32.cont [12/16] 0.0, 128
        %999 = vxpose.xlu0.b32.cont [13/16] 0.0, 128
        %1000 = vxpose.xlu0.b32.cont [14/16] 0.0, 128
        %1001 = vxpose.xlu0.b32.cont [15/16] 0.0, 128
        %1002 = vxpose.xlu0.b32.end [16/16] 0.0, 128
        %v1003 = vpop.trf.xlu0
        %v1004 = vpop.trf.xlu0
        %v1005 = vpop.trf.xlu0
        %v1006 = vpop.trf.xlu0
        %v1007 = vpop.trf.xlu0
        %v1008 = vpop.trf.xlu0
        %v1009 = vpop.trf.xlu0
        %v1010 = vpop.trf.xlu0
        %v1011 = vpop.trf.xlu0
        %v1012 = vpop.trf.xlu0
        %v1013 = vpop.trf.xlu0
        %v1014 = vpop.trf.xlu0
        %v1015 = vpop.trf.xlu0
        %v1016 = vpop.trf.xlu0
        %v1017 = vpop.trf.xlu0
        %v1018 = vpop.trf.xlu0
        %1019 = vxpose.xlu0.b32.start [1/16] %v719, 128
        %1020 = vxpose.xlu0.b32.cont [2/16] %v720, 128
        %1021 = vxpose.xlu0.b32.cont [3/16] 0.0, 128
        %1022 = vxpose.xlu0.b32.cont [4/16] 0.0, 128
        %1023 = vxpose.xlu0.b32.cont [5/16] 0.0, 128
        %1024 = vxpose.xlu0.b32.cont [6/16] 0.0, 128
        %1025 = vxpose.xlu0.b32.cont [7/16] 0.0, 128
        %1026 = vxpose.xlu0.b32.cont [8/16] 0.0, 128
        %1027 = vxpose.xlu0.b32.cont [9/16] 0.0, 128
        %1028 = vxpose.xlu0.b32.cont [10/16] 0.0, 128
        %1029 = vxpose.xlu0.b32.cont [11/16] 0.0, 128
        %1030 = vxpose.xlu0.b32.cont [12/16] 0.0, 128
        %1031 = vxpose.xlu0.b32.cont [13/16] 0.0, 128
        %1032 = vxpose.xlu0.b32.cont [14/16] 0.0, 128
        %1033 = vxpose.xlu0.b32.cont [15/16] 0.0, 128
        %1034 = vxpose.xlu0.b32.end [16/16] 0.0, 128
        %v1035 = vpop.trf.xlu0
        %v1036 = vpop.trf.xlu0
        %v1037 = vpop.trf.xlu0
        %v1038 = vpop.trf.xlu0
        %v1039 = vpop.trf.xlu0
        %v1040 = vpop.trf.xlu0
        %v1041 = vpop.trf.xlu0
        %v1042 = vpop.trf.xlu0
        %v1043 = vpop.trf.xlu0
        %v1044 = vpop.trf.xlu0
        %v1045 = vpop.trf.xlu0
        %v1046 = vpop.trf.xlu0
        %v1047 = vpop.trf.xlu0
        %v1048 = vpop.trf.xlu0
        %v1049 = vpop.trf.xlu0
        %v1050 = vpop.trf.xlu0
        %1051 = vxpose.xlu0.b32.start [1/16] %v721, 128
        %1052 = vxpose.xlu0.b32.cont [2/16] %v722, 128
        %1053 = vxpose.xlu0.b32.cont [3/16] 0.0, 128
        %1054 = vxpose.xlu0.b32.cont [4/16] 0.0, 128
        %1055 = vxpose.xlu0.b32.cont [5/16] 0.0, 128
        %1056 = vxpose.xlu0.b32.cont [6/16] 0.0, 128
        %1057 = vxpose.xlu0.b32.cont [7/16] 0.0, 128
        %1058 = vxpose.xlu0.b32.cont [8/16] 0.0, 128
        %1059 = vxpose.xlu0.b32.cont [9/16] 0.0, 128
        %1060 = vxpose.xlu0.b32.cont [10/16] 0.0, 128
        %1061 = vxpose.xlu0.b32.cont [11/16] 0.0, 128
        %1062 = vxpose.xlu0.b32.cont [12/16] 0.0, 128
        %1063 = vxpose.xlu0.b32.cont [13/16] 0.0, 128
        %1064 = vxpose.xlu0.b32.cont [14/16] 0.0, 128
        %1065 = vxpose.xlu0.b32.cont [15/16] 0.0, 128
        %1066 = vxpose.xlu0.b32.end [16/16] 0.0, 128
        %v1067 = vpop.trf.xlu0
        %v1068 = vpop.trf.xlu0
        %v1069 = vpop.trf.xlu0
        %v1070 = vpop.trf.xlu0
        %v1071 = vpop.trf.xlu0
        %v1072 = vpop.trf.xlu0
        %v1073 = vpop.trf.xlu0
        %v1074 = vpop.trf.xlu0
        %v1075 = vpop.trf.xlu0
        %v1076 = vpop.trf.xlu0
        %v1077 = vpop.trf.xlu0
        %v1078 = vpop.trf.xlu0
        %v1079 = vpop.trf.xlu0
        %v1080 = vpop.trf.xlu0
        %v1081 = vpop.trf.xlu0
        %v1082 = vpop.trf.xlu0
        %1083 = vxpose.xlu0.b32.start [1/16] %v723, 128
        %1084 = vxpose.xlu0.b32.cont [2/16] %v724, 128
        %1085 = vxpose.xlu0.b32.cont [3/16] 0.0, 128
        %1086 = vxpose.xlu0.b32.cont [4/16] 0.0, 128
        %1087 = vxpose.xlu0.b32.cont [5/16] 0.0, 128
        %1088 = vxpose.xlu0.b32.cont [6/16] 0.0, 128
        %1089 = vxpose.xlu0.b32.cont [7/16] 0.0, 128
        %1090 = vxpose.xlu0.b32.cont [8/16] 0.0, 128
        %1091 = vxpose.xlu0.b32.cont [9/16] 0.0, 128
        %1092 = vxpose.xlu0.b32.cont [10/16] 0.0, 128
        %1093 = vxpose.xlu0.b32.cont [11/16] 0.0, 128
        %1094 = vxpose.xlu0.b32.cont [12/16] 0.0, 128
        %1095 = vxpose.xlu0.b32.cont [13/16] 0.0, 128
        %1096 = vxpose.xlu0.b32.cont [14/16] 0.0, 128
        %1097 = vxpose.xlu0.b32.cont [15/16] 0.0, 128
        %1098 = vxpose.xlu0.b32.end [16/16] 0.0, 128
        %v1099 = vpop.trf.xlu0
        %v1100 = vpop.trf.xlu0
        %v1101 = vpop.trf.xlu0
        %v1102 = vpop.trf.xlu0
        %v1103 = vpop.trf.xlu0
        %v1104 = vpop.trf.xlu0
        %v1105 = vpop.trf.xlu0
        %v1106 = vpop.trf.xlu0
        %v1107 = vpop.trf.xlu0
        %v1108 = vpop.trf.xlu0
        %v1109 = vpop.trf.xlu0
        %v1110 = vpop.trf.xlu0
        %v1111 = vpop.trf.xlu0
        %v1112 = vpop.trf.xlu0
        %v1113 = vpop.trf.xlu0
        %v1114 = vpop.trf.xlu0
        %1115 = vxpose.xlu0.b32.start [1/16] %v725, 128
        %1116 = vxpose.xlu0.b32.cont [2/16] %v726, 128
        %1117 = vxpose.xlu0.b32.cont [3/16] 0.0, 128
        %1118 = vxpose.xlu0.b32.cont [4/16] 0.0, 128
        %1119 = vxpose.xlu0.b32.cont [5/16] 0.0, 128
        %1120 = vxpose.xlu0.b32.cont [6/16] 0.0, 128
        %1121 = vxpose.xlu0.b32.cont [7/16] 0.0, 128
        %1122 = vxpose.xlu0.b32.cont [8/16] 0.0, 128
        %1123 = vxpose.xlu0.b32.cont [9/16] 0.0, 128
        %1124 = vxpose.xlu0.b32.cont [10/16] 0.0, 128
        %1125 = vxpose.xlu0.b32.cont [11/16] 0.0, 128
        %1126 = vxpose.xlu0.b32.cont [12/16] 0.0, 128
        %1127 = vxpose.xlu0.b32.cont [13/16] 0.0, 128
        %1128 = vxpose.xlu0.b32.cont [14/16] 0.0, 128
        %1129 = vxpose.xlu0.b32.cont [15/16] 0.0, 128
        %1130 = vxpose.xlu0.b32.end [16/16] 0.0, 128
        %v1131 = vpop.trf.xlu0
        %v1132 = vpop.trf.xlu0
        %v1133 = vpop.trf.xlu0
        %v1134 = vpop.trf.xlu0
        %v1135 = vpop.trf.xlu0
        %v1136 = vpop.trf.xlu0
        %v1137 = vpop.trf.xlu0
        %v1138 = vpop.trf.xlu0
        %v1139 = vpop.trf.xlu0
        %v1140 = vpop.trf.xlu0
        %v1141 = vpop.trf.xlu0
        %v1142 = vpop.trf.xlu0
        %v1143 = vpop.trf.xlu0
        %v1144 = vpop.trf.xlu0
        %v1145 = vpop.trf.xlu0
        %v1146 = vpop.trf.xlu0
        %1147 = vxpose.xlu0.b32.start [1/16] %v727, 128
        %1148 = vxpose.xlu0.b32.cont [2/16] %v728, 128
        %1149 = vxpose.xlu0.b32.cont [3/16] 0.0, 128
        %1150 = vxpose.xlu0.b32.cont [4/16] 0.0, 128
        %1151 = vxpose.xlu0.b32.cont [5/16] 0.0, 128
        %1152 = vxpose.xlu0.b32.cont [6/16] 0.0, 128
        %1153 = vxpose.xlu0.b32.cont [7/16] 0.0, 128
        %1154 = vxpose.xlu0.b32.cont [8/16] 0.0, 128
        %1155 = vxpose.xlu0.b32.cont [9/16] 0.0, 128
        %1156 = vxpose.xlu0.b32.cont [10/16] 0.0, 128
        %1157 = vxpose.xlu0.b32.cont [11/16] 0.0, 128
        %1158 = vxpose.xlu0.b32.cont [12/16] 0.0, 128
        %1159 = vxpose.xlu0.b32.cont [13/16] 0.0, 128
        %1160 = vxpose.xlu0.b32.cont [14/16] 0.0, 128
        %1161 = vxpose.xlu0.b32.cont [15/16] 0.0, 128
        %1162 = vxpose.xlu0.b32.end [16/16] 0.0, 128
        %v1163 = vpop.trf.xlu0
        %v1164 = vpop.trf.xlu0
        %v1165 = vpop.trf.xlu0
        %v1166 = vpop.trf.xlu0
        %v1167 = vpop.trf.xlu0
        %v1168 = vpop.trf.xlu0
        %v1169 = vpop.trf.xlu0
        %v1170 = vpop.trf.xlu0
        %v1171 = vpop.trf.xlu0
        %v1172 = vpop.trf.xlu0
        %v1173 = vpop.trf.xlu0
        %v1174 = vpop.trf.xlu0
        %v1175 = vpop.trf.xlu0
        %v1176 = vpop.trf.xlu0
        %v1177 = vpop.trf.xlu0
        %v1178 = vpop.trf.xlu0
        %1179 = vxpose.xlu0.b32.start [1/16] %v729, 128
        %1180 = vxpose.xlu0.b32.cont [2/16] %v730, 128
        %1181 = vxpose.xlu0.b32.cont [3/16] 0.0, 128
        %1182 = vxpose.xlu0.b32.cont [4/16] 0.0, 128
        %1183 = vxpose.xlu0.b32.cont [5/16] 0.0, 128
        %1184 = vxpose.xlu0.b32.cont [6/16] 0.0, 128
        %1185 = vxpose.xlu0.b32.cont [7/16] 0.0, 128
        %1186 = vxpose.xlu0.b32.cont [8/16] 0.0, 128
        %1187 = vxpose.xlu0.b32.cont [9/16] 0.0, 128
        %1188 = vxpose.xlu0.b32.cont [10/16] 0.0, 128
        %1189 = vxpose.xlu0.b32.cont [11/16] 0.0, 128
        %1190 = vxpose.xlu0.b32.cont [12/16] 0.0, 128
        %1191 = vxpose.xlu0.b32.cont [13/16] 0.0, 128
        %1192 = vxpose.xlu0.b32.cont [14/16] 0.0, 128
        %1193 = vxpose.xlu0.b32.cont [15/16] 0.0, 128
        %1194 = vxpose.xlu0.b32.end [16/16] 0.0, 128
        %v1195 = vpop.trf.xlu0
        %v1196 = vpop.trf.xlu0
        %v1197 = vpop.trf.xlu0
        %v1198 = vpop.trf.xlu0
        %v1199 = vpop.trf.xlu0
        %v1200 = vpop.trf.xlu0
        %v1201 = vpop.trf.xlu0
        %v1202 = vpop.trf.xlu0
        %v1203 = vpop.trf.xlu0
        %v1204 = vpop.trf.xlu0
        %v1205 = vpop.trf.xlu0
        %v1206 = vpop.trf.xlu0
        %v1207 = vpop.trf.xlu0
        %v1208 = vpop.trf.xlu0
        %v1209 = vpop.trf.xlu0
        %v1210 = vpop.trf.xlu0
        %v1211 = vpack.c.bf16 %v779, %v747
        %v1212 = vpack.c.bf16 %v843, %v811
        %v1213 = vpack.c.bf16 %v907, %v875
        %v1214 = vpack.c.bf16 %v971, %v939
        %v1215 = vpack.c.bf16 %v1035, %v1003
        %v1216 = vpack.c.bf16 %v1099, %v1067
        %v1217 = vpack.c.bf16 %v1163, %v1131
        %v1218 = vpack.c.bf16 %v1195, %v1195
        %v1219 = vld [vmem:[%s2] sm:$0xf]
        %v1220 = vld [vmem:[%s2 + $0x4] sm:$0xf]
        %v1223 = vunpack.c.l.b16 %v1219
        %v1224 = vunpack.c.l.b16 %v1220
        %v1225 = vpack.c.b16 %v1224, %v1223
        %v1228 = vsel %vm331, %v1211, 0
        %v1231 = vsel %vm331, %v1212, 0
        %v1234 = vsel %vm331, %v1213, 0
        %v1237 = vsel %vm331, %v1214, 0
        %v1240 = vsel %vm331, %v1215, 0
        %v1243 = vsel %vm331, %v1216, 0
        %v1246 = vsel %vm331, %v1217, 0
        %v1249 = vsel %vm331, %v1218, 0
        %1251 = vmatpush.bf16.msra.mxu0 0
        %1252 = vmatpush.bf16.msra.mxu0 0
        %1253 = vmatpush.bf16.msra.mxu0 0
        %1254 = vmatpush.bf16.msra.mxu0 0
        %1255 = vmatpush.bf16.msra.mxu0 0
        %1256 = vmatpush.bf16.msra.mxu0 0
        %1257 = vmatpush.bf16.msra.mxu0 0
        %1258 = vmatpush.bf16.msra.mxu0 %v1225
        %1259 = vmatmul.bf16.gmra.mxu0 %v1228
        %v1260 = vpop.f32.mrf.mxu0
        %v1261 = vadd.f32 0.0, %v1260
        %v1262 = vpop.f32.mrf.mxu0
        %v1263 = vadd.f32 0.0, %v1262
        %1264 = vmatmul.bf16.gmra.mxu0 %v1231
        %v1265 = vpop.f32.mrf.mxu0
        %v1266 = vadd.f32 0.0, %v1265
        %v1267 = vpop.f32.mrf.mxu0
        %v1268 = vadd.f32 0.0, %v1267
        %1269 = vmatmul.bf16.gmra.mxu0 %v1234
        %v1270 = vpop.f32.mrf.mxu0
        %v1271 = vadd.f32 0.0, %v1270
        %v1272 = vpop.f32.mrf.mxu0
        %v1273 = vadd.f32 0.0, %v1272
        %1274 = vmatmul.bf16.gmra.mxu0 %v1237
        %v1275 = vpop.f32.mrf.mxu0
        %v1276 = vadd.f32 0.0, %v1275
        %v1277 = vpop.f32.mrf.mxu0
        %v1278 = vadd.f32 0.0, %v1277
        %1279 = vmatmul.bf16.gmra.mxu0 %v1240
        %v1280 = vpop.f32.mrf.mxu0
        %v1281 = vadd.f32 0.0, %v1280
        %v1282 = vpop.f32.mrf.mxu0
        %v1283 = vadd.f32 0.0, %v1282
        %1284 = vmatmul.bf16.gmra.mxu0 %v1243
        %v1285 = vpop.f32.mrf.mxu0
        %v1286 = vadd.f32 0.0, %v1285
        %v1287 = vpop.f32.mrf.mxu0
        %v1288 = vadd.f32 0.0, %v1287
        %1289 = vmatmul.bf16.gmra.mxu0 %v1246
        %v1290 = vpop.f32.mrf.mxu0
        %v1291 = vadd.f32 0.0, %v1290
        %v1292 = vpop.f32.mrf.mxu0
        %v1293 = vadd.f32 0.0, %v1292
        %1294 = vmatmul.bf16.gmra.mxu0 %v1249
        %v1295 = vpop.f32.mrf.mxu0
        %v1296 = vadd.f32 0.0, %v1295
        %v1297 = vpop.f32.mrf.mxu0
        %1298 = vdwg.mxu0
        %1314 = vrot.lane.b32.xlu0 %v1261, 120
        %v1315 = vpop.permute.xlu0 %1314
        %1316 = vrot.lane.b32.xlu0 %v1263, 120
        %v1317 = vpop.permute.xlu0 %1316
        %1318 = vrot.lane.b32.xlu0 %v1266, 120
        %v1319 = vpop.permute.xlu0 %1318
        %1320 = vrot.lane.b32.xlu0 %v1268, 120
        %v1321 = vpop.permute.xlu0 %1320
        %1322 = vrot.lane.b32.xlu0 %v1271, 120
        %v1323 = vpop.permute.xlu0 %1322
        %1324 = vrot.lane.b32.xlu0 %v1273, 120
        %v1325 = vpop.permute.xlu0 %1324
        %1326 = vrot.lane.b32.xlu0 %v1276, 120
        %v1327 = vpop.permute.xlu0 %1326
        %1328 = vrot.lane.b32.xlu0 %v1278, 120
        %v1329 = vpop.permute.xlu0 %1328
        %1330 = vrot.lane.b32.xlu0 %v1281, 120
        %v1331 = vpop.permute.xlu0 %1330
        %1332 = vrot.lane.b32.xlu0 %v1283, 120
        %v1333 = vpop.permute.xlu0 %1332
        %1334 = vrot.lane.b32.xlu0 %v1286, 120
        %v1335 = vpop.permute.xlu0 %1334
        %1336 = vrot.lane.b32.xlu0 %v1288, 120
        %v1337 = vpop.permute.xlu0 %1336
        %1338 = vrot.lane.b32.xlu0 %v1291, 120
        %v1339 = vpop.permute.xlu0 %1338
        %1340 = vrot.lane.b32.xlu0 %v1293, 120
        %v1341 = vpop.permute.xlu0 %1340
        %1342 = vrot.lane.b32.xlu0 %v1296, 120
        %v1343 = vpop.permute.xlu0 %1342
        %v1359 = vmax.f32 %v1261, %v1315
        %v1360 = vmax.f32 %v1263, %v1317
        %v1361 = vmax.f32 %v1266, %v1319
        %v1362 = vmax.f32 %v1268, %v1321
        %v1363 = vmax.f32 %v1271, %v1323
        %v1364 = vmax.f32 %v1273, %v1325
        %v1365 = vmax.f32 %v1276, %v1327
        %v1366 = vmax.f32 %v1278, %v1329
        %v1367 = vmax.f32 %v1281, %v1331
        %v1368 = vmax.f32 %v1283, %v1333
        %v1369 = vmax.f32 %v1286, %v1335
        %v1370 = vmax.f32 %v1288, %v1337
        %v1371 = vmax.f32 %v1291, %v1339
        %v1372 = vmax.f32 %v1293, %v1341
        %v1373 = vmax.f32 %v1296, %v1343
        %1374 = vrot.lane.b32.xlu0 %v1261, 112
        %v1375 = vpop.permute.xlu0 %1374
        %1376 = vrot.lane.b32.xlu0 %v1263, 112
        %v1377 = vpop.permute.xlu0 %1376
        %1378 = vrot.lane.b32.xlu0 %v1266, 112
        %v1379 = vpop.permute.xlu0 %1378
        %1380 = vrot.lane.b32.xlu0 %v1268, 112
        %v1381 = vpop.permute.xlu0 %1380
        %1382 = vrot.lane.b32.xlu0 %v1271, 112
        %v1383 = vpop.permute.xlu0 %1382
        %1384 = vrot.lane.b32.xlu0 %v1273, 112
        %v1385 = vpop.permute.xlu0 %1384
        %1386 = vrot.lane.b32.xlu0 %v1276, 112
        %v1387 = vpop.permute.xlu0 %1386
        %1388 = vrot.lane.b32.xlu0 %v1278, 112
        %v1389 = vpop.permute.xlu0 %1388
        %1390 = vrot.lane.b32.xlu0 %v1281, 112
        %v1391 = vpop.permute.xlu0 %1390
        %1392 = vrot.lane.b32.xlu0 %v1283, 112
        %v1393 = vpop.permute.xlu0 %1392
        %1394 = vrot.lane.b32.xlu0 %v1286, 112
        %v1395 = vpop.permute.xlu0 %1394
        %1396 = vrot.lane.b32.xlu0 %v1288, 112
        %v1397 = vpop.permute.xlu0 %1396
        %1398 = vrot.lane.b32.xlu0 %v1291, 112
        %v1399 = vpop.permute.xlu0 %1398
        %1400 = vrot.lane.b32.xlu0 %v1293, 112
        %v1401 = vpop.permute.xlu0 %1400
        %1402 = vrot.lane.b32.xlu0 %v1296, 112
        %v1403 = vpop.permute.xlu0 %1402
        %v1419 = vmax.f32 %v1359, %v1375
        %v1420 = vmax.f32 %v1360, %v1377
        %v1421 = vmax.f32 %v1361, %v1379
        %v1422 = vmax.f32 %v1362, %v1381
        %v1423 = vmax.f32 %v1363, %v1383
        %v1424 = vmax.f32 %v1364, %v1385
        %v1425 = vmax.f32 %v1365, %v1387
        %v1426 = vmax.f32 %v1366, %v1389
        %v1427 = vmax.f32 %v1367, %v1391
        %v1428 = vmax.f32 %v1368, %v1393
        %v1429 = vmax.f32 %v1369, %v1395
        %v1430 = vmax.f32 %v1370, %v1397
        %v1431 = vmax.f32 %v1371, %v1399
        %v1432 = vmax.f32 %v1372, %v1401
        %v1433 = vmax.f32 %v1373, %v1403
        %v1434 = vpack.c.bf16 %v1419, %v1419
        %v1435 = vpack.c.bf16 %v1420, %v1420
        %v1436 = vpack.c.bf16 %v1421, %v1421
        %v1437 = vpack.c.bf16 %v1422, %v1422
        %v1438 = vpack.c.bf16 %v1423, %v1423
        %v1439 = vpack.c.bf16 %v1424, %v1424
        %v1440 = vpack.c.bf16 %v1425, %v1425
        %v1441 = vpack.c.bf16 %v1426, %v1426
        %v1442 = vpack.c.bf16 %v1427, %v1427
        %v1443 = vpack.c.bf16 %v1428, %v1428
        %v1444 = vpack.c.bf16 %v1429, %v1429
        %v1445 = vpack.c.bf16 %v1430, %v1430
        %v1446 = vpack.c.bf16 %v1431, %v1431
        %v1447 = vpack.c.bf16 %v1432, %v1432
        %v1448 = vpack.c.bf16 %v1433, %v1433
        %v1454 = vunpack.c.l.b16 %v1439
        %v1455 = vunpack.c.l.b16 %v1440
        %v1456 = vunpack.c.l.b16 %v1441
        %v1457 = vunpack.c.l.b16 %v1442
        %v1458 = vunpack.c.l.b16 %v1443
        %v1459 = vpack.c.b16 %v1454, %v1454
        %v1460 = vpack.c.b16 %v1455, %v1455
        %v1461 = vpack.c.b16 %v1456, %v1456
        %v1462 = vpack.c.b16 %v1457, %v1457
        %v1463 = vpack.c.b16 %v1458, %v1458
        %1464 = vrot.lane.b32.xlu0 %v1459, 8
        %v1465 = vpop.permute.xlu0 %1464
        %1466 = vrot.lane.b32.xlu0 %v1460, 8
        %v1467 = vpop.permute.xlu0 %1466
        %1468 = vrot.lane.b32.xlu0 %v1461, 8
        %v1469 = vpop.permute.xlu0 %1468
        %1470 = vrot.lane.b32.xlu0 %v1462, 8
        %v1471 = vpop.permute.xlu0 %1470
        %1472 = vrot.lane.b32.xlu0 %v1463, 8
        %v1473 = vpop.permute.xlu0 %1472
        %v1479 = vunpack.c.l.b16 %v1444
        %v1480 = vunpack.c.l.b16 %v1445
        %v1481 = vunpack.c.l.b16 %v1446
        %v1482 = vunpack.c.l.b16 %v1447
        %v1483 = vunpack.c.l.b16 %v1448
        %v1484 = vpack.c.b16 %v1479, %v1479
        %v1485 = vpack.c.b16 %v1480, %v1480
        %v1486 = vpack.c.b16 %v1481, %v1481
        %v1487 = vpack.c.b16 %v1482, %v1482
        %v1488 = vpack.c.b16 %v1483, %v1483
        %1489 = vrot.lane.b32.xlu0 %v1484, 16
        %v1490 = vpop.permute.xlu0 %1489
        %1491 = vrot.lane.b32.xlu0 %v1485, 16
        %v1492 = vpop.permute.xlu0 %1491
        %1493 = vrot.lane.b32.xlu0 %v1486, 16
        %v1494 = vpop.permute.xlu0 %1493
        %1495 = vrot.lane.b32.xlu0 %v1487, 16
        %v1496 = vpop.permute.xlu0 %1495
        %1497 = vrot.lane.b32.xlu0 %v1488, 16
        %v1498 = vpop.permute.xlu0 %1497
        %vm1499 = vcmask 64512
        %v1502 = vsel %vm1499, %v1434, %v1465
        %v1505 = vsel %vm1499, %v1435, %v1467
        %v1508 = vsel %vm1499, %v1436, %v1469
        %v1511 = vsel %vm1499, %v1437, %v1471
        %v1514 = vsel %vm1499, %v1438, %v1473
        %v1516 = vsel %vm331, %v1502, %v1490
        %v1518 = vsel %vm331, %v1505, %v1492
        %v1520 = vsel %vm331, %v1508, %v1494
        %v1522 = vsel %vm331, %v1511, %v1496
        %v1524 = vsel %vm331, %v1514, %v1498
        %v1530 = vrot.slane %v1516, 7
        %v1531 = vrot.slane %v1518, 7
        %v1532 = vrot.slane %v1520, 7
        %v1533 = vrot.slane %v1522, 7
        %v1534 = vrot.slane %v1524, 7
        %vm1535 = vcmask 1040384
        %v1538 = vsel %vm1535, 0, %v1530
        %v1540 = vsel %vm1535, 0, %v1531
        %v1542 = vsel %vm1535, 0, %v1532
        %v1544 = vsel %vm1535, 0, %v1533
        %v1546 = vsel %vm1535, 0, %v1534
        %vm1547 = vcmask 1044480
        %v1548 = vsel %vm1547, %v1538, 0
        %v1549 = vsel %vm1547, %v1540, 0
        %v1550 = vsel %vm1547, %v1542, 0
        %v1551 = vsel %vm1547, %v1544, 0
        %v1552 = vsel %vm1547, %v1546, 0
        %v1553 = vld [vmem:[%s6] sm:$0x1]
        %v1555 = vperm.slane %v1553, 0
        %v1557 = vld [vmem:[%s3] sm:$0xf]
        %v1558 = vld [vmem:[%s3 + $0x4] sm:$0xf]
        %v1559 = vld [vmem:[%s3 + $0x8] sm:$0xf]
        %v1565 = vunpack.c.l.b16 %v1548
        %v1566 = vunpack.c.l.b16 %v1549
        %v1567 = vunpack.c.l.b16 %v1550
        %v1568 = vunpack.c.l.b16 %v1551
        %v1569 = vunpack.c.l.b16 %v1552
        %v1570 = vpack.c.b16 %v1566, %v1565
        %v1571 = vpack.c.b16 %v1568, %v1567
        %v1572 = vpack.c.b16 %v1569, %v1569
        %v1576 = vunpack.c.l.b16 %v1557
        %v1577 = vunpack.c.l.b16 %v1558
        %v1578 = vunpack.c.l.b16 %v1559
        %v1579 = vpack.c.b16 %v1577, %v1576
        %v1580 = vpack.c.b16 %v1578, %v1578
        %vm1582 = vcmask 195584
        %v1584 = vsel %vm1582, %v1570, 0
        %v1587 = vsel %vm1582, %v1571, 0
        %v1590 = vsel %vm1582, %v1572, 0
        %vm1592 = vcmask 1043456
        %v1594 = vsel %vm1592, %v1580, 0
        %1596 = vmatpush.bf16.msra.mxu0 0
        %1597 = vmatpush.bf16.msra.mxu0 0
        %1598 = vmatpush.bf16.msra.mxu0 0
        %1599 = vmatpush.bf16.msra.mxu0 0
        %1600 = vmatpush.bf16.msra.mxu0 0
        %1601 = vmatpush.bf16.msra.mxu0 0
        %1602 = vmatpush.bf16.msra.mxu0 %v1594
        %1603 = vmatpush.bf16.msra.mxu0 %v1579
        %1604 = vmatmul.bf16.gmra.mxu0 %v1584
        %v1605 = vpop.f32.mrf.mxu0
        %v1606 = vadd.f32 0.0, %v1605
        %v1607 = vpop.f32.mrf.mxu0
        %v1608 = vadd.f32 0.0, %v1607
        %1609 = vmatmul.bf16.gmra.mxu0 %v1587
        %v1610 = vpop.f32.mrf.mxu0
        %v1611 = vadd.f32 0.0, %v1610
        %v1612 = vpop.f32.mrf.mxu0
        %v1613 = vadd.f32 0.0, %v1612
        %1614 = vmatmul.bf16.gmra.mxu0 %v1590
        %v1615 = vpop.f32.mrf.mxu0
        %v1616 = vadd.f32 0.0, %v1615
        %v1617 = vpop.f32.mrf.mxu0
        %1618 = vdwg.mxu0
        %v1619 = vadd.f32 %v1555, %v1606
        %v1620 = vadd.f32 %v1555, %v1608
        %v1621 = vadd.f32 %v1555, %v1611
        %v1622 = vadd.f32 %v1555, %v1613
        %v1623 = vadd.f32 %v1555, %v1616
        %v1624 = vunpack.c.h.b16 %v1548
        %v1625 = vunpack.c.h.b16 %v1549
        %v1626 = vunpack.c.h.b16 %v1550
        %v1627 = vunpack.c.h.b16 %v1551
        %v1628 = vunpack.c.h.b16 %v1552
        %v1629 = vpack.c.b16 %v1565, %v1565
        %v1630 = vpack.c.b16 %v1624, %v1624
        %v1631 = vpack.c.b16 %v1566, %v1566
        %v1632 = vpack.c.b16 %v1625, %v1625
        %v1633 = vpack.c.b16 %v1567, %v1567
        %v1634 = vpack.c.b16 %v1626, %v1626
        %v1635 = vpack.c.b16 %v1568, %v1568
        %v1636 = vpack.c.b16 %v1627, %v1627
        %v1637 = vpack.c.b16 %v1628, %v1628
        %vm1638 = vsmask.f32 3328
        %vm1639 = vsmask.f32 7440
        %vm1640 = vmor %vm1638, %vm1639
        %v1642 = vshrl.u32 %v1629, 16
        %v1644 = vrot.slane %v1642, 4
        %v1645 = vshll.u32 %v1629, 16
        %v1647 = vrot.slane %v1645, 5
        %v1648 = vor.u32 %v1644, %v1647
        %v1649 = vrot.slane %v1648, 4
        %v1651 = vshll.u32 %v1630, 16
        %v1653 = vrot.slane %v1651, 5
        %v1654 = vsel %vm1640, %v1649, %v1653
        %v1656 = vshrl.u32 %v1631, 16
        %v1658 = vrot.slane %v1656, 4
        %v1659 = vshll.u32 %v1631, 16
        %v1661 = vrot.slane %v1659, 5
        %v1662 = vor.u32 %v1658, %v1661
        %v1663 = vrot.slane %v1662, 4
        %v1665 = vshll.u32 %v1632, 16
        %v1667 = vrot.slane %v1665, 5
        %v1668 = vsel %vm1640, %v1663, %v1667
        %v1670 = vshrl.u32 %v1633, 16
        %v1672 = vrot.slane %v1670, 4
        %v1673 = vshll.u32 %v1633, 16
        %v1675 = vrot.slane %v1673, 5
        %v1676 = vor.u32 %v1672, %v1675
        %v1677 = vrot.slane %v1676, 4
        %v1679 = vshll.u32 %v1634, 16
        %v1681 = vrot.slane %v1679, 5
        %v1682 = vsel %vm1640, %v1677, %v1681
        %v1684 = vshrl.u32 %v1635, 16
        %v1686 = vrot.slane %v1684, 4
        %v1687 = vshll.u32 %v1635, 16
        %v1689 = vrot.slane %v1687, 5
        %v1690 = vor.u32 %v1686, %v1689
        %v1691 = vrot.slane %v1690, 4
        %v1693 = vshll.u32 %v1636, 16
        %v1695 = vrot.slane %v1693, 5
        %v1696 = vsel %vm1640, %v1691, %v1695
        %v1697 = vshrl.u32 %v1572, 16
        %v1699 = vrot.slane %v1697, 4
        %v1700 = vshll.u32 %v1572, 16
        %v1702 = vrot.slane %v1700, 5
        %v1703 = vor.u32 %v1699, %v1702
        %v1704 = vrot.slane %v1703, 4
        %v1706 = vshll.u32 %v1637, 16
        %v1708 = vrot.slane %v1706, 5
        %v1709 = vsel %vm1640, %v1704, %v1708
        %s1710 = scalar_lea.vmem %s3, 12
        %v1711 = vld [vmem:[%s1710] sm:$0xf]
        %v1712 = vld [vmem:[%s1710 + $0x4] sm:$0xf]
        %v1713 = vld [vmem:[%s1710 + $0x8] sm:$0xf]
        %v1714 = vunpack.c.l.b16 %v1654
        %v1715 = vunpack.c.l.b16 %v1668
        %v1716 = vunpack.c.l.b16 %v1682
        %v1717 = vunpack.c.l.b16 %v1696
        %v1718 = vunpack.c.l.b16 %v1709
        %v1719 = vpack.c.b16 %v1715, %v1714
        %v1720 = vpack.c.b16 %v1717, %v1716
        %v1721 = vpack.c.b16 %v1718, %v1718
        %v1725 = vunpack.c.l.b16 %v1711
        %v1726 = vunpack.c.l.b16 %v1712
        %v1727 = vunpack.c.l.b16 %v1713
        %v1728 = vpack.c.b16 %v1726, %v1725
        %v1729 = vpack.c.b16 %v1727, %v1727
        %v1732 = vsel %vm1582, %v1719, 0
        %v1735 = vsel %vm1582, %v1720, 0
        %v1738 = vsel %vm1582, %v1721, 0
        %v1741 = vsel %vm1592, %v1729, 0
        %1743 = vmatpush.bf16.msra.mxu0 0
        %1744 = vmatpush.bf16.msra.mxu0 0
        %1745 = vmatpush.bf16.msra.mxu0 0
        %1746 = vmatpush.bf16.msra.mxu0 0
        %1747 = vmatpush.bf16.msra.mxu0 0
        %1748 = vmatpush.bf16.msra.mxu0 0
        %1749 = vmatpush.bf16.msra.mxu0 %v1741
        %1750 = vmatpush.bf16.msra.mxu0 %v1728
        %1751 = vmatmul.bf16.gmra.mxu0 %v1732
        %v1752 = vpop.f32.mrf.mxu0
        %v1753 = vadd.f32 0.0, %v1752
        %v1754 = vpop.f32.mrf.mxu0
        %v1755 = vadd.f32 0.0, %v1754
        %1756 = vmatmul.bf16.gmra.mxu0 %v1735
        %v1757 = vpop.f32.mrf.mxu0
        %v1758 = vadd.f32 0.0, %v1757
        %v1759 = vpop.f32.mrf.mxu0
        %v1760 = vadd.f32 0.0, %v1759
        %1761 = vmatmul.bf16.gmra.mxu0 %v1738
        %v1762 = vpop.f32.mrf.mxu0
        %v1763 = vadd.f32 0.0, %v1762
        %v1764 = vpop.f32.mrf.mxu0
        %1765 = vdwg.mxu0
        %v1766 = vadd.f32 %v1619, %v1753
        %v1767 = vadd.f32 %v1620, %v1755
        %v1768 = vadd.f32 %v1621, %v1758
        %v1769 = vadd.f32 %v1622, %v1760
        %v1770 = vadd.f32 %v1623, %v1763
        %vm1771 = vcmask 1042432
        %vm1772 = vcmask 1046532
        %vm1773 = vmor %vm1771, %vm1772
        %v1774 = vrot.slane %v1629, 5
        %v1775 = vrot.slane %v1774, 4
        %v1776 = vrot.slane %v1630, 5
        %v1777 = vsel %vm1773, %v1775, %v1776
        %v1778 = vrot.slane %v1631, 5
        %v1779 = vrot.slane %v1778, 4
        %v1780 = vrot.slane %v1632, 5
        %v1781 = vsel %vm1773, %v1779, %v1780
        %v1782 = vrot.slane %v1633, 5
        %v1783 = vrot.slane %v1782, 4
        %v1784 = vrot.slane %v1634, 5
        %v1785 = vsel %vm1773, %v1783, %v1784
        %v1786 = vrot.slane %v1635, 5
        %v1787 = vrot.slane %v1786, 4
        %v1788 = vrot.slane %v1636, 5
        %v1789 = vsel %vm1773, %v1787, %v1788
        %v1790 = vrot.slane %v1572, 5
        %v1791 = vrot.slane %v1790, 4
        %v1792 = vrot.slane %v1637, 5
        %v1793 = vsel %vm1773, %v1791, %v1792
        %s1794 = scalar_lea.vmem %s3, 24
        %v1795 = vld [vmem:[%s1794] sm:$0xf]
        %v1796 = vld [vmem:[%s1794 + $0x4] sm:$0xf]
        %v1797 = vld [vmem:[%s1794 + $0x8] sm:$0xf]
        %v1798 = vunpack.c.l.b16 %v1777
        %v1799 = vunpack.c.l.b16 %v1781
        %v1800 = vunpack.c.l.b16 %v1785
        %v1801 = vunpack.c.l.b16 %v1789
        %v1802 = vunpack.c.l.b16 %v1793
        %v1803 = vpack.c.b16 %v1799, %v1798
        %v1804 = vpack.c.b16 %v1801, %v1800
        %v1805 = vpack.c.b16 %v1802, %v1802
        %v1809 = vunpack.c.l.b16 %v1795
        %v1810 = vunpack.c.l.b16 %v1796
        %v1811 = vunpack.c.l.b16 %v1797
        %v1812 = vpack.c.b16 %v1810, %v1809
        %v1813 = vpack.c.b16 %v1811, %v1811
        %v1816 = vsel %vm1582, %v1803, 0
        %v1819 = vsel %vm1582, %v1804, 0
        %v1822 = vsel %vm1582, %v1805, 0
        %v1825 = vsel %vm1592, %v1813, 0
        %1827 = vmatpush.bf16.msra.mxu0 0
        %1828 = vmatpush.bf16.msra.mxu0 0
        %1829 = vmatpush.bf16.msra.mxu0 0
        %1830 = vmatpush.bf16.msra.mxu0 0
        %1831 = vmatpush.bf16.msra.mxu0 0
        %1832 = vmatpush.bf16.msra.mxu0 0
        %1833 = vmatpush.bf16.msra.mxu0 %v1825
        %1834 = vmatpush.bf16.msra.mxu0 %v1812
        %1835 = vmatmul.bf16.gmra.mxu0 %v1816
        %v1836 = vpop.f32.mrf.mxu0
        %v1837 = vadd.f32 0.0, %v1836
        %v1838 = vpop.f32.mrf.mxu0
        %v1839 = vadd.f32 0.0, %v1838
        %1840 = vmatmul.bf16.gmra.mxu0 %v1819
        %v1841 = vpop.f32.mrf.mxu0
        %v1842 = vadd.f32 0.0, %v1841
        %v1843 = vpop.f32.mrf.mxu0
        %v1844 = vadd.f32 0.0, %v1843
        %1845 = vmatmul.bf16.gmra.mxu0 %v1822
        %v1846 = vpop.f32.mrf.mxu0
        %v1847 = vadd.f32 0.0, %v1846
        %v1848 = vpop.f32.mrf.mxu0
        %1849 = vdwg.mxu0
        %v1850 = vadd.f32 %v1766, %v1837
        %v1851 = vadd.f32 %v1767, %v1839
        %v1852 = vadd.f32 %v1768, %v1842
        %v1853 = vadd.f32 %v1769, %v1844
        %v1854 = vadd.f32 %v1770, %v1847
        %vm1855 = vsmask.f32 2304
        %vm1856 = vsmask.f32 6416
        %vm1857 = vmor %vm1855, %vm1856
        %v1858 = vrot.slane %v1642, 5
        %v1859 = vrot.slane %v1645, 6
        %v1860 = vor.u32 %v1858, %v1859
        %v1861 = vrot.slane %v1860, 4
        %v1862 = vshrl.u32 %v1630, 16
        %v1864 = vrot.slane %v1862, 5
        %v1865 = vrot.slane %v1651, 6
        %v1866 = vor.u32 %v1864, %v1865
        %v1867 = vsel %vm1857, %v1861, %v1866
        %v1868 = vrot.slane %v1656, 5
        %v1869 = vrot.slane %v1659, 6
        %v1870 = vor.u32 %v1868, %v1869
        %v1871 = vrot.slane %v1870, 4
        %v1872 = vshrl.u32 %v1632, 16
        %v1874 = vrot.slane %v1872, 5
        %v1875 = vrot.slane %v1665, 6
        %v1876 = vor.u32 %v1874, %v1875
        %v1877 = vsel %vm1857, %v1871, %v1876
        %v1878 = vrot.slane %v1670, 5
        %v1879 = vrot.slane %v1673, 6
        %v1880 = vor.u32 %v1878, %v1879
        %v1881 = vrot.slane %v1880, 4
        %v1882 = vshrl.u32 %v1634, 16
        %v1884 = vrot.slane %v1882, 5
        %v1885 = vrot.slane %v1679, 6
        %v1886 = vor.u32 %v1884, %v1885
        %v1887 = vsel %vm1857, %v1881, %v1886
        %v1888 = vrot.slane %v1684, 5
        %v1889 = vrot.slane %v1687, 6
        %v1890 = vor.u32 %v1888, %v1889
        %v1891 = vrot.slane %v1890, 4
        %v1892 = vshrl.u32 %v1636, 16
        %v1894 = vrot.slane %v1892, 5
        %v1895 = vrot.slane %v1693, 6
        %v1896 = vor.u32 %v1894, %v1895
        %v1897 = vsel %vm1857, %v1891, %v1896
        %v1898 = vrot.slane %v1697, 5
        %v1899 = vrot.slane %v1700, 6
        %v1900 = vor.u32 %v1898, %v1899
        %v1901 = vrot.slane %v1900, 4
        %v1902 = vshrl.u32 %v1637, 16
        %v1904 = vrot.slane %v1902, 5
        %v1905 = vrot.slane %v1706, 6
        %v1906 = vor.u32 %v1904, %v1905
        %v1907 = vsel %vm1857, %v1901, %v1906
        %s1908 = scalar_lea.vmem %s3, 36
        %v1909 = vld [vmem:[%s1908] sm:$0xf]
        %v1910 = vld [vmem:[%s1908 + $0x4] sm:$0xf]
        %v1911 = vld [vmem:[%s1908 + $0x8] sm:$0xf]
        %v1912 = vunpack.c.l.b16 %v1867
        %v1913 = vunpack.c.l.b16 %v1877
        %v1914 = vunpack.c.l.b16 %v1887
        %v1915 = vunpack.c.l.b16 %v1897
        %v1916 = vunpack.c.l.b16 %v1907
        %v1917 = vpack.c.b16 %v1913, %v1912
        %v1918 = vpack.c.b16 %v1915, %v1914
        %v1919 = vpack.c.b16 %v1916, %v1916
        %v1923 = vunpack.c.l.b16 %v1909
        %v1924 = vunpack.c.l.b16 %v1910
        %v1925 = vunpack.c.l.b16 %v1911
        %v1926 = vpack.c.b16 %v1924, %v1923
        %v1927 = vpack.c.b16 %v1925, %v1925
        %v1930 = vsel %vm1582, %v1917, 0
        %v1933 = vsel %vm1582, %v1918, 0
        %v1936 = vsel %vm1582, %v1919, 0
        %v1939 = vsel %vm1592, %v1927, 0
        %1941 = vmatpush.bf16.msra.mxu0 0
        %1942 = vmatpush.bf16.msra.mxu0 0
        %1943 = vmatpush.bf16.msra.mxu0 0
        %1944 = vmatpush.bf16.msra.mxu0 0
        %1945 = vmatpush.bf16.msra.mxu0 0
        %1946 = vmatpush.bf16.msra.mxu0 0
        %1947 = vmatpush.bf16.msra.mxu0 %v1939
        %1948 = vmatpush.bf16.msra.mxu0 %v1926
        %1949 = vmatmul.bf16.gmra.mxu0 %v1930
        %v1950 = vpop.f32.mrf.mxu0
        %v1951 = vadd.f32 0.0, %v1950
        %v1952 = vpop.f32.mrf.mxu0
        %v1953 = vadd.f32 0.0, %v1952
        %1954 = vmatmul.bf16.gmra.mxu0 %v1933
        %v1955 = vpop.f32.mrf.mxu0
        %v1956 = vadd.f32 0.0, %v1955
        %v1957 = vpop.f32.mrf.mxu0
        %v1958 = vadd.f32 0.0, %v1957
        %1959 = vmatmul.bf16.gmra.mxu0 %v1936
        %v1960 = vpop.f32.mrf.mxu0
        %v1961 = vadd.f32 0.0, %v1960
        %v1962 = vpop.f32.mrf.mxu0
        %1963 = vdwg.mxu0
        %v1964 = vadd.f32 %v1850, %v1951
        %v1965 = vadd.f32 %v1851, %v1953
        %v1966 = vadd.f32 %v1852, %v1956
        %v1967 = vadd.f32 %v1853, %v1958
        %v1968 = vadd.f32 %v1854, %v1961
        %vm1969 = vcmask 1041408
        %vm1970 = vcmask 1045508
        %vm1971 = vmor %vm1969, %vm1970
        %v1972 = vrot.slane %v1629, 6
        %v1973 = vrot.slane %v1972, 4
        %v1974 = vrot.slane %v1630, 6
        %v1975 = vsel %vm1971, %v1973, %v1974
        %v1976 = vrot.slane %v1631, 6
        %v1977 = vrot.slane %v1976, 4
        %v1978 = vrot.slane %v1632, 6
        %v1979 = vsel %vm1971, %v1977, %v1978
        %v1980 = vrot.slane %v1633, 6
        %v1981 = vrot.slane %v1980, 4
        %v1982 = vrot.slane %v1634, 6
        %v1983 = vsel %vm1971, %v1981, %v1982
        %v1984 = vrot.slane %v1635, 6
        %v1985 = vrot.slane %v1984, 4
        %v1986 = vrot.slane %v1636, 6
        %v1987 = vsel %vm1971, %v1985, %v1986
        %v1988 = vrot.slane %v1572, 6
        %v1989 = vrot.slane %v1988, 4
        %v1990 = vrot.slane %v1637, 6
        %v1991 = vsel %vm1971, %v1989, %v1990
        %s1992 = scalar_lea.vmem %s3, 48
        %v1993 = vld [vmem:[%s1992] sm:$0xf]
        %v1994 = vld [vmem:[%s1992 + $0x4] sm:$0xf]
        %v1995 = vld [vmem:[%s1992 + $0x8] sm:$0xf]
        %v1996 = vunpack.c.l.b16 %v1975
        %v1997 = vunpack.c.l.b16 %v1979
        %v1998 = vunpack.c.l.b16 %v1983
        %v1999 = vunpack.c.l.b16 %v1987
        %v2000 = vunpack.c.l.b16 %v1991
        %v2001 = vpack.c.b16 %v1997, %v1996
        %v2002 = vpack.c.b16 %v1999, %v1998
        %v2003 = vpack.c.b16 %v2000, %v2000
        %v2007 = vunpack.c.l.b16 %v1993
        %v2008 = vunpack.c.l.b16 %v1994
        %v2009 = vunpack.c.l.b16 %v1995
        %v2010 = vpack.c.b16 %v2008, %v2007
        %v2011 = vpack.c.b16 %v2009, %v2009
        %v2014 = vsel %vm1582, %v2001, 0
        %v2017 = vsel %vm1582, %v2002, 0
        %v2020 = vsel %vm1582, %v2003, 0
        %v2023 = vsel %vm1592, %v2011, 0
        %2025 = vmatpush.bf16.msra.mxu0 0
        %2026 = vmatpush.bf16.msra.mxu0 0
        %2027 = vmatpush.bf16.msra.mxu0 0
        %2028 = vmatpush.bf16.msra.mxu0 0
        %2029 = vmatpush.bf16.msra.mxu0 0
        %2030 = vmatpush.bf16.msra.mxu0 0
        %2031 = vmatpush.bf16.msra.mxu0 %v2023
        %2032 = vmatpush.bf16.msra.mxu0 %v2010
        %2033 = vmatmul.bf16.gmra.mxu0 %v2014
        %v2034 = vpop.f32.mrf.mxu0
        %v2035 = vadd.f32 0.0, %v2034
        %v2036 = vpop.f32.mrf.mxu0
        %v2037 = vadd.f32 0.0, %v2036
        %2038 = vmatmul.bf16.gmra.mxu0 %v2017
        %v2039 = vpop.f32.mrf.mxu0
        %v2040 = vadd.f32 0.0, %v2039
        %v2041 = vpop.f32.mrf.mxu0
        %v2042 = vadd.f32 0.0, %v2041
        %2043 = vmatmul.bf16.gmra.mxu0 %v2020
        %v2044 = vpop.f32.mrf.mxu0
        %v2045 = vadd.f32 0.0, %v2044
        %v2046 = vpop.f32.mrf.mxu0
        %2047 = vdwg.mxu0
        %v2048 = vadd.f32 %v1964, %v2035
        %v2049 = vadd.f32 %v1965, %v2037
        %v2050 = vadd.f32 %v1966, %v2040
        %v2051 = vadd.f32 %v1967, %v2042
        %v2052 = vadd.f32 %v1968, %v2045
        %2058 = vrot.lane.b32.xlu0 %v2048, 120
        %v2059 = vpop.permute.xlu0 %2058
        %2060 = vrot.lane.b32.xlu0 %v2049, 120
        %v2061 = vpop.permute.xlu0 %2060
        %2062 = vrot.lane.b32.xlu0 %v2050, 120
        %v2063 = vpop.permute.xlu0 %2062
        %2064 = vrot.lane.b32.xlu0 %v2051, 120
        %v2065 = vpop.permute.xlu0 %2064
        %2066 = vrot.lane.b32.xlu0 %v2052, 120
        %v2067 = vpop.permute.xlu0 %2066
        %2073 = vrot.lane.b32.xlu0 %v2048, 112
        %v2074 = vpop.permute.xlu0 %2073
        %2075 = vrot.lane.b32.xlu0 %v2049, 112
        %v2076 = vpop.permute.xlu0 %2075
        %2077 = vrot.lane.b32.xlu0 %v2050, 112
        %v2078 = vpop.permute.xlu0 %2077
        %2079 = vrot.lane.b32.xlu0 %v2051, 112
        %v2080 = vpop.permute.xlu0 %2079
        %2081 = vrot.lane.b32.xlu0 %v2052, 112
        %v2082 = vpop.permute.xlu0 %2081
        %v2088 = vpack.c.bf16 %v2049, %v2048
        %v2089 = vpack.c.bf16 %v2051, %v2050
        %v2090 = vpack.c.bf16 %v2059, %v2052
        %v2091 = vpack.c.bf16 %v2063, %v2061
        %v2092 = vpack.c.bf16 %v2067, %v2065
        %v2093 = vpack.c.bf16 %v2076, %v2074
        %v2094 = vpack.c.bf16 %v2080, %v2078
        %v2095 = vpack.c.bf16 %v2082, %v2082
        %v2096 = vld [vmem:[%s4] sm:$0xf]
        %v2098 = vsel %vm1499, %v2088, 0
        %v2101 = vsel %vm1499, %v2089, 0
        %v2104 = vsel %vm1499, %v2090, 0
        %v2107 = vsel %vm1499, %v2091, 0
        %v2110 = vsel %vm1499, %v2092, 0
        %v2113 = vsel %vm1499, %v2093, 0
        %v2116 = vsel %vm1499, %v2094, 0
        %v2119 = vsel %vm1499, %v2095, 0
        %v2122 = vsel %vm1592, %v2096, 0
        %2124 = vmatpush.bf16.msra.mxu0 0
        %2125 = vmatpush.bf16.msra.mxu0 0
        %2126 = vmatpush.bf16.msra.mxu0 0
        %2127 = vmatpush.bf16.msra.mxu0 0
        %2128 = vmatpush.bf16.msra.mxu0 0
        %2129 = vmatpush.bf16.msra.mxu0 0
        %2130 = vmatpush.bf16.msra.mxu0 0
        %2131 = vmatpush.bf16.msra.mxu0 %v2122
        %2132 = vmatmul.bf16.gmra.mxu0 %v2098
        %v2133 = vpop.f32.mrf.mxu0
        %v2134 = vadd.f32 0.0, %v2133
        %v2135 = vpop.f32.mrf.mxu0
        %v2136 = vadd.f32 0.0, %v2135
        %2137 = vmatmul.bf16.gmra.mxu0 %v2101
        %v2138 = vpop.f32.mrf.mxu0
        %v2139 = vadd.f32 0.0, %v2138
        %v2140 = vpop.f32.mrf.mxu0
        %v2141 = vadd.f32 0.0, %v2140
        %2142 = vmatmul.bf16.gmra.mxu0 %v2104
        %v2143 = vpop.f32.mrf.mxu0
        %v2144 = vadd.f32 0.0, %v2143
        %v2145 = vpop.f32.mrf.mxu0
        %v2146 = vadd.f32 0.0, %v2145
        %2147 = vmatmul.bf16.gmra.mxu0 %v2107
        %v2148 = vpop.f32.mrf.mxu0
        %v2149 = vadd.f32 0.0, %v2148
        %v2150 = vpop.f32.mrf.mxu0
        %v2151 = vadd.f32 0.0, %v2150
        %2152 = vmatmul.bf16.gmra.mxu0 %v2110
        %v2153 = vpop.f32.mrf.mxu0
        %v2154 = vadd.f32 0.0, %v2153
        %v2155 = vpop.f32.mrf.mxu0
        %v2156 = vadd.f32 0.0, %v2155
        %2157 = vmatmul.bf16.gmra.mxu0 %v2113
        %v2158 = vpop.f32.mrf.mxu0
        %v2159 = vadd.f32 0.0, %v2158
        %v2160 = vpop.f32.mrf.mxu0
        %v2161 = vadd.f32 0.0, %v2160
        %2162 = vmatmul.bf16.gmra.mxu0 %v2116
        %v2163 = vpop.f32.mrf.mxu0
        %v2164 = vadd.f32 0.0, %v2163
        %v2165 = vpop.f32.mrf.mxu0
        %v2166 = vadd.f32 0.0, %v2165
        %2167 = vmatmul.bf16.gmra.mxu0 %v2119
        %v2168 = vpop.f32.mrf.mxu0
        %v2169 = vadd.f32 0.0, %v2168
        %v2170 = vpop.f32.mrf.mxu0
        %2171 = vdwg.mxu0
        %2172 = vxpose.xlu0.b32.start [1/16] %v2134, 128
        %2173 = vxpose.xlu0.b32.cont [2/16] 0.0, 128
        %2174 = vxpose.xlu0.b32.cont [3/16] 0.0, 128
        %2175 = vxpose.xlu0.b32.cont [4/16] 0.0, 128
        %2176 = vxpose.xlu0.b32.cont [5/16] 0.0, 128
        %2177 = vxpose.xlu0.b32.cont [6/16] 0.0, 128
        %2178 = vxpose.xlu0.b32.cont [7/16] 0.0, 128
        %2179 = vxpose.xlu0.b32.cont [8/16] 0.0, 128
        %2180 = vxpose.xlu0.b32.cont [9/16] 0.0, 128
        %2181 = vxpose.xlu0.b32.cont [10/16] 0.0, 128
        %2182 = vxpose.xlu0.b32.cont [11/16] 0.0, 128
        %2183 = vxpose.xlu0.b32.cont [12/16] 0.0, 128
        %2184 = vxpose.xlu0.b32.cont [13/16] 0.0, 128
        %2185 = vxpose.xlu0.b32.cont [14/16] 0.0, 128
        %2186 = vxpose.xlu0.b32.cont [15/16] 0.0, 128
        %2187 = vxpose.xlu0.b32.end [16/16] 0.0, 128
        %v2188 = vpop.trf.xlu0
        %v2189 = vpop.trf.xlu0
        %v2190 = vpop.trf.xlu0
        %v2191 = vpop.trf.xlu0
        %v2192 = vpop.trf.xlu0
        %v2193 = vpop.trf.xlu0
        %v2194 = vpop.trf.xlu0
        %v2195 = vpop.trf.xlu0
        %v2196 = vpop.trf.xlu0
        %v2197 = vpop.trf.xlu0
        %v2198 = vpop.trf.xlu0
        %v2199 = vpop.trf.xlu0
        %v2200 = vpop.trf.xlu0
        %v2201 = vpop.trf.xlu0
        %v2202 = vpop.trf.xlu0
        %v2203 = vpop.trf.xlu0
        %2204 = vxpose.xlu0.b32.start [1/16] %v2136, 128
        %2205 = vxpose.xlu0.b32.cont [2/16] 0.0, 128
        %2206 = vxpose.xlu0.b32.cont [3/16] 0.0, 128
        %2207 = vxpose.xlu0.b32.cont [4/16] 0.0, 128
        %2208 = vxpose.xlu0.b32.cont [5/16] 0.0, 128
        %2209 = vxpose.xlu0.b32.cont [6/16] 0.0, 128
        %2210 = vxpose.xlu0.b32.cont [7/16] 0.0, 128
        %2211 = vxpose.xlu0.b32.cont [8/16] 0.0, 128
        %2212 = vxpose.xlu0.b32.cont [9/16] 0.0, 128
        %2213 = vxpose.xlu0.b32.cont [10/16] 0.0, 128
        %2214 = vxpose.xlu0.b32.cont [11/16] 0.0, 128
        %2215 = vxpose.xlu0.b32.cont [12/16] 0.0, 128
        %2216 = vxpose.xlu0.b32.cont [13/16] 0.0, 128
        %2217 = vxpose.xlu0.b32.cont [14/16] 0.0, 128
        %2218 = vxpose.xlu0.b32.cont [15/16] 0.0, 128
        %2219 = vxpose.xlu0.b32.end [16/16] 0.0, 128
        %v2220 = vpop.trf.xlu0
        %v2221 = vpop.trf.xlu0
        %v2222 = vpop.trf.xlu0
        %v2223 = vpop.trf.xlu0
        %v2224 = vpop.trf.xlu0
        %v2225 = vpop.trf.xlu0
        %v2226 = vpop.trf.xlu0
        %v2227 = vpop.trf.xlu0
        %v2228 = vpop.trf.xlu0
        %v2229 = vpop.trf.xlu0
        %v2230 = vpop.trf.xlu0
        %v2231 = vpop.trf.xlu0
        %v2232 = vpop.trf.xlu0
        %v2233 = vpop.trf.xlu0
        %v2234 = vpop.trf.xlu0
        %v2235 = vpop.trf.xlu0
        %2236 = vxpose.xlu0.b32.start [1/16] %v2139, 128
        %2237 = vxpose.xlu0.b32.cont [2/16] 0.0, 128
        %2238 = vxpose.xlu0.b32.cont [3/16] 0.0, 128
        %2239 = vxpose.xlu0.b32.cont [4/16] 0.0, 128
        %2240 = vxpose.xlu0.b32.cont [5/16] 0.0, 128
        %2241 = vxpose.xlu0.b32.cont [6/16] 0.0, 128
        %2242 = vxpose.xlu0.b32.cont [7/16] 0.0, 128
        %2243 = vxpose.xlu0.b32.cont [8/16] 0.0, 128
        %2244 = vxpose.xlu0.b32.cont [9/16] 0.0, 128
        %2245 = vxpose.xlu0.b32.cont [10/16] 0.0, 128
        %2246 = vxpose.xlu0.b32.cont [11/16] 0.0, 128
        %2247 = vxpose.xlu0.b32.cont [12/16] 0.0, 128
        %2248 = vxpose.xlu0.b32.cont [13/16] 0.0, 128
        %2249 = vxpose.xlu0.b32.cont [14/16] 0.0, 128
        %2250 = vxpose.xlu0.b32.cont [15/16] 0.0, 128
        %2251 = vxpose.xlu0.b32.end [16/16] 0.0, 128
        %v2252 = vpop.trf.xlu0
        %v2253 = vpop.trf.xlu0
        %v2254 = vpop.trf.xlu0
        %v2255 = vpop.trf.xlu0
        %v2256 = vpop.trf.xlu0
        %v2257 = vpop.trf.xlu0
        %v2258 = vpop.trf.xlu0
        %v2259 = vpop.trf.xlu0
        %v2260 = vpop.trf.xlu0
        %v2261 = vpop.trf.xlu0
        %v2262 = vpop.trf.xlu0
        %v2263 = vpop.trf.xlu0
        %v2264 = vpop.trf.xlu0
        %v2265 = vpop.trf.xlu0
        %v2266 = vpop.trf.xlu0
        %v2267 = vpop.trf.xlu0
        %2268 = vxpose.xlu0.b32.start [1/16] %v2141, 128
        %2269 = vxpose.xlu0.b32.cont [2/16] 0.0, 128
        %2270 = vxpose.xlu0.b32.cont [3/16] 0.0, 128
        %2271 = vxpose.xlu0.b32.cont [4/16] 0.0, 128
        %2272 = vxpose.xlu0.b32.cont [5/16] 0.0, 128
        %2273 = vxpose.xlu0.b32.cont [6/16] 0.0, 128
        %2274 = vxpose.xlu0.b32.cont [7/16] 0.0, 128
        %2275 = vxpose.xlu0.b32.cont [8/16] 0.0, 128
        %2276 = vxpose.xlu0.b32.cont [9/16] 0.0, 128
        %2277 = vxpose.xlu0.b32.cont [10/16] 0.0, 128
        %2278 = vxpose.xlu0.b32.cont [11/16] 0.0, 128
        %2279 = vxpose.xlu0.b32.cont [12/16] 0.0, 128
        %2280 = vxpose.xlu0.b32.cont [13/16] 0.0, 128
        %2281 = vxpose.xlu0.b32.cont [14/16] 0.0, 128
        %2282 = vxpose.xlu0.b32.cont [15/16] 0.0, 128
        %2283 = vxpose.xlu0.b32.end [16/16] 0.0, 128
        %v2284 = vpop.trf.xlu0
        %v2285 = vpop.trf.xlu0
        %v2286 = vpop.trf.xlu0
        %v2287 = vpop.trf.xlu0
        %v2288 = vpop.trf.xlu0
        %v2289 = vpop.trf.xlu0
        %v2290 = vpop.trf.xlu0
        %v2291 = vpop.trf.xlu0
        %v2292 = vpop.trf.xlu0
        %v2293 = vpop.trf.xlu0
        %v2294 = vpop.trf.xlu0
        %v2295 = vpop.trf.xlu0
        %v2296 = vpop.trf.xlu0
        %v2297 = vpop.trf.xlu0
        %v2298 = vpop.trf.xlu0
        %v2299 = vpop.trf.xlu0
        %2300 = vxpose.xlu0.b32.start [1/16] %v2144, 128
        %2301 = vxpose.xlu0.b32.cont [2/16] 0.0, 128
        %2302 = vxpose.xlu0.b32.cont [3/16] 0.0, 128
        %2303 = vxpose.xlu0.b32.cont [4/16] 0.0, 128
        %2304 = vxpose.xlu0.b32.cont [5/16] 0.0, 128
        %2305 = vxpose.xlu0.b32.cont [6/16] 0.0, 128
        %2306 = vxpose.xlu0.b32.cont [7/16] 0.0, 128
        %2307 = vxpose.xlu0.b32.cont [8/16] 0.0, 128
        %2308 = vxpose.xlu0.b32.cont [9/16] 0.0, 128
        %2309 = vxpose.xlu0.b32.cont [10/16] 0.0, 128
        %2310 = vxpose.xlu0.b32.cont [11/16] 0.0, 128
        %2311 = vxpose.xlu0.b32.cont [12/16] 0.0, 128
        %2312 = vxpose.xlu0.b32.cont [13/16] 0.0, 128
        %2313 = vxpose.xlu0.b32.cont [14/16] 0.0, 128
        %2314 = vxpose.xlu0.b32.cont [15/16] 0.0, 128
        %2315 = vxpose.xlu0.b32.end [16/16] 0.0, 128
        %v2316 = vpop.trf.xlu0
        %v2317 = vpop.trf.xlu0
        %v2318 = vpop.trf.xlu0
        %v2319 = vpop.trf.xlu0
        %v2320 = vpop.trf.xlu0
        %v2321 = vpop.trf.xlu0
        %v2322 = vpop.trf.xlu0
        %v2323 = vpop.trf.xlu0
        %v2324 = vpop.trf.xlu0
        %v2325 = vpop.trf.xlu0
        %v2326 = vpop.trf.xlu0
        %v2327 = vpop.trf.xlu0
        %v2328 = vpop.trf.xlu0
        %v2329 = vpop.trf.xlu0
        %v2330 = vpop.trf.xlu0
        %v2331 = vpop.trf.xlu0
        %2332 = vxpose.xlu0.b32.start [1/16] %v2146, 128
        %2333 = vxpose.xlu0.b32.cont [2/16] 0.0, 128
        %2334 = vxpose.xlu0.b32.cont [3/16] 0.0, 128
        %2335 = vxpose.xlu0.b32.cont [4/16] 0.0, 128
        %2336 = vxpose.xlu0.b32.cont [5/16] 0.0, 128
        %2337 = vxpose.xlu0.b32.cont [6/16] 0.0, 128
        %2338 = vxpose.xlu0.b32.cont [7/16] 0.0, 128
        %2339 = vxpose.xlu0.b32.cont [8/16] 0.0, 128
        %2340 = vxpose.xlu0.b32.cont [9/16] 0.0, 128
        %2341 = vxpose.xlu0.b32.cont [10/16] 0.0, 128
        %2342 = vxpose.xlu0.b32.cont [11/16] 0.0, 128
        %2343 = vxpose.xlu0.b32.cont [12/16] 0.0, 128
        %2344 = vxpose.xlu0.b32.cont [13/16] 0.0, 128
        %2345 = vxpose.xlu0.b32.cont [14/16] 0.0, 128
        %2346 = vxpose.xlu0.b32.cont [15/16] 0.0, 128
        %2347 = vxpose.xlu0.b32.end [16/16] 0.0, 128
        %v2348 = vpop.trf.xlu0
        %v2349 = vpop.trf.xlu0
        %v2350 = vpop.trf.xlu0
        %v2351 = vpop.trf.xlu0
        %v2352 = vpop.trf.xlu0
        %v2353 = vpop.trf.xlu0
        %v2354 = vpop.trf.xlu0
        %v2355 = vpop.trf.xlu0
        %v2356 = vpop.trf.xlu0
        %v2357 = vpop.trf.xlu0
        %v2358 = vpop.trf.xlu0
        %v2359 = vpop.trf.xlu0
        %v2360 = vpop.trf.xlu0
        %v2361 = vpop.trf.xlu0
        %v2362 = vpop.trf.xlu0
        %v2363 = vpop.trf.xlu0
        %2364 = vxpose.xlu0.b32.start [1/16] %v2149, 128
        %2365 = vxpose.xlu0.b32.cont [2/16] 0.0, 128
        %2366 = vxpose.xlu0.b32.cont [3/16] 0.0, 128
        %2367 = vxpose.xlu0.b32.cont [4/16] 0.0, 128
        %2368 = vxpose.xlu0.b32.cont [5/16] 0.0, 128
        %2369 = vxpose.xlu0.b32.cont [6/16] 0.0, 128
        %2370 = vxpose.xlu0.b32.cont [7/16] 0.0, 128
        %2371 = vxpose.xlu0.b32.cont [8/16] 0.0, 128
        %2372 = vxpose.xlu0.b32.cont [9/16] 0.0, 128
        %2373 = vxpose.xlu0.b32.cont [10/16] 0.0, 128
        %2374 = vxpose.xlu0.b32.cont [11/16] 0.0, 128
        %2375 = vxpose.xlu0.b32.cont [12/16] 0.0, 128
        %2376 = vxpose.xlu0.b32.cont [13/16] 0.0, 128
        %2377 = vxpose.xlu0.b32.cont [14/16] 0.0, 128
        %2378 = vxpose.xlu0.b32.cont [15/16] 0.0, 128
        %2379 = vxpose.xlu0.b32.end [16/16] 0.0, 128
        %v2380 = vpop.trf.xlu0
        %v2381 = vpop.trf.xlu0
        %v2382 = vpop.trf.xlu0
        %v2383 = vpop.trf.xlu0
        %v2384 = vpop.trf.xlu0
        %v2385 = vpop.trf.xlu0
        %v2386 = vpop.trf.xlu0
        %v2387 = vpop.trf.xlu0
        %v2388 = vpop.trf.xlu0
        %v2389 = vpop.trf.xlu0
        %v2390 = vpop.trf.xlu0
        %v2391 = vpop.trf.xlu0
        %v2392 = vpop.trf.xlu0
        %v2393 = vpop.trf.xlu0
        %v2394 = vpop.trf.xlu0
        %v2395 = vpop.trf.xlu0
        %2396 = vxpose.xlu0.b32.start [1/16] %v2151, 128
        %2397 = vxpose.xlu0.b32.cont [2/16] 0.0, 128
        %2398 = vxpose.xlu0.b32.cont [3/16] 0.0, 128
        %2399 = vxpose.xlu0.b32.cont [4/16] 0.0, 128
        %2400 = vxpose.xlu0.b32.cont [5/16] 0.0, 128
        %2401 = vxpose.xlu0.b32.cont [6/16] 0.0, 128
        %2402 = vxpose.xlu0.b32.cont [7/16] 0.0, 128
        %2403 = vxpose.xlu0.b32.cont [8/16] 0.0, 128
        %2404 = vxpose.xlu0.b32.cont [9/16] 0.0, 128
        %2405 = vxpose.xlu0.b32.cont [10/16] 0.0, 128
        %2406 = vxpose.xlu0.b32.cont [11/16] 0.0, 128
        %2407 = vxpose.xlu0.b32.cont [12/16] 0.0, 128
        %2408 = vxpose.xlu0.b32.cont [13/16] 0.0, 128
        %2409 = vxpose.xlu0.b32.cont [14/16] 0.0, 128
        %2410 = vxpose.xlu0.b32.cont [15/16] 0.0, 128
        %2411 = vxpose.xlu0.b32.end [16/16] 0.0, 128
        %v2412 = vpop.trf.xlu0
        %v2413 = vpop.trf.xlu0
        %v2414 = vpop.trf.xlu0
        %v2415 = vpop.trf.xlu0
        %v2416 = vpop.trf.xlu0
        %v2417 = vpop.trf.xlu0
        %v2418 = vpop.trf.xlu0
        %v2419 = vpop.trf.xlu0
        %v2420 = vpop.trf.xlu0
        %v2421 = vpop.trf.xlu0
        %v2422 = vpop.trf.xlu0
        %v2423 = vpop.trf.xlu0
        %v2424 = vpop.trf.xlu0
        %v2425 = vpop.trf.xlu0
        %v2426 = vpop.trf.xlu0
        %v2427 = vpop.trf.xlu0
        %2428 = vxpose.xlu0.b32.start [1/16] %v2154, 128
        %2429 = vxpose.xlu0.b32.cont [2/16] 0.0, 128
        %2430 = vxpose.xlu0.b32.cont [3/16] 0.0, 128
        %2431 = vxpose.xlu0.b32.cont [4/16] 0.0, 128
        %2432 = vxpose.xlu0.b32.cont [5/16] 0.0, 128
        %2433 = vxpose.xlu0.b32.cont [6/16] 0.0, 128
        %2434 = vxpose.xlu0.b32.cont [7/16] 0.0, 128
        %2435 = vxpose.xlu0.b32.cont [8/16] 0.0, 128
        %2436 = vxpose.xlu0.b32.cont [9/16] 0.0, 128
        %2437 = vxpose.xlu0.b32.cont [10/16] 0.0, 128
        %2438 = vxpose.xlu0.b32.cont [11/16] 0.0, 128
        %2439 = vxpose.xlu0.b32.cont [12/16] 0.0, 128
        %2440 = vxpose.xlu0.b32.cont [13/16] 0.0, 128
        %2441 = vxpose.xlu0.b32.cont [14/16] 0.0, 128
        %2442 = vxpose.xlu0.b32.cont [15/16] 0.0, 128
        %2443 = vxpose.xlu0.b32.end [16/16] 0.0, 128
        %v2444 = vpop.trf.xlu0
        %v2445 = vpop.trf.xlu0
        %v2446 = vpop.trf.xlu0
        %v2447 = vpop.trf.xlu0
        %v2448 = vpop.trf.xlu0
        %v2449 = vpop.trf.xlu0
        %v2450 = vpop.trf.xlu0
        %v2451 = vpop.trf.xlu0
        %v2452 = vpop.trf.xlu0
        %v2453 = vpop.trf.xlu0
        %v2454 = vpop.trf.xlu0
        %v2455 = vpop.trf.xlu0
        %v2456 = vpop.trf.xlu0
        %v2457 = vpop.trf.xlu0
        %v2458 = vpop.trf.xlu0
        %v2459 = vpop.trf.xlu0
        %2460 = vxpose.xlu0.b32.start [1/16] %v2156, 128
        %2461 = vxpose.xlu0.b32.cont [2/16] 0.0, 128
        %2462 = vxpose.xlu0.b32.cont [3/16] 0.0, 128
        %2463 = vxpose.xlu0.b32.cont [4/16] 0.0, 128
        %2464 = vxpose.xlu0.b32.cont [5/16] 0.0, 128
        %2465 = vxpose.xlu0.b32.cont [6/16] 0.0, 128
        %2466 = vxpose.xlu0.b32.cont [7/16] 0.0, 128
        %2467 = vxpose.xlu0.b32.cont [8/16] 0.0, 128
        %2468 = vxpose.xlu0.b32.cont [9/16] 0.0, 128
        %2469 = vxpose.xlu0.b32.cont [10/16] 0.0, 128
        %2470 = vxpose.xlu0.b32.cont [11/16] 0.0, 128
        %2471 = vxpose.xlu0.b32.cont [12/16] 0.0, 128
        %2472 = vxpose.xlu0.b32.cont [13/16] 0.0, 128
        %2473 = vxpose.xlu0.b32.cont [14/16] 0.0, 128
        %2474 = vxpose.xlu0.b32.cont [15/16] 0.0, 128
        %2475 = vxpose.xlu0.b32.end [16/16] 0.0, 128
        %v2476 = vpop.trf.xlu0
        %v2477 = vpop.trf.xlu0
        %v2478 = vpop.trf.xlu0
        %v2479 = vpop.trf.xlu0
        %v2480 = vpop.trf.xlu0
        %v2481 = vpop.trf.xlu0
        %v2482 = vpop.trf.xlu0
        %v2483 = vpop.trf.xlu0
        %v2484 = vpop.trf.xlu0
        %v2485 = vpop.trf.xlu0
        %v2486 = vpop.trf.xlu0
        %v2487 = vpop.trf.xlu0
        %v2488 = vpop.trf.xlu0
        %v2489 = vpop.trf.xlu0
        %v2490 = vpop.trf.xlu0
        %v2491 = vpop.trf.xlu0
        %2492 = vxpose.xlu0.b32.start [1/16] %v2159, 128
        %2493 = vxpose.xlu0.b32.cont [2/16] 0.0, 128
        %2494 = vxpose.xlu0.b32.cont [3/16] 0.0, 128
        %2495 = vxpose.xlu0.b32.cont [4/16] 0.0, 128
        %2496 = vxpose.xlu0.b32.cont [5/16] 0.0, 128
        %2497 = vxpose.xlu0.b32.cont [6/16] 0.0, 128
        %2498 = vxpose.xlu0.b32.cont [7/16] 0.0, 128
        %2499 = vxpose.xlu0.b32.cont [8/16] 0.0, 128
        %2500 = vxpose.xlu0.b32.cont [9/16] 0.0, 128
        %2501 = vxpose.xlu0.b32.cont [10/16] 0.0, 128
        %2502 = vxpose.xlu0.b32.cont [11/16] 0.0, 128
        %2503 = vxpose.xlu0.b32.cont [12/16] 0.0, 128
        %2504 = vxpose.xlu0.b32.cont [13/16] 0.0, 128
        %2505 = vxpose.xlu0.b32.cont [14/16] 0.0, 128
        %2506 = vxpose.xlu0.b32.cont [15/16] 0.0, 128
        %2507 = vxpose.xlu0.b32.end [16/16] 0.0, 128
        %v2508 = vpop.trf.xlu0
        %v2509 = vpop.trf.xlu0
        %v2510 = vpop.trf.xlu0
        %v2511 = vpop.trf.xlu0
        %v2512 = vpop.trf.xlu0
        %v2513 = vpop.trf.xlu0
        %v2514 = vpop.trf.xlu0
        %v2515 = vpop.trf.xlu0
        %v2516 = vpop.trf.xlu0
        %v2517 = vpop.trf.xlu0
        %v2518 = vpop.trf.xlu0
        %v2519 = vpop.trf.xlu0
        %v2520 = vpop.trf.xlu0
        %v2521 = vpop.trf.xlu0
        %v2522 = vpop.trf.xlu0
        %v2523 = vpop.trf.xlu0
        %2524 = vxpose.xlu0.b32.start [1/16] %v2161, 128
        %2525 = vxpose.xlu0.b32.cont [2/16] 0.0, 128
        %2526 = vxpose.xlu0.b32.cont [3/16] 0.0, 128
        %2527 = vxpose.xlu0.b32.cont [4/16] 0.0, 128
        %2528 = vxpose.xlu0.b32.cont [5/16] 0.0, 128
        %2529 = vxpose.xlu0.b32.cont [6/16] 0.0, 128
        %2530 = vxpose.xlu0.b32.cont [7/16] 0.0, 128
        %2531 = vxpose.xlu0.b32.cont [8/16] 0.0, 128
        %2532 = vxpose.xlu0.b32.cont [9/16] 0.0, 128
        %2533 = vxpose.xlu0.b32.cont [10/16] 0.0, 128
        %2534 = vxpose.xlu0.b32.cont [11/16] 0.0, 128
        %2535 = vxpose.xlu0.b32.cont [12/16] 0.0, 128
        %2536 = vxpose.xlu0.b32.cont [13/16] 0.0, 128
        %2537 = vxpose.xlu0.b32.cont [14/16] 0.0, 128
        %2538 = vxpose.xlu0.b32.cont [15/16] 0.0, 128
        %2539 = vxpose.xlu0.b32.end [16/16] 0.0, 128
        %v2540 = vpop.trf.xlu0
        %v2541 = vpop.trf.xlu0
        %v2542 = vpop.trf.xlu0
        %v2543 = vpop.trf.xlu0
        %v2544 = vpop.trf.xlu0
        %v2545 = vpop.trf.xlu0
        %v2546 = vpop.trf.xlu0
        %v2547 = vpop.trf.xlu0
        %v2548 = vpop.trf.xlu0
        %v2549 = vpop.trf.xlu0
        %v2550 = vpop.trf.xlu0
        %v2551 = vpop.trf.xlu0
        %v2552 = vpop.trf.xlu0
        %v2553 = vpop.trf.xlu0
        %v2554 = vpop.trf.xlu0
        %v2555 = vpop.trf.xlu0
        %2556 = vxpose.xlu0.b32.start [1/16] %v2164, 128
        %2557 = vxpose.xlu0.b32.cont [2/16] 0.0, 128
        %2558 = vxpose.xlu0.b32.cont [3/16] 0.0, 128
        %2559 = vxpose.xlu0.b32.cont [4/16] 0.0, 128
        %2560 = vxpose.xlu0.b32.cont [5/16] 0.0, 128
        %2561 = vxpose.xlu0.b32.cont [6/16] 0.0, 128
        %2562 = vxpose.xlu0.b32.cont [7/16] 0.0, 128
        %2563 = vxpose.xlu0.b32.cont [8/16] 0.0, 128
        %2564 = vxpose.xlu0.b32.cont [9/16] 0.0, 128
        %2565 = vxpose.xlu0.b32.cont [10/16] 0.0, 128
        %2566 = vxpose.xlu0.b32.cont [11/16] 0.0, 128
        %2567 = vxpose.xlu0.b32.cont [12/16] 0.0, 128
        %2568 = vxpose.xlu0.b32.cont [13/16] 0.0, 128
        %2569 = vxpose.xlu0.b32.cont [14/16] 0.0, 128
        %2570 = vxpose.xlu0.b32.cont [15/16] 0.0, 128
        %2571 = vxpose.xlu0.b32.end [16/16] 0.0, 128
        %v2572 = vpop.trf.xlu0
        %v2573 = vpop.trf.xlu0
        %v2574 = vpop.trf.xlu0
        %v2575 = vpop.trf.xlu0
        %v2576 = vpop.trf.xlu0
        %v2577 = vpop.trf.xlu0
        %v2578 = vpop.trf.xlu0
        %v2579 = vpop.trf.xlu0
        %v2580 = vpop.trf.xlu0
        %v2581 = vpop.trf.xlu0
        %v2582 = vpop.trf.xlu0
        %v2583 = vpop.trf.xlu0
        %v2584 = vpop.trf.xlu0
        %v2585 = vpop.trf.xlu0
        %v2586 = vpop.trf.xlu0
        %v2587 = vpop.trf.xlu0
        %2588 = vxpose.xlu0.b32.start [1/16] %v2166, 128
        %2589 = vxpose.xlu0.b32.cont [2/16] 0.0, 128
        %2590 = vxpose.xlu0.b32.cont [3/16] 0.0, 128
        %2591 = vxpose.xlu0.b32.cont [4/16] 0.0, 128
        %2592 = vxpose.xlu0.b32.cont [5/16] 0.0, 128
        %2593 = vxpose.xlu0.b32.cont [6/16] 0.0, 128
        %2594 = vxpose.xlu0.b32.cont [7/16] 0.0, 128
        %2595 = vxpose.xlu0.b32.cont [8/16] 0.0, 128
        %2596 = vxpose.xlu0.b32.cont [9/16] 0.0, 128
        %2597 = vxpose.xlu0.b32.cont [10/16] 0.0, 128
        %2598 = vxpose.xlu0.b32.cont [11/16] 0.0, 128
        %2599 = vxpose.xlu0.b32.cont [12/16] 0.0, 128
        %2600 = vxpose.xlu0.b32.cont [13/16] 0.0, 128
        %2601 = vxpose.xlu0.b32.cont [14/16] 0.0, 128
        %2602 = vxpose.xlu0.b32.cont [15/16] 0.0, 128
        %2603 = vxpose.xlu0.b32.end [16/16] 0.0, 128
        %v2604 = vpop.trf.xlu0
        %v2605 = vpop.trf.xlu0
        %v2606 = vpop.trf.xlu0
        %v2607 = vpop.trf.xlu0
        %v2608 = vpop.trf.xlu0
        %v2609 = vpop.trf.xlu0
        %v2610 = vpop.trf.xlu0
        %v2611 = vpop.trf.xlu0
        %v2612 = vpop.trf.xlu0
        %v2613 = vpop.trf.xlu0
        %v2614 = vpop.trf.xlu0
        %v2615 = vpop.trf.xlu0
        %v2616 = vpop.trf.xlu0
        %v2617 = vpop.trf.xlu0
        %v2618 = vpop.trf.xlu0
        %v2619 = vpop.trf.xlu0
        %2620 = vxpose.xlu0.b32.start [1/16] %v2169, 128
        %2621 = vxpose.xlu0.b32.cont [2/16] 0.0, 128
        %2622 = vxpose.xlu0.b32.cont [3/16] 0.0, 128
        %2623 = vxpose.xlu0.b32.cont [4/16] 0.0, 128
        %2624 = vxpose.xlu0.b32.cont [5/16] 0.0, 128
        %2625 = vxpose.xlu0.b32.cont [6/16] 0.0, 128
        %2626 = vxpose.xlu0.b32.cont [7/16] 0.0, 128
        %2627 = vxpose.xlu0.b32.cont [8/16] 0.0, 128
        %2628 = vxpose.xlu0.b32.cont [9/16] 0.0, 128
        %2629 = vxpose.xlu0.b32.cont [10/16] 0.0, 128
        %2630 = vxpose.xlu0.b32.cont [11/16] 0.0, 128
        %2631 = vxpose.xlu0.b32.cont [12/16] 0.0, 128
        %2632 = vxpose.xlu0.b32.cont [13/16] 0.0, 128
        %2633 = vxpose.xlu0.b32.cont [14/16] 0.0, 128
        %2634 = vxpose.xlu0.b32.cont [15/16] 0.0, 128
        %2635 = vxpose.xlu0.b32.end [16/16] 0.0, 128
        %v2636 = vpop.trf.xlu0
        %v2637 = vpop.trf.xlu0
        %v2638 = vpop.trf.xlu0
        %v2639 = vpop.trf.xlu0
        %v2640 = vpop.trf.xlu0
        %v2641 = vpop.trf.xlu0
        %v2642 = vpop.trf.xlu0
        %v2643 = vpop.trf.xlu0
        %v2644 = vpop.trf.xlu0
        %v2645 = vpop.trf.xlu0
        %v2646 = vpop.trf.xlu0
        %v2647 = vpop.trf.xlu0
        %v2648 = vpop.trf.xlu0
        %v2649 = vpop.trf.xlu0
        %v2650 = vpop.trf.xlu0
        %v2651 = vpop.trf.xlu0
        %v2652 = vpack.c.bf16 %v2189, %v2188
        %v2653 = vpack.c.bf16 %v2221, %v2220
        %v2654 = vpack.c.bf16 %v2253, %v2252
        %v2655 = vpack.c.bf16 %v2285, %v2284
        %v2656 = vpack.c.bf16 %v2317, %v2316
        %v2657 = vpack.c.bf16 %v2349, %v2348
        %v2658 = vpack.c.bf16 %v2381, %v2380
        %v2659 = vpack.c.bf16 %v2413, %v2412
        %v2660 = vpack.c.bf16 %v2445, %v2444
        %v2661 = vpack.c.bf16 %v2477, %v2476
        %v2662 = vpack.c.bf16 %v2509, %v2508
        %v2663 = vpack.c.bf16 %v2541, %v2540
        %v2664 = vpack.c.bf16 %v2573, %v2572
        %v2665 = vpack.c.bf16 %v2605, %v2604
        %v2666 = vpack.c.bf16 %v2637, %v2636
        %v2667 = vld [vmem:[%s5] sm:$0xf]
        %v2669 = vsel %vm1499, %v2652, 0
        %v2672 = vsel %vm1499, %v2653, 0
        %v2675 = vsel %vm1499, %v2654, 0
        %v2678 = vsel %vm1499, %v2655, 0
        %v2681 = vsel %vm1499, %v2656, 0
        %v2684 = vsel %vm1499, %v2657, 0
        %v2687 = vsel %vm1499, %v2658, 0
        %v2690 = vsel %vm1499, %v2659, 0
        %v2693 = vsel %vm1499, %v2660, 0
        %v2696 = vsel %vm1499, %v2661, 0
        %v2699 = vsel %vm1499, %v2662, 0
        %v2702 = vsel %vm1499, %v2663, 0
        %v2705 = vsel %vm1499, %v2664, 0
        %v2708 = vsel %vm1499, %v2665, 0
        %v2711 = vsel %vm1499, %v2666, 0
        %v2714 = vsel %vm1592, %v2667, 0
        %2716 = vmatpush.bf16.msra.mxu0 0
        %2717 = vmatpush.bf16.msra.mxu0 0
        %2718 = vmatpush.bf16.msra.mxu0 0
        %2719 = vmatpush.bf16.msra.mxu0 0
        %2720 = vmatpush.bf16.msra.mxu0 0
        %2721 = vmatpush.bf16.msra.mxu0 0
        %2722 = vmatpush.bf16.msra.mxu0 0
        %2723 = vmatpush.bf16.msra.mxu0 %v2714
        %2724 = vmatmul.bf16.gmra.mxu0 %v2669
        %v2725 = vpop.f32.mrf.mxu0
        %v2726 = vadd.f32 0.0, %v2725
        %v2727 = vpop.f32.mrf.mxu0
        %v2728 = vadd.f32 0.0, %v2727
        %2729 = vmatmul.bf16.gmra.mxu0 %v2672
        %v2730 = vpop.f32.mrf.mxu0
        %v2731 = vadd.f32 0.0, %v2730
        %v2732 = vpop.f32.mrf.mxu0
        %v2733 = vadd.f32 0.0, %v2732
        %2734 = vmatmul.bf16.gmra.mxu0 %v2675
        %v2735 = vpop.f32.mrf.mxu0
        %v2736 = vadd.f32 0.0, %v2735
        %v2737 = vpop.f32.mrf.mxu0
        %v2738 = vadd.f32 0.0, %v2737
        %2739 = vmatmul.bf16.gmra.mxu0 %v2678
        %v2740 = vpop.f32.mrf.mxu0
        %v2741 = vadd.f32 0.0, %v2740
        %v2742 = vpop.f32.mrf.mxu0
        %v2743 = vadd.f32 0.0, %v2742
        %2744 = vmatmul.bf16.gmra.mxu0 %v2681
        %v2745 = vpop.f32.mrf.mxu0
        %v2746 = vadd.f32 0.0, %v2745
        %v2747 = vpop.f32.mrf.mxu0
        %v2748 = vadd.f32 0.0, %v2747
        %2749 = vmatmul.bf16.gmra.mxu0 %v2684
        %v2750 = vpop.f32.mrf.mxu0
        %v2751 = vadd.f32 0.0, %v2750
        %v2752 = vpop.f32.mrf.mxu0
        %v2753 = vadd.f32 0.0, %v2752
        %2754 = vmatmul.bf16.gmra.mxu0 %v2687
        %v2755 = vpop.f32.mrf.mxu0
        %v2756 = vadd.f32 0.0, %v2755
        %v2757 = vpop.f32.mrf.mxu0
        %v2758 = vadd.f32 0.0, %v2757
        %2759 = vmatmul.bf16.gmra.mxu0 %v2690
        %v2760 = vpop.f32.mrf.mxu0
        %v2761 = vadd.f32 0.0, %v2760
        %v2762 = vpop.f32.mrf.mxu0
        %v2763 = vadd.f32 0.0, %v2762
        %2764 = vmatmul.bf16.gmra.mxu0 %v2693
        %v2765 = vpop.f32.mrf.mxu0
        %v2766 = vadd.f32 0.0, %v2765
        %v2767 = vpop.f32.mrf.mxu0
        %v2768 = vadd.f32 0.0, %v2767
        %2769 = vmatmul.bf16.gmra.mxu0 %v2696
        %v2770 = vpop.f32.mrf.mxu0
        %v2771 = vadd.f32 0.0, %v2770
        %v2772 = vpop.f32.mrf.mxu0
        %v2773 = vadd.f32 0.0, %v2772
        %2774 = vmatmul.bf16.gmra.mxu0 %v2699
        %v2775 = vpop.f32.mrf.mxu0
        %v2776 = vadd.f32 0.0, %v2775
        %v2777 = vpop.f32.mrf.mxu0
        %v2778 = vadd.f32 0.0, %v2777
        %2779 = vmatmul.bf16.gmra.mxu0 %v2702
        %v2780 = vpop.f32.mrf.mxu0
        %v2781 = vadd.f32 0.0, %v2780
        %v2782 = vpop.f32.mrf.mxu0
        %v2783 = vadd.f32 0.0, %v2782
        %2784 = vmatmul.bf16.gmra.mxu0 %v2705
        %v2785 = vpop.f32.mrf.mxu0
        %v2786 = vadd.f32 0.0, %v2785
        %v2787 = vpop.f32.mrf.mxu0
        %v2788 = vadd.f32 0.0, %v2787
        %2789 = vmatmul.bf16.gmra.mxu0 %v2708
        %v2790 = vpop.f32.mrf.mxu0
        %v2791 = vadd.f32 0.0, %v2790
        %v2792 = vpop.f32.mrf.mxu0
        %v2793 = vadd.f32 0.0, %v2792
        %2794 = vmatmul.bf16.gmra.mxu0 %v2711
        %v2795 = vpop.f32.mrf.mxu0
        %v2796 = vadd.f32 0.0, %v2795
        %v2797 = vpop.f32.mrf.mxu0
        %v2798 = vadd.f32 0.0, %v2797
        %2799 = vdwg.mxu0
        %2800 = vst.msk [vmem:[%s271] sm:$0xff] %vm331, %v2726
        %2801 = vst.msk [vmem:[%s271 + $0x8] sm:$0xff] %vm331, %v2728
        %2802 = vst.msk [vmem:[%s271 + $0x10] sm:$0xff] %vm331, %v2731
        %2803 = vst.msk [vmem:[%s271 + $0x18] sm:$0xff] %vm331, %v2733
        %2804 = vst.msk [vmem:[%s271 + $0x20] sm:$0xff] %vm331, %v2736
        %2805 = vst.msk [vmem:[%s271 + $0x28] sm:$0xff] %vm331, %v2738
        %2806 = vst.msk [vmem:[%s271 + $0x30] sm:$0xff] %vm331, %v2741
        %2807 = vst.msk [vmem:[%s271 + $0x38] sm:$0xff] %vm331, %v2743
        %2808 = vst.msk [vmem:[%s271 + $0x40] sm:$0xff] %vm331, %v2746
        %2809 = vst.msk [vmem:[%s271 + $0x48] sm:$0xff] %vm331, %v2748
        %2810 = vst.msk [vmem:[%s271 + $0x50] sm:$0xff] %vm331, %v2751
        %2811 = vst.msk [vmem:[%s271 + $0x58] sm:$0xff] %vm331, %v2753
        %2812 = vst.msk [vmem:[%s271 + $0x60] sm:$0xff] %vm331, %v2756
        %2813 = vst.msk [vmem:[%s271 + $0x68] sm:$0xff] %vm331, %v2758
        %2814 = vst.msk [vmem:[%s271 + $0x70] sm:$0xff] %vm331, %v2761
        %2815 = vst.msk [vmem:[%s271 + $0x78] sm:$0xff] %vm331, %v2763
        %2816 = vst.msk [vmem:[%s271 + $0x80] sm:$0xff] %vm331, %v2766
        %2817 = vst.msk [vmem:[%s271 + $0x88] sm:$0xff] %vm331, %v2768
        %2818 = vst.msk [vmem:[%s271 + $0x90] sm:$0xff] %vm331, %v2771
        %2819 = vst.msk [vmem:[%s271 + $0x98] sm:$0xff] %vm331, %v2773
        %2820 = vst.msk [vmem:[%s271 + $0xa0] sm:$0xff] %vm331, %v2776
        %2821 = vst.msk [vmem:[%s271 + $0xa8] sm:$0xff] %vm331, %v2778
        %2822 = vst.msk [vmem:[%s271 + $0xb0] sm:$0xff] %vm331, %v2781
        %2823 = vst.msk [vmem:[%s271 + $0xb8] sm:$0xff] %vm331, %v2783
        %2824 = vst.msk [vmem:[%s271 + $0xc0] sm:$0xff] %vm331, %v2786
        %2825 = vst.msk [vmem:[%s271 + $0xc8] sm:$0xff] %vm331, %v2788
        %2826 = vst.msk [vmem:[%s271 + $0xd0] sm:$0xff] %vm331, %v2791
        %2827 = vst.msk [vmem:[%s271 + $0xd8] sm:$0xff] %vm331, %v2793
        %2828 = vst.msk [vmem:[%s271 + $0xe0] sm:$0xff] %vm331, %v2796
        %2829 = vst.msk [vmem:[%s271 + $0xe8] sm:$0xff] %vm331, %v2798
        %s2830 = sand.u32 %s181, 1
        %s2831 = scalar_lea.sflag [#allocation3], %s2830
        %s2832 = sand.u32 %s181, 1
        %s2833 = smul.addr %s2832, 240
        %s2834 = scalar_lea.vmem [#allocation2], %s2833
        // Predicated region
        $region49: #{_lambda_.1} parent=47 // pred_check
          %p2835 = pneg %p191
        $region50: #{_lambda_.1} parent=47 // pred_check_branch
          %2837 = sbr.rel (%p2835) target = $region52
        $region51: #{_lambda_.1} parent=47 // pred_region
          %2839 = vsyncadd %s2831, 0
          %s2840 = smul.addr %s21, 30
          %s2841 = smul.addr %s2840, 8
          %s2842 = scalar_lea.hbm %s7, %s2841
          %s2843 = sshll.u32 %s2834, 4
          %s2844 = int_to_ptr.vmem [resolvable:$true] %s2843
          %s2845 = sshll.u32 %s2842, 4
          %s2846 = int_to_ptr.hbm [resolvable:$true] %s2845
          %2851 = dma.vmem_to_hbm [thread:$0]  %s2844, 3840, %s2846, %s2831, 128, 128, 8
        $region52: #{_lambda_.1} parent=47 // pred_fallthru
          _
      $region48: #{_lambda_.1} parent=5 // pred_fallthru
        _
      %p2852 = scmp.le.s32.totalorder 2, %s16
      // Predicated region
      $region53: #{_lambda_.1} parent=5 // pred_check
        %p2853 = pneg %p2852
      $region54: #{_lambda_.1} parent=5 // pred_check_branch
        %2855 = sbr.rel (%p2853) target = $region56
      $region55: #{_lambda_.1} parent=5 // pred_region
        %s2856 = ssub.s32 %s16, 2
        // Predicated region
        $region57: #{_lambda_.1} parent=55 // pred_check
          %p2857 = pneg %p197
        $region58: #{_lambda_.1} parent=55 // pred_check_branch
          %2859 = sbr.rel (%p2857) target = $region60
        $region59: #{_lambda_.1} parent=55 // pred_region
          %s2860 = sand.u32 %s182, 1
          %s2861 = scalar_lea.sflag [#allocation3], %s2860
          %s2862 = sand.u32 %s182, 1
          %s2863 = smul.addr %s2862, 240
          %s2864 = scalar_lea.vmem [#allocation2], %s2863
          %2866 = dma.done %s2861, 3840
        $region60: #{_lambda_.1} parent=55 // pred_fallthru
          _
      $region56: #{_lambda_.1} parent=5 // pred_fallthru
        _
    $region6: #{_lambda_.1} parent=1 // loop_footer
      %s20 = sadd.s32 1, %s16
    $region7: #{_lambda_.1} parent=1 // loop_footer_branch
      %15 = sbr.rel target = $region3
    $region8: #{_lambda_.1} parent=1 // loop_exit
      _
    %2867 = vsyncpa [#allocation3], 1
    %s2868 = scalar_lea.sflag [#allocation3], 1
    %2869 = vsyncpa %s2868, 1

</llo_original>
